<compile_context>
chip_gen: v5e
topology: v5e:2x2
jax: 0.10.0
libtpu: 0.0.40
codegen_flags: <defaults>
</compile_context>

<pallas_src>
import functools
import math

import jax
import jax.numpy as jnp
from jax.experimental import pallas as pl
from jax.experimental.pallas import tpu as pltpu


NEG_INF = -1e30      # additive mask value
LN_EPS = 1e-5


# ----------------------------- in-kernel helpers -----------------------------

def _dot(a, w):
    """MXU matmul: bf16 operands, f32 accumulation."""
    return jnp.dot(a.astype(jnp.bfloat16), w, preferred_element_type=jnp.float32)


def _layernorm(z, gamma, beta):
    mu = jnp.mean(z, axis=-1, keepdims=True)
    var = jnp.mean(jnp.square(z - mu), axis=-1, keepdims=True)
    return (z - mu) * jax.lax.rsqrt(var + LN_EPS) * gamma + beta


def _softmax_last(s):
    s = s - jnp.max(s, axis=-1, keepdims=True)
    p = jnp.exp(s)
    return p * pl.reciprocal(jnp.sum(p, axis=-1, keepdims=True), approx=True)


# ----------------------------- fused decoder kernel -----------------------------

def _decoder_kernel(
    # activations: a block of `bt` batch rows per grid step
    x_ref, y_ref, q_ref, xm_ref, ym_ref,
    # bf16 weights (resident across grid steps)
    w_m2c_ref, w_proto_ref, w_mapc_ref, w_xconv_ref, w_s2h_ref,
    w_qkv1_ref, w_mrg1_ref, w_qkv2_ref, w_mrg2_ref, w_d1_ref, w_d2_ref,
    # f32 bias rows that are not H-wide
    b_m2c_ref, b_mapc_ref, b_xconv_ref, b_qkv1_ref, b_qkv2_ref, b_d1_ref,
    # packed (12, H) f32 slab: g4,be4,g1,be1,g2,be2,g3,be3,b_s2h,b_mrg1,b_mrg2,b_d2
    vec_ref,
    # output
    o_ref,
    *, bt, seq, hidden, head, head_size, glimpses, num_concept):

    H, d, n = hidden, head_size, seq
    BN = bt * n

    vec = vec_ref[...]
    g4, be4, g1, be1 = vec[0:1], vec[1:2], vec[2:3], vec[3:4]
    g2, be2, g3, be3 = vec[4:5], vec[5:6], vec[6:7], vec[7:8]
    b_s2h, b_mrg1, b_mrg2, b_d2 = vec[8:9], vec[9:10], vec[10:11], vec[11:12]

    x = x_ref[...].reshape(BN, H)          # bf16 activations (2-D for lane-dense matmuls)
    y = y_ref[...].reshape(BN, H)
    q = q_ref[...].reshape(BN, H)
    xf = x.astype(jnp.float32)             # f32 residual stream
    xm = xm_ref[...]                        # (bt, 1, n) additive mask (0 / -1e30)
    ym = ym_ref[...]

    # ------------------------------------------------------------------ FIND
    qc = jnp.tanh(_dot(q, w_mapc_ref[...]) + b_mapc_ref[...])             # (BN, C)
    mem_c = _dot(x, w_m2c_ref[...]) + b_m2c_ref[...]                      # (BN, Dc)
    fp = jnp.tanh(_dot(mem_c, w_proto_ref[...]))                          # (BN, C)
    fz = -jnp.square(fp - qc) + jnp.maximum(fp + qc, 0.0)                 # Fusion
    attl = (_dot(fz, w_xconv_ref[...]) + b_xconv_ref[...]).reshape(bt, n, glimpses)
    attl = attl - jnp.max(attl, axis=1, keepdims=True)                    # softmax over seq
    attw = jnp.exp(attl)
    attw = attw * pl.reciprocal(jnp.sum(attw, axis=1, keepdims=True), approx=True)
    fp3 = fp.reshape(bt, n, num_concept)
    # sem2hidden: statically unrolled over glimpses (G is tiny); each step is a
    # batched (bt, C) @ (C, H) MXU dot; avoids multi-dim-contraction dot_general.
    sem = b_s2h                                                           # (1, H)
    for g in range(glimpses):
        ctx_g = jnp.sum(attw[:, :, g:g + 1] * fp3, axis=1)                # (bt, C)
        sem = sem + _dot(ctx_g, w_s2h_ref[g * num_concept:(g + 1) * num_concept, :])
    x1 = _layernorm(xf.reshape(bt, n, H) + sem[:, None, :], g4, be4).reshape(BN, H)

    # ------------------------------------------------- multi-head attention
    def mha(qp, kp, vp, madd, w_mrg_ref, b_mrg):
        # qp/kp/vp: (BN, H) f32.  Heads batched into single einsums; everything
        # stays in vregs (no scratch slab, no masked partial stores).
        def split_heads(t):
            cols = [t[:, h * d:(h + 1) * d] for h in range(head)]
            th = jnp.stack(cols, axis=0)                                  # (head, BN, d)
            return th.reshape(head * bt, n, d).astype(jnp.bfloat16)

        qh, kh, vh = split_heads(qp), split_heads(kp), split_heads(vp)
        # 1/sqrt(d) already folded into Wq/bq host-side.
        sc = jnp.einsum('bqd,bkd->bqk', qh, kh,
                        preferred_element_type=jnp.float32)               # (head*bt, n, n)
        sc = sc.reshape(head, bt, n, n) + madd[None, :, :, :]
        p = _softmax_last(sc).reshape(head * bt, n, n).astype(jnp.bfloat16)
        ctx = jnp.einsum('bqk,bkd->bqd', p, vh,
                         preferred_element_type=jnp.float32)              # (head*bt, n, d)
        ctx = ctx.reshape(head, BN, d)
        out = b_mrg                                                       # (1, H)
        for h in range(head):                                             # merge: vreg accumulation
            out = out + _dot(ctx[h], w_mrg_ref[h * d:(h + 1) * d, :])
        return out                                                        # (BN, H)

    # --------------------------------------------------------- MHAtt1 (self)
    qkv1 = _dot(x1, w_qkv1_ref[...]) + b_qkv1_ref[...]                    # (BN, 3H)
    att1 = mha(qkv1[:, 0:H], qkv1[:, H:2 * H], qkv1[:, 2 * H:3 * H], xm,
               w_mrg1_ref, b_mrg1)
    x2 = _layernorm(x1 + att1, g1, be1)                                   # norm1

    # -------------------------------------------------------- MHAtt2 (cross)
    q2 = _dot(x2, w_qkv2_ref[:, 0:H]) + b_qkv2_ref[:, 0:H]                # (BN, H)
    kv2 = _dot(y, w_qkv2_ref[:, H:3 * H]) + b_qkv2_ref[:, H:3 * H]        # (BN, 2H)
    att2 = mha(q2, kv2[:, 0:H], kv2[:, H:2 * H], ym, w_mrg2_ref, b_mrg2)
    x3 = _layernorm(x2 + att2, g2, be2)                                   # norm2

    # ------------------------------------------------------------------- FFN
    h1 = jnp.maximum(_dot(x3, w_d1_ref[...]) + b_d1_ref[...], 0.0)        # (BN, 2H)
    ffn = _dot(h1, w_d2_ref[...]) + b_d2
    x4 = _layernorm(x3 + ffn, g3, be3)                                    # norm3

    o_ref[...] = x4.reshape(bt, n, H).astype(o_ref.dtype)


# ----------------------------- host-side wrapper -----------------------------

def decoder_forward(params, x, y, x_mask, y_mask, query_list, head, head_size,
                    block_b=None):
    B, n, H = x.shape
    d = head_size
    f = params["find"]
    m1, m2, ffnp = params["mhatt1"], params["mhatt2"], params["ffn"]
    C = f["map_c"][0].shape[1]
    G = f["x_conv"][0].shape[1]

    if block_b is None:
        block_b = max(1, B // 2)       # keep grid >= 2 so v7x can use both TensorCores
    assert B % block_b == 0
    grid_b = B // block_b

    # query = sum(query).permute(1, 0, 2) / 2   (tiny layout op; plain JAX)
    q = jnp.transpose(sum(query_list), (1, 0, 2)) / 2.0

    # masks -> additive (B, 1, n) slabs: 0 where visible, -1e30 where masked.
    xm_add = jnp.where(x_mask.reshape(B, 1, n) > 0, NEG_INF, 0.0).astype(jnp.float32)
    ym_add = jnp.where(y_mask.reshape(B, 1, n) > 0, NEG_INF, 0.0).astype(jnp.float32)

    bf16 = lambda w: w.astype(jnp.bfloat16)
    rowf = lambda v: v.reshape(1, -1).astype(jnp.float32)
    scale = 1.0 / math.sqrt(d)

    def qkv_cat(p):
        # Fuse Q/K/V into one (H, 3H) weight; fold 1/sqrt(head_size) into the Q part.
        wq, bq = p["q"]; wk, bk = p["k"]; wv, bv = p["v"]
        w = jnp.concatenate([wq * scale, wk, wv], axis=1)
        b = jnp.concatenate([bq * scale, bk, bv], axis=0)
        return bf16(w), rowf(b)

    w_qkv1, b_qkv1 = qkv_cat(m1)
    w_qkv2, b_qkv2 = qkv_cat(m2)

    weights = [
        bf16(f["mem2concept"][0]), bf16(f["proto_w"]), bf16(f["map_c"][0]),
        bf16(f["x_conv"][0]), bf16(f["sem2hidden"][0]),
        w_qkv1, bf16(m1["merge"][0]),
        w_qkv2, bf16(m2["merge"][0]),
        bf16(ffnp["dense1"][0]), bf16(ffnp["dense2"][0]),
    ]
    biases = [rowf(f["mem2concept"][1]), rowf(f["map_c"][1]), rowf(f["x_conv"][1]),
              b_qkv1, b_qkv2, rowf(ffnp["dense1"][1])]

    # Pack the 8 LayerNorm vectors + all H-wide biases into one (12, H) slab.
    vec = jnp.stack(
        [params["norm4"][0], params["norm4"][1],
         params["norm1"][0], params["norm1"][1],
         params["norm2"][0], params["norm2"][1],
         params["norm3"][0], params["norm3"][1],
         f["sem2hidden"][1], m1["merge"][1], m2["merge"][1], ffnp["dense2"][1]],
        axis=0).astype(jnp.float32)

    act_spec = pl.BlockSpec((block_b, n, H), lambda i: (i, 0, 0))
    mask_spec = pl.BlockSpec((block_b, 1, n), lambda i: (i, 0, 0))

    def full_spec(a):
        nd = a.ndim
        return pl.BlockSpec(a.shape, lambda i, _nd=nd: (0,) * _nd)

    in_specs = ([act_spec, act_spec, act_spec, mask_spec, mask_spec]
                + [full_spec(a) for a in weights]
                + [full_spec(a) for a in biases]
                + [full_spec(vec)])

    kernel = functools.partial(
        _decoder_kernel, bt=block_b, seq=n, hidden=H, head=head,
        head_size=d, glimpses=G, num_concept=C)

    return pl.pallas_call(
        kernel,
        out_shape=jax.ShapeDtypeStruct((B, n, H), jnp.bfloat16),
        grid=(grid_b,),
        in_specs=in_specs,
        out_specs=act_spec,
        compiler_params=pltpu.CompilerParams(
            dimension_semantics=("parallel",),
            # explicit scoped-VMEM budget (re-derive for production H on v5e/v7x)
            vmem_limit_bytes=32 * 1024 * 1024),
    )(x.astype(jnp.bfloat16), y.astype(jnp.bfloat16), q.astype(jnp.bfloat16),
      xm_add, ym_add, *weights, *biases, vec)


# ----------------------------- parameter init -----------------------------

def init_params(key, H, C, Dc, G):
    keys = iter(jax.random.split(key, 64))

    def lin(in_d, out_d, s=0.05):
        return (jax.random.normal(next(keys), (in_d, out_d), jnp.float32) * s,
                jax.random.normal(next(keys), (out_d,), jnp.float32) * s)

    def mha_p():
        return {"v": lin(H, H), "k": lin(H, H), "q": lin(H, H), "merge": lin(H, H)}

    # TODO(synk): stand-in for torch.load('./prototype/prototype_vqa.pt'); shape (C, Dc).
    concept_weight = jax.random.normal(next(keys), (C, Dc), jnp.float32) * 0.05

    ones = jnp.ones((H,), jnp.float32)
    zeros = jnp.zeros((H,), jnp.float32)
    return {
        "find": {
            "mem2concept": lin(H, Dc),
            "proto_w": concept_weight.T,          # (Dc, C), bias-free, frozen
            "map_c": lin(H, C),
            "x_conv": lin(C, G),
            # stored (in=G*C, out=H); a real nn.Linear checkpoint needs a transpose.
            "sem2hidden": lin(C * G, H),
        },
        "mhatt1": mha_p(),
        "mhatt2": mha_p(),
        "ffn": {"dense1": lin(H, 2 * H), "dense2": lin(2 * H, H)},
        "norm1": (ones, zeros), "norm2": (ones, zeros),
        "norm3": (ones, zeros), "norm4": (ones, zeros),
    }


# ----------------------------- main -----------------------------

if __name__ == "__main__":
    B, n, H, head = 4, 8, 128, 8
    head_size = H // head                 # int(hidden_dim / 8), as in the module
    C, Dc, G = 32, 32, 2                  # num_concept, concept_dim, glimpses

    key = jax.random.PRNGKey(0)
    kp, kx, ky, kq1, kq2 = jax.random.split(key, 5)
    params = init_params(kp, H, C, Dc, G)

    x = jax.random.normal(kx, (B, n, H), jnp.float32)
    y = jax.random.normal(ky, (B, n, H), jnp.float32)
    # query is a list of (seq, batch, hidden) tensors (the module permutes to batch-first)
    query_list = [jax.random.normal(kq1, (n, B, H), jnp.float32),
                  jax.random.normal(kq2, (n, B, H), jnp.float32)]
    # masks: 1.0 == masked position (PyTorch bool True -> filled before softmax)
    x_mask = jnp.zeros((B, 1, 1, n), jnp.float32)
    y_mask = jnp.zeros((B, 1, 1, n), jnp.float32).at[:, :, :, -1].set(1.0)

    out = decoder_forward(params, x, y, x_mask, y_mask, query_list, head, head_size)
    out = jax.block_until_ready(out)
    assert out.shape == (B, n, H)
    assert bool(jnp.all(jnp.isfinite(out.astype(jnp.float32))))
    print("KERNEL_OK")
</pallas_src>

<mosaic_0001>
module attributes {stable_mosaic.version = 11 : i64} {
  func.func @_decoder_kernel(%arg0: i32, %arg1: memref<2x8x128xbf16, #tpu.memory_space<vmem>>, %arg2: memref<2x8x128xbf16, #tpu.memory_space<vmem>>, %arg3: memref<2x8x128xbf16, #tpu.memory_space<vmem>>, %arg4: memref<2x1x8xf32, #tpu.memory_space<vmem>>, %arg5: memref<2x1x8xf32, #tpu.memory_space<vmem>>, %arg6: memref<128x32xbf16, #tpu.memory_space<vmem>>, %arg7: memref<32x32xbf16, #tpu.memory_space<vmem>>, %arg8: memref<128x32xbf16, #tpu.memory_space<vmem>>, %arg9: memref<32x2xbf16, #tpu.memory_space<vmem>>, %arg10: memref<64x128xbf16, #tpu.memory_space<vmem>>, %arg11: memref<128x384xbf16, #tpu.memory_space<vmem>>, %arg12: memref<128x128xbf16, #tpu.memory_space<vmem>>, %arg13: memref<128x384xbf16, #tpu.memory_space<vmem>>, %arg14: memref<128x128xbf16, #tpu.memory_space<vmem>>, %arg15: memref<128x256xbf16, #tpu.memory_space<vmem>>, %arg16: memref<256x128xbf16, #tpu.memory_space<vmem>>, %arg17: memref<1x32xf32, #tpu.memory_space<vmem>>, %arg18: memref<1x32xf32, #tpu.memory_space<vmem>>, %arg19: memref<1x2xf32, #tpu.memory_space<vmem>>, %arg20: memref<1x384xf32, #tpu.memory_space<vmem>>, %arg21: memref<1x384xf32, #tpu.memory_space<vmem>>, %arg22: memref<1x256xf32, #tpu.memory_space<vmem>>, %arg23: memref<12x128xf32, #tpu.memory_space<vmem>>, %arg24: memref<2x8x128xbf16, #tpu.memory_space<vmem>>) attributes {dimension_semantics = [#tpu.dimension_semantics<parallel>], iteration_bounds = array<i64: 2>, scalar_prefetch = 0 : i64, scratch_operands = 0 : i64, tpu.core_type = #tpu.core_type<tc>, window_params = [{transform_indices = @transform_0, window_bounds = array<i64: 2, 8, 128>}, {transform_indices = @transform_1, window_bounds = array<i64: 2, 8, 128>}, {transform_indices = @transform_2, window_bounds = array<i64: 2, 8, 128>}, {transform_indices = @transform_3, window_bounds = array<i64: 2, 1, 8>}, {transform_indices = @transform_4, window_bounds = array<i64: 2, 1, 8>}, {pipeline_mode = #tpu.pipeline_mode<synchronous>, transform_indices = @transform_5, window_bounds = array<i64: 128, 32>}, {pipeline_mode = #tpu.pipeline_mode<synchronous>, transform_indices = @transform_6, window_bounds = array<i64: 32, 32>}, {pipeline_mode = #tpu.pipeline_mode<synchronous>, transform_indices = @transform_7, window_bounds = array<i64: 128, 32>}, {pipeline_mode = #tpu.pipeline_mode<synchronous>, transform_indices = @transform_8, window_bounds = array<i64: 32, 2>}, {pipeline_mode = #tpu.pipeline_mode<synchronous>, transform_indices = @transform_9, window_bounds = array<i64: 64, 128>}, {pipeline_mode = #tpu.pipeline_mode<synchronous>, transform_indices = @transform_10, window_bounds = array<i64: 128, 384>}, {pipeline_mode = #tpu.pipeline_mode<synchronous>, transform_indices = @transform_11, window_bounds = array<i64: 128, 128>}, {pipeline_mode = #tpu.pipeline_mode<synchronous>, transform_indices = @transform_12, window_bounds = array<i64: 128, 384>}, {pipeline_mode = #tpu.pipeline_mode<synchronous>, transform_indices = @transform_13, window_bounds = array<i64: 128, 128>}, {pipeline_mode = #tpu.pipeline_mode<synchronous>, transform_indices = @transform_14, window_bounds = array<i64: 128, 256>}, {pipeline_mode = #tpu.pipeline_mode<synchronous>, transform_indices = @transform_15, window_bounds = array<i64: 256, 128>}, {pipeline_mode = #tpu.pipeline_mode<synchronous>, transform_indices = @transform_16, window_bounds = array<i64: 1, 32>}, {pipeline_mode = #tpu.pipeline_mode<synchronous>, transform_indices = @transform_17, window_bounds = array<i64: 1, 32>}, {pipeline_mode = #tpu.pipeline_mode<synchronous>, transform_indices = @transform_18, window_bounds = array<i64: 1, 2>}, {pipeline_mode = #tpu.pipeline_mode<synchronous>, transform_indices = @transform_19, window_bounds = array<i64: 1, 384>}, {pipeline_mode = #tpu.pipeline_mode<synchronous>, transform_indices = @transform_20, window_bounds = array<i64: 1, 384>}, {pipeline_mode = #tpu.pipeline_mode<synchronous>, transform_indices = @transform_21, window_bounds = array<i64: 1, 256>}, {pipeline_mode = #tpu.pipeline_mode<synchronous>, transform_indices = @transform_22, window_bounds = array<i64: 12, 128>}, {transform_indices = @transform_23, window_bounds = array<i64: 2, 8, 128>}]} {
    %c0 = arith.constant 0 : index
    %c0_0 = arith.constant 0 : index
    %0 = vector.load %arg23[%c0, %c0_0] : memref<12x128xf32, #tpu.memory_space<vmem>>, vector<12x128xf32>
    %1 = vector.extract_strided_slice %0 {offsets = [0, 0], sizes = [1, 128], strides = [1, 1]} : vector<12x128xf32> to vector<1x128xf32>
    %2 = vector.extract_strided_slice %0 {offsets = [1, 0], sizes = [1, 128], strides = [1, 1]} : vector<12x128xf32> to vector<1x128xf32>
    %3 = vector.extract_strided_slice %0 {offsets = [2, 0], sizes = [1, 128], strides = [1, 1]} : vector<12x128xf32> to vector<1x128xf32>
    %4 = vector.extract_strided_slice %0 {offsets = [3, 0], sizes = [1, 128], strides = [1, 1]} : vector<12x128xf32> to vector<1x128xf32>
    %5 = vector.extract_strided_slice %0 {offsets = [4, 0], sizes = [1, 128], strides = [1, 1]} : vector<12x128xf32> to vector<1x128xf32>
    %6 = vector.extract_strided_slice %0 {offsets = [5, 0], sizes = [1, 128], strides = [1, 1]} : vector<12x128xf32> to vector<1x128xf32>
    %7 = vector.extract_strided_slice %0 {offsets = [6, 0], sizes = [1, 128], strides = [1, 1]} : vector<12x128xf32> to vector<1x128xf32>
    %8 = vector.extract_strided_slice %0 {offsets = [7, 0], sizes = [1, 128], strides = [1, 1]} : vector<12x128xf32> to vector<1x128xf32>
    %9 = vector.extract_strided_slice %0 {offsets = [8, 0], sizes = [1, 128], strides = [1, 1]} : vector<12x128xf32> to vector<1x128xf32>
    %10 = vector.extract_strided_slice %0 {offsets = [9, 0], sizes = [1, 128], strides = [1, 1]} : vector<12x128xf32> to vector<1x128xf32>
    %11 = vector.extract_strided_slice %0 {offsets = [10, 0], sizes = [1, 128], strides = [1, 1]} : vector<12x128xf32> to vector<1x128xf32>
    %12 = vector.extract_strided_slice %0 {offsets = [11, 0], sizes = [1, 128], strides = [1, 1]} : vector<12x128xf32> to vector<1x128xf32>
    %c0_1 = arith.constant 0 : index
    %c0_2 = arith.constant 0 : index
    %c0_3 = arith.constant 0 : index
    %13 = vector.load %arg1[%c0_1, %c0_2, %c0_3] : memref<2x8x128xbf16, #tpu.memory_space<vmem>>, vector<2x8x128xbf16>
    %14 = vector.shape_cast %13 : vector<2x8x128xbf16> to vector<16x128xbf16>
    %c0_4 = arith.constant 0 : index
    %c0_5 = arith.constant 0 : index
    %c0_6 = arith.constant 0 : index
    %15 = vector.load %arg2[%c0_4, %c0_5, %c0_6] : memref<2x8x128xbf16, #tpu.memory_space<vmem>>, vector<2x8x128xbf16>
    %16 = vector.shape_cast %15 : vector<2x8x128xbf16> to vector<16x128xbf16>
    %c0_7 = arith.constant 0 : index
    %c0_8 = arith.constant 0 : index
    %c0_9 = arith.constant 0 : index
    %17 = vector.load %arg3[%c0_7, %c0_8, %c0_9] : memref<2x8x128xbf16, #tpu.memory_space<vmem>>, vector<2x8x128xbf16>
    %18 = vector.shape_cast %17 : vector<2x8x128xbf16> to vector<16x128xbf16>
    %19 = arith.extf %14 : vector<16x128xbf16> to vector<16x128xf32>
    %c0_10 = arith.constant 0 : index
    %c0_11 = arith.constant 0 : index
    %c0_12 = arith.constant 0 : index
    %20 = vector.load %arg4[%c0_10, %c0_11, %c0_12] : memref<2x1x8xf32, #tpu.memory_space<vmem>>, vector<2x1x8xf32>
    %c0_13 = arith.constant 0 : index
    %c0_14 = arith.constant 0 : index
    %c0_15 = arith.constant 0 : index
    %21 = vector.load %arg5[%c0_13, %c0_14, %c0_15] : memref<2x1x8xf32, #tpu.memory_space<vmem>>, vector<2x1x8xf32>
    %c0_16 = arith.constant 0 : index
    %c0_17 = arith.constant 0 : index
    %22 = vector.load %arg8[%c0_16, %c0_17] : memref<128x32xbf16, #tpu.memory_space<vmem>>, vector<128x32xbf16>
    %cst = arith.constant dense<0.000000e+00> : vector<16x32xf32>
    %23 = tpu.matmul %18, %22, %cst {dimension_numbers = #tpu.dot_dimension_numbers<[1], [0], [0], [1], [0, 0, 1, 1], [], []>} : vector<16x128xbf16>, vector<128x32xbf16>, vector<16x32xf32> -> vector<16x32xf32>
    %c0_18 = arith.constant 0 : index
    %c0_19 = arith.constant 0 : index
    %24 = vector.load %arg18[%c0_18, %c0_19] : memref<1x32xf32, #tpu.memory_space<vmem>>, vector<1x32xf32>
    %25 = vector.broadcast %24 : vector<1x32xf32> to vector<16x32xf32>
    %26 = arith.addf %23, %25 : vector<16x32xf32>
    %27 = math.tanh %26 : vector<16x32xf32>
    %c0_20 = arith.constant 0 : index
    %c0_21 = arith.constant 0 : index
    %28 = vector.load %arg6[%c0_20, %c0_21] : memref<128x32xbf16, #tpu.memory_space<vmem>>, vector<128x32xbf16>
    %cst_22 = arith.constant dense<0.000000e+00> : vector<16x32xf32>
    %29 = tpu.matmul %14, %28, %cst_22 {dimension_numbers = #tpu.dot_dimension_numbers<[1], [0], [0], [1], [0, 0, 1, 1], [], []>} : vector<16x128xbf16>, vector<128x32xbf16>, vector<16x32xf32> -> vector<16x32xf32>
    %c0_23 = arith.constant 0 : index
    %c0_24 = arith.constant 0 : index
    %30 = vector.load %arg17[%c0_23, %c0_24] : memref<1x32xf32, #tpu.memory_space<vmem>>, vector<1x32xf32>
    %31 = vector.broadcast %30 : vector<1x32xf32> to vector<16x32xf32>
    %32 = arith.addf %29, %31 : vector<16x32xf32>
    %c0_25 = arith.constant 0 : index
    %c0_26 = arith.constant 0 : index
    %33 = vector.load %arg7[%c0_25, %c0_26] : memref<32x32xbf16, #tpu.memory_space<vmem>>, vector<32x32xbf16>
    %34 = arith.truncf %32 : vector<16x32xf32> to vector<16x32xbf16>
    %cst_27 = arith.constant dense<0.000000e+00> : vector<16x32xf32>
    %35 = tpu.matmul %34, %33, %cst_27 {dimension_numbers = #tpu.dot_dimension_numbers<[1], [0], [0], [1], [0, 0, 1, 1], [], []>} : vector<16x32xbf16>, vector<32x32xbf16>, vector<16x32xf32> -> vector<16x32xf32>
    %36 = math.tanh %35 : vector<16x32xf32>
    %37 = arith.subf %36, %27 : vector<16x32xf32>
    %38 = arith.mulf %37, %37 : vector<16x32xf32>
    %cst_28 = arith.constant 0.000000e+00 : f32
    %39 = vector.broadcast %cst_28 : f32 to vector<16x32xf32>
    %40 = arith.subf %39, %38 : vector<16x32xf32>
    %41 = arith.addf %36, %27 : vector<16x32xf32>
    %cst_29 = arith.constant 0.000000e+00 : f32
    %42 = vector.broadcast %cst_29 : f32 to vector<16x32xf32>
    %43 = arith.maximumf %41, %42 : vector<16x32xf32>
    %44 = arith.addf %40, %43 : vector<16x32xf32>
    %c0_30 = arith.constant 0 : index
    %c0_31 = arith.constant 0 : index
    %45 = vector.load %arg9[%c0_30, %c0_31] : memref<32x2xbf16, #tpu.memory_space<vmem>>, vector<32x2xbf16>
    %46 = arith.truncf %44 : vector<16x32xf32> to vector<16x32xbf16>
    %cst_32 = arith.constant dense<0.000000e+00> : vector<16x2xf32>
    %47 = tpu.matmul %46, %45, %cst_32 {dimension_numbers = #tpu.dot_dimension_numbers<[1], [0], [0], [1], [0, 0, 1, 1], [], []>} : vector<16x32xbf16>, vector<32x2xbf16>, vector<16x2xf32> -> vector<16x2xf32>
    %c0_33 = arith.constant 0 : index
    %c0_34 = arith.constant 0 : index
    %48 = vector.load %arg19[%c0_33, %c0_34] : memref<1x2xf32, #tpu.memory_space<vmem>>, vector<1x2xf32>
    %49 = vector.broadcast %48 : vector<1x2xf32> to vector<16x2xf32>
    %50 = arith.addf %47, %49 : vector<16x2xf32>
    %51 = vector.shape_cast %50 : vector<16x2xf32> to vector<2x8x2xf32>
    %cst_35 = arith.constant dense<0xFF800000> : vector<2x2xf32>
    %52 = vector.multi_reduction <maximumf>, %51, %cst_35 [1] : vector<2x8x2xf32> to vector<2x2xf32>
    %53 = vector.shape_cast %52 : vector<2x2xf32> to vector<2x1x2xf32>
    %54 = vector.broadcast %53 : vector<2x1x2xf32> to vector<2x8x2xf32>
    %55 = arith.subf %51, %54 : vector<2x8x2xf32>
    %56 = math.exp %55 : vector<2x8x2xf32>
    %cst_36 = arith.constant dense<0.000000e+00> : vector<2x2xf32>
    %57 = vector.multi_reduction <add>, %56, %cst_36 [1] : vector<2x8x2xf32> to vector<2x2xf32>
    %58 = vector.shape_cast %57 : vector<2x2xf32> to vector<2x1x2xf32>
    %59 = tpu.reciprocal %58 {approx = true} : vector<2x1x2xf32> -> vector<2x1x2xf32>
    %60 = vector.broadcast %59 : vector<2x1x2xf32> to vector<2x8x2xf32>
    %61 = arith.mulf %56, %60 : vector<2x8x2xf32>
    %62 = vector.shape_cast %36 : vector<16x32xf32> to vector<2x8x32xf32>
    %63 = vector.extract_strided_slice %61 {offsets = [0, 0, 0], sizes = [2, 8, 1], strides = [1, 1, 1]} : vector<2x8x2xf32> to vector<2x8x1xf32>
    %64 = vector.broadcast %63 : vector<2x8x1xf32> to vector<2x8x32xf32>
    %65 = arith.mulf %64, %62 : vector<2x8x32xf32>
    %cst_37 = arith.constant dense<0.000000e+00> : vector<2x32xf32>
    %66 = vector.multi_reduction <add>, %65, %cst_37 [1] : vector<2x8x32xf32> to vector<2x32xf32>
    %c0_38 = arith.constant 0 : index
    %c0_39 = arith.constant 0 : index
    %67 = vector.load %arg10[%c0_38, %c0_39] : memref<64x128xbf16, #tpu.memory_space<vmem>>, vector<32x128xbf16>
    %68 = arith.truncf %66 : vector<2x32xf32> to vector<2x32xbf16>
    %cst_40 = arith.constant dense<0.000000e+00> : vector<2x128xf32>
    %69 = tpu.matmul %68, %67, %cst_40 {dimension_numbers = #tpu.dot_dimension_numbers<[1], [0], [0], [1], [0, 0, 1, 1], [], []>} : vector<2x32xbf16>, vector<32x128xbf16>, vector<2x128xf32> -> vector<2x128xf32>
    %70 = vector.broadcast %9 : vector<1x128xf32> to vector<2x128xf32>
    %71 = arith.addf %70, %69 : vector<2x128xf32>
    %72 = vector.extract_strided_slice %61 {offsets = [0, 0, 1], sizes = [2, 8, 1], strides = [1, 1, 1]} : vector<2x8x2xf32> to vector<2x8x1xf32>
    %73 = vector.broadcast %72 : vector<2x8x1xf32> to vector<2x8x32xf32>
    %74 = arith.mulf %73, %62 : vector<2x8x32xf32>
    %cst_41 = arith.constant dense<0.000000e+00> : vector<2x32xf32>
    %75 = vector.multi_reduction <add>, %74, %cst_41 [1] : vector<2x8x32xf32> to vector<2x32xf32>
    %c32 = arith.constant 32 : index
    %c0_42 = arith.constant 0 : index
    %76 = vector.load %arg10[%c32, %c0_42] : memref<64x128xbf16, #tpu.memory_space<vmem>>, vector<32x128xbf16>
    %77 = arith.truncf %75 : vector<2x32xf32> to vector<2x32xbf16>
    %cst_43 = arith.constant dense<0.000000e+00> : vector<2x128xf32>
    %78 = tpu.matmul %77, %76, %cst_43 {dimension_numbers = #tpu.dot_dimension_numbers<[1], [0], [0], [1], [0, 0, 1, 1], [], []>} : vector<2x32xbf16>, vector<32x128xbf16>, vector<2x128xf32> -> vector<2x128xf32>
    %79 = arith.addf %71, %78 : vector<2x128xf32>
    %80 = vector.shape_cast %19 : vector<16x128xf32> to vector<2x8x128xf32>
    %81 = vector.shape_cast %79 : vector<2x128xf32> to vector<2x1x128xf32>
    %82 = vector.broadcast %81 : vector<2x1x128xf32> to vector<2x8x128xf32>
    %83 = arith.addf %80, %82 : vector<2x8x128xf32>
    %cst_44 = arith.constant dense<0.000000e+00> : vector<2x8xf32>
    %84 = vector.multi_reduction <add>, %83, %cst_44 [2] : vector<2x8x128xf32> to vector<2x8xf32>
    %85 = vector.shape_cast %84 : vector<2x8xf32> to vector<2x8x1xf32>
    %cst_45 = arith.constant 1.280000e+02 : f32
    %86 = vector.broadcast %cst_45 : f32 to vector<2x8x1xf32>
    %87 = arith.divf %85, %86 : vector<2x8x1xf32>
    %88 = vector.broadcast %87 : vector<2x8x1xf32> to vector<2x8x128xf32>
    %89 = arith.subf %83, %88 : vector<2x8x128xf32>
    %90 = arith.mulf %89, %89 : vector<2x8x128xf32>
    %cst_46 = arith.constant dense<0.000000e+00> : vector<2x8xf32>
    %91 = vector.multi_reduction <add>, %90, %cst_46 [2] : vector<2x8x128xf32> to vector<2x8xf32>
    %92 = vector.shape_cast %91 : vector<2x8xf32> to vector<2x8x1xf32>
    %cst_47 = arith.constant 1.280000e+02 : f32
    %93 = vector.broadcast %cst_47 : f32 to vector<2x8x1xf32>
    %94 = arith.divf %92, %93 : vector<2x8x1xf32>
    %95 = vector.broadcast %87 : vector<2x8x1xf32> to vector<2x8x128xf32>
    %96 = arith.subf %83, %95 : vector<2x8x128xf32>
    %cst_48 = arith.constant 9.99999974E-6 : f32
    %97 = vector.broadcast %cst_48 : f32 to vector<2x8x1xf32>
    %98 = arith.addf %94, %97 : vector<2x8x1xf32>
    %99 = math.rsqrt %98 : vector<2x8x1xf32>
    %100 = vector.broadcast %99 : vector<2x8x1xf32> to vector<2x8x128xf32>
    %101 = arith.mulf %96, %100 : vector<2x8x128xf32>
    %102 = vector.shape_cast %1 : vector<1x128xf32> to vector<1x1x128xf32>
    %103 = vector.broadcast %102 : vector<1x1x128xf32> to vector<2x8x128xf32>
    %104 = arith.mulf %101, %103 : vector<2x8x128xf32>
    %105 = vector.shape_cast %2 : vector<1x128xf32> to vector<1x1x128xf32>
    %106 = vector.broadcast %105 : vector<1x1x128xf32> to vector<2x8x128xf32>
    %107 = arith.addf %104, %106 : vector<2x8x128xf32>
    %108 = vector.shape_cast %107 : vector<2x8x128xf32> to vector<16x128xf32>
    %c0_49 = arith.constant 0 : index
    %c0_50 = arith.constant 0 : index
    %109 = vector.load %arg11[%c0_49, %c0_50] : memref<128x384xbf16, #tpu.memory_space<vmem>>, vector<128x384xbf16>
    %110 = arith.truncf %108 : vector<16x128xf32> to vector<16x128xbf16>
    %cst_51 = arith.constant dense<0.000000e+00> : vector<16x384xf32>
    %111 = tpu.matmul %110, %109, %cst_51 {dimension_numbers = #tpu.dot_dimension_numbers<[1], [0], [0], [1], [0, 0, 1, 1], [], []>} : vector<16x128xbf16>, vector<128x384xbf16>, vector<16x384xf32> -> vector<16x384xf32>
    %c0_52 = arith.constant 0 : index
    %c0_53 = arith.constant 0 : index
    %112 = vector.load %arg20[%c0_52, %c0_53] : memref<1x384xf32, #tpu.memory_space<vmem>>, vector<1x384xf32>
    %113 = vector.broadcast %112 : vector<1x384xf32> to vector<16x384xf32>
    %114 = arith.addf %111, %113 : vector<16x384xf32>
    %115 = vector.extract_strided_slice %114 {offsets = [0, 0], sizes = [16, 128], strides = [1, 1]} : vector<16x384xf32> to vector<16x128xf32>
    %116 = vector.extract_strided_slice %114 {offsets = [0, 128], sizes = [16, 128], strides = [1, 1]} : vector<16x384xf32> to vector<16x128xf32>
    %117 = vector.extract_strided_slice %114 {offsets = [0, 256], sizes = [16, 128], strides = [1, 1]} : vector<16x384xf32> to vector<16x128xf32>
    %118 = vector.extract_strided_slice %115 {offsets = [0, 0], sizes = [16, 16], strides = [1, 1]} : vector<16x128xf32> to vector<16x16xf32>
    %119 = vector.extract_strided_slice %115 {offsets = [0, 16], sizes = [16, 16], strides = [1, 1]} : vector<16x128xf32> to vector<16x16xf32>
    %120 = vector.extract_strided_slice %115 {offsets = [0, 32], sizes = [16, 16], strides = [1, 1]} : vector<16x128xf32> to vector<16x16xf32>
    %121 = vector.extract_strided_slice %115 {offsets = [0, 48], sizes = [16, 16], strides = [1, 1]} : vector<16x128xf32> to vector<16x16xf32>
    %122 = vector.extract_strided_slice %115 {offsets = [0, 64], sizes = [16, 16], strides = [1, 1]} : vector<16x128xf32> to vector<16x16xf32>
    %123 = vector.extract_strided_slice %115 {offsets = [0, 80], sizes = [16, 16], strides = [1, 1]} : vector<16x128xf32> to vector<16x16xf32>
    %124 = vector.extract_strided_slice %115 {offsets = [0, 96], sizes = [16, 16], strides = [1, 1]} : vector<16x128xf32> to vector<16x16xf32>
    %125 = vector.extract_strided_slice %115 {offsets = [0, 112], sizes = [16, 16], strides = [1, 1]} : vector<16x128xf32> to vector<16x16xf32>
    %126 = vector.shape_cast %118 : vector<16x16xf32> to vector<1x16x16xf32>
    %127 = vector.shape_cast %119 : vector<16x16xf32> to vector<1x16x16xf32>
    %128 = vector.shape_cast %120 : vector<16x16xf32> to vector<1x16x16xf32>
    %129 = vector.shape_cast %121 : vector<16x16xf32> to vector<1x16x16xf32>
    %130 = vector.shape_cast %122 : vector<16x16xf32> to vector<1x16x16xf32>
    %131 = vector.shape_cast %123 : vector<16x16xf32> to vector<1x16x16xf32>
    %132 = vector.shape_cast %124 : vector<16x16xf32> to vector<1x16x16xf32>
    %133 = vector.shape_cast %125 : vector<16x16xf32> to vector<1x16x16xf32>
    %134 = tpu.concatenate %126, %127, %128, %129, %130, %131, %132, %133 in 0 : vector<1x16x16xf32>, vector<1x16x16xf32>, vector<1x16x16xf32>, vector<1x16x16xf32>, vector<1x16x16xf32>, vector<1x16x16xf32>, vector<1x16x16xf32>, vector<1x16x16xf32> -> vector<8x16x16xf32>
    %135 = vector.shape_cast %134 : vector<8x16x16xf32> to vector<16x8x16xf32>
    %136 = arith.truncf %135 : vector<16x8x16xf32> to vector<16x8x16xbf16>
    %137 = vector.extract_strided_slice %116 {offsets = [0, 0], sizes = [16, 16], strides = [1, 1]} : vector<16x128xf32> to vector<16x16xf32>
    %138 = vector.extract_strided_slice %116 {offsets = [0, 16], sizes = [16, 16], strides = [1, 1]} : vector<16x128xf32> to vector<16x16xf32>
    %139 = vector.extract_strided_slice %116 {offsets = [0, 32], sizes = [16, 16], strides = [1, 1]} : vector<16x128xf32> to vector<16x16xf32>
    %140 = vector.extract_strided_slice %116 {offsets = [0, 48], sizes = [16, 16], strides = [1, 1]} : vector<16x128xf32> to vector<16x16xf32>
    %141 = vector.extract_strided_slice %116 {offsets = [0, 64], sizes = [16, 16], strides = [1, 1]} : vector<16x128xf32> to vector<16x16xf32>
    %142 = vector.extract_strided_slice %116 {offsets = [0, 80], sizes = [16, 16], strides = [1, 1]} : vector<16x128xf32> to vector<16x16xf32>
    %143 = vector.extract_strided_slice %116 {offsets = [0, 96], sizes = [16, 16], strides = [1, 1]} : vector<16x128xf32> to vector<16x16xf32>
    %144 = vector.extract_strided_slice %116 {offsets = [0, 112], sizes = [16, 16], strides = [1, 1]} : vector<16x128xf32> to vector<16x16xf32>
    %145 = vector.shape_cast %137 : vector<16x16xf32> to vector<1x16x16xf32>
    %146 = vector.shape_cast %138 : vector<16x16xf32> to vector<1x16x16xf32>
    %147 = vector.shape_cast %139 : vector<16x16xf32> to vector<1x16x16xf32>
    %148 = vector.shape_cast %140 : vector<16x16xf32> to vector<1x16x16xf32>
    %149 = vector.shape_cast %141 : vector<16x16xf32> to vector<1x16x16xf32>
    %150 = vector.shape_cast %142 : vector<16x16xf32> to vector<1x16x16xf32>
    %151 = vector.shape_cast %143 : vector<16x16xf32> to vector<1x16x16xf32>
    %152 = vector.shape_cast %144 : vector<16x16xf32> to vector<1x16x16xf32>
    %153 = tpu.concatenate %145, %146, %147, %148, %149, %150, %151, %152 in 0 : vector<1x16x16xf32>, vector<1x16x16xf32>, vector<1x16x16xf32>, vector<1x16x16xf32>, vector<1x16x16xf32>, vector<1x16x16xf32>, vector<1x16x16xf32>, vector<1x16x16xf32> -> vector<8x16x16xf32>
    %154 = vector.shape_cast %153 : vector<8x16x16xf32> to vector<16x8x16xf32>
    %155 = arith.truncf %154 : vector<16x8x16xf32> to vector<16x8x16xbf16>
    %156 = vector.extract_strided_slice %117 {offsets = [0, 0], sizes = [16, 16], strides = [1, 1]} : vector<16x128xf32> to vector<16x16xf32>
    %157 = vector.extract_strided_slice %117 {offsets = [0, 16], sizes = [16, 16], strides = [1, 1]} : vector<16x128xf32> to vector<16x16xf32>
    %158 = vector.extract_strided_slice %117 {offsets = [0, 32], sizes = [16, 16], strides = [1, 1]} : vector<16x128xf32> to vector<16x16xf32>
    %159 = vector.extract_strided_slice %117 {offsets = [0, 48], sizes = [16, 16], strides = [1, 1]} : vector<16x128xf32> to vector<16x16xf32>
    %160 = vector.extract_strided_slice %117 {offsets = [0, 64], sizes = [16, 16], strides = [1, 1]} : vector<16x128xf32> to vector<16x16xf32>
    %161 = vector.extract_strided_slice %117 {offsets = [0, 80], sizes = [16, 16], strides = [1, 1]} : vector<16x128xf32> to vector<16x16xf32>
    %162 = vector.extract_strided_slice %117 {offsets = [0, 96], sizes = [16, 16], strides = [1, 1]} : vector<16x128xf32> to vector<16x16xf32>
    %163 = vector.extract_strided_slice %117 {offsets = [0, 112], sizes = [16, 16], strides = [1, 1]} : vector<16x128xf32> to vector<16x16xf32>
    %164 = vector.shape_cast %156 : vector<16x16xf32> to vector<1x16x16xf32>
    %165 = vector.shape_cast %157 : vector<16x16xf32> to vector<1x16x16xf32>
    %166 = vector.shape_cast %158 : vector<16x16xf32> to vector<1x16x16xf32>
    %167 = vector.shape_cast %159 : vector<16x16xf32> to vector<1x16x16xf32>
    %168 = vector.shape_cast %160 : vector<16x16xf32> to vector<1x16x16xf32>
    %169 = vector.shape_cast %161 : vector<16x16xf32> to vector<1x16x16xf32>
    %170 = vector.shape_cast %162 : vector<16x16xf32> to vector<1x16x16xf32>
    %171 = vector.shape_cast %163 : vector<16x16xf32> to vector<1x16x16xf32>
    %172 = tpu.concatenate %164, %165, %166, %167, %168, %169, %170, %171 in 0 : vector<1x16x16xf32>, vector<1x16x16xf32>, vector<1x16x16xf32>, vector<1x16x16xf32>, vector<1x16x16xf32>, vector<1x16x16xf32>, vector<1x16x16xf32>, vector<1x16x16xf32> -> vector<8x16x16xf32>
    %173 = vector.shape_cast %172 : vector<8x16x16xf32> to vector<16x8x16xf32>
    %174 = arith.truncf %173 : vector<16x8x16xf32> to vector<16x8x16xbf16>
    "tpu.trace_start"() <{level = 10 : i32, message = "bqd,bkd->bqk"}> : () -> ()
    %cst_54 = arith.constant dense<0.000000e+00> : vector<16x8x8xf32>
    %175 = tpu.matmul %136, %155, %cst_54 {dimension_numbers = #tpu.dot_dimension_numbers<[2], [2], [1], [1], [0, 0, 0, 1, 1, 1], [0], [0]>} : vector<16x8x16xbf16>, vector<16x8x16xbf16>, vector<16x8x8xf32> -> vector<16x8x8xf32>
    "tpu.trace_stop"() : () -> ()
    %176 = vector.shape_cast %175 : vector<16x8x8xf32> to vector<8x2x8x8xf32>
    %177 = vector.shape_cast %20 : vector<2x1x8xf32> to vector<1x2x1x8xf32>
    %178 = vector.broadcast %177 : vector<1x2x1x8xf32> to vector<8x2x8x8xf32>
    %179 = arith.addf %176, %178 : vector<8x2x8x8xf32>
    %cst_55 = arith.constant dense<0xFF800000> : vector<8x2x8xf32>
    %180 = vector.multi_reduction <maximumf>, %179, %cst_55 [3] : vector<8x2x8x8xf32> to vector<8x2x8xf32>
    %181 = vector.shape_cast %180 : vector<8x2x8xf32> to vector<8x2x8x1xf32>
    %182 = vector.broadcast %181 : vector<8x2x8x1xf32> to vector<8x2x8x8xf32>
    %183 = arith.subf %179, %182 : vector<8x2x8x8xf32>
    %184 = math.exp %183 : vector<8x2x8x8xf32>
    %cst_56 = arith.constant dense<0.000000e+00> : vector<8x2x8xf32>
    %185 = vector.multi_reduction <add>, %184, %cst_56 [3] : vector<8x2x8x8xf32> to vector<8x2x8xf32>
    %186 = vector.shape_cast %185 : vector<8x2x8xf32> to vector<8x2x8x1xf32>
    %187 = tpu.reciprocal %186 {approx = true} : vector<8x2x8x1xf32> -> vector<8x2x8x1xf32>
    %188 = vector.broadcast %187 : vector<8x2x8x1xf32> to vector<8x2x8x8xf32>
    %189 = arith.mulf %184, %188 : vector<8x2x8x8xf32>
    %190 = vector.shape_cast %189 : vector<8x2x8x8xf32> to vector<16x8x8xf32>
    %191 = arith.truncf %190 : vector<16x8x8xf32> to vector<16x8x8xbf16>
    "tpu.trace_start"() <{level = 10 : i32, message = "bqk,bkd->bqd"}> : () -> ()
    %cst_57 = arith.constant dense<0.000000e+00> : vector<16x8x16xf32>
    %192 = tpu.matmul %191, %174, %cst_57 {dimension_numbers = #tpu.dot_dimension_numbers<[2], [1], [1], [2], [0, 0, 0, 1, 1, 2], [0], [0]>} : vector<16x8x8xbf16>, vector<16x8x16xbf16>, vector<16x8x16xf32> -> vector<16x8x16xf32>
    "tpu.trace_stop"() : () -> ()
    %193 = vector.shape_cast %192 : vector<16x8x16xf32> to vector<8x16x16xf32>
    %194 = vector.extract_strided_slice %193 {offsets = [0, 0, 0], sizes = [1, 16, 16], strides = [1, 1, 1]} : vector<8x16x16xf32> to vector<1x16x16xf32>
    %195 = vector.shape_cast %194 : vector<1x16x16xf32> to vector<16x16xf32>
    %c0_58 = arith.constant 0 : index
    %c0_59 = arith.constant 0 : index
    %196 = vector.load %arg12[%c0_58, %c0_59] : memref<128x128xbf16, #tpu.memory_space<vmem>>, vector<16x128xbf16>
    %197 = arith.truncf %195 : vector<16x16xf32> to vector<16x16xbf16>
    %cst_60 = arith.constant dense<0.000000e+00> : vector<16x128xf32>
    %198 = tpu.matmul %197, %196, %cst_60 {dimension_numbers = #tpu.dot_dimension_numbers<[1], [0], [0], [1], [0, 0, 1, 1], [], []>} : vector<16x16xbf16>, vector<16x128xbf16>, vector<16x128xf32> -> vector<16x128xf32>
    %199 = vector.broadcast %10 : vector<1x128xf32> to vector<16x128xf32>
    %200 = arith.addf %199, %198 : vector<16x128xf32>
    %201 = vector.extract_strided_slice %193 {offsets = [1, 0, 0], sizes = [1, 16, 16], strides = [1, 1, 1]} : vector<8x16x16xf32> to vector<1x16x16xf32>
    %202 = vector.shape_cast %201 : vector<1x16x16xf32> to vector<16x16xf32>
    %c16 = arith.constant 16 : index
    %c0_61 = arith.constant 0 : index
    %203 = vector.load %arg12[%c16, %c0_61] : memref<128x128xbf16, #tpu.memory_space<vmem>>, vector<16x128xbf16>
    %204 = arith.truncf %202 : vector<16x16xf32> to vector<16x16xbf16>
    %cst_62 = arith.constant dense<0.000000e+00> : vector<16x128xf32>
    %205 = tpu.matmul %204, %203, %cst_62 {dimension_numbers = #tpu.dot_dimension_numbers<[1], [0], [0], [1], [0, 0, 1, 1], [], []>} : vector<16x16xbf16>, vector<16x128xbf16>, vector<16x128xf32> -> vector<16x128xf32>
    %206 = arith.addf %200, %205 : vector<16x128xf32>
    %207 = vector.extract_strided_slice %193 {offsets = [2, 0, 0], sizes = [1, 16, 16], strides = [1, 1, 1]} : vector<8x16x16xf32> to vector<1x16x16xf32>
    %208 = vector.shape_cast %207 : vector<1x16x16xf32> to vector<16x16xf32>
    %c32_63 = arith.constant 32 : index
    %c0_64 = arith.constant 0 : index
    %209 = vector.load %arg12[%c32_63, %c0_64] : memref<128x128xbf16, #tpu.memory_space<vmem>>, vector<16x128xbf16>
    %210 = arith.truncf %208 : vector<16x16xf32> to vector<16x16xbf16>
    %cst_65 = arith.constant dense<0.000000e+00> : vector<16x128xf32>
    %211 = tpu.matmul %210, %209, %cst_65 {dimension_numbers = #tpu.dot_dimension_numbers<[1], [0], [0], [1], [0, 0, 1, 1], [], []>} : vector<16x16xbf16>, vector<16x128xbf16>, vector<16x128xf32> -> vector<16x128xf32>
    %212 = arith.addf %206, %211 : vector<16x128xf32>
    %213 = vector.extract_strided_slice %193 {offsets = [3, 0, 0], sizes = [1, 16, 16], strides = [1, 1, 1]} : vector<8x16x16xf32> to vector<1x16x16xf32>
    %214 = vector.shape_cast %213 : vector<1x16x16xf32> to vector<16x16xf32>
    %c48 = arith.constant 48 : index
    %c0_66 = arith.constant 0 : index
    %215 = vector.load %arg12[%c48, %c0_66] : memref<128x128xbf16, #tpu.memory_space<vmem>>, vector<16x128xbf16>
    %216 = arith.truncf %214 : vector<16x16xf32> to vector<16x16xbf16>
    %cst_67 = arith.constant dense<0.000000e+00> : vector<16x128xf32>
    %217 = tpu.matmul %216, %215, %cst_67 {dimension_numbers = #tpu.dot_dimension_numbers<[1], [0], [0], [1], [0, 0, 1, 1], [], []>} : vector<16x16xbf16>, vector<16x128xbf16>, vector<16x128xf32> -> vector<16x128xf32>
    %218 = arith.addf %212, %217 : vector<16x128xf32>
    %219 = vector.extract_strided_slice %193 {offsets = [4, 0, 0], sizes = [1, 16, 16], strides = [1, 1, 1]} : vector<8x16x16xf32> to vector<1x16x16xf32>
    %220 = vector.shape_cast %219 : vector<1x16x16xf32> to vector<16x16xf32>
    %c64 = arith.constant 64 : index
    %c0_68 = arith.constant 0 : index
    %221 = vector.load %arg12[%c64, %c0_68] : memref<128x128xbf16, #tpu.memory_space<vmem>>, vector<16x128xbf16>
    %222 = arith.truncf %220 : vector<16x16xf32> to vector<16x16xbf16>
    %cst_69 = arith.constant dense<0.000000e+00> : vector<16x128xf32>
    %223 = tpu.matmul %222, %221, %cst_69 {dimension_numbers = #tpu.dot_dimension_numbers<[1], [0], [0], [1], [0, 0, 1, 1], [], []>} : vector<16x16xbf16>, vector<16x128xbf16>, vector<16x128xf32> -> vector<16x128xf32>
    %224 = arith.addf %218, %223 : vector<16x128xf32>
    %225 = vector.extract_strided_slice %193 {offsets = [5, 0, 0], sizes = [1, 16, 16], strides = [1, 1, 1]} : vector<8x16x16xf32> to vector<1x16x16xf32>
    %226 = vector.shape_cast %225 : vector<1x16x16xf32> to vector<16x16xf32>
    %c80 = arith.constant 80 : index
    %c0_70 = arith.constant 0 : index
    %227 = vector.load %arg12[%c80, %c0_70] : memref<128x128xbf16, #tpu.memory_space<vmem>>, vector<16x128xbf16>
    %228 = arith.truncf %226 : vector<16x16xf32> to vector<16x16xbf16>
    %cst_71 = arith.constant dense<0.000000e+00> : vector<16x128xf32>
    %229 = tpu.matmul %228, %227, %cst_71 {dimension_numbers = #tpu.dot_dimension_numbers<[1], [0], [0], [1], [0, 0, 1, 1], [], []>} : vector<16x16xbf16>, vector<16x128xbf16>, vector<16x128xf32> -> vector<16x128xf32>
    %230 = arith.addf %224, %229 : vector<16x128xf32>
    %231 = vector.extract_strided_slice %193 {offsets = [6, 0, 0], sizes = [1, 16, 16], strides = [1, 1, 1]} : vector<8x16x16xf32> to vector<1x16x16xf32>
    %232 = vector.shape_cast %231 : vector<1x16x16xf32> to vector<16x16xf32>
    %c96 = arith.constant 96 : index
    %c0_72 = arith.constant 0 : index
    %233 = vector.load %arg12[%c96, %c0_72] : memref<128x128xbf16, #tpu.memory_space<vmem>>, vector<16x128xbf16>
    %234 = arith.truncf %232 : vector<16x16xf32> to vector<16x16xbf16>
    %cst_73 = arith.constant dense<0.000000e+00> : vector<16x128xf32>
    %235 = tpu.matmul %234, %233, %cst_73 {dimension_numbers = #tpu.dot_dimension_numbers<[1], [0], [0], [1], [0, 0, 1, 1], [], []>} : vector<16x16xbf16>, vector<16x128xbf16>, vector<16x128xf32> -> vector<16x128xf32>
    %236 = arith.addf %230, %235 : vector<16x128xf32>
    %237 = vector.extract_strided_slice %193 {offsets = [7, 0, 0], sizes = [1, 16, 16], strides = [1, 1, 1]} : vector<8x16x16xf32> to vector<1x16x16xf32>
    %238 = vector.shape_cast %237 : vector<1x16x16xf32> to vector<16x16xf32>
    %c112 = arith.constant 112 : index
    %c0_74 = arith.constant 0 : index
    %239 = vector.load %arg12[%c112, %c0_74] : memref<128x128xbf16, #tpu.memory_space<vmem>>, vector<16x128xbf16>
    %240 = arith.truncf %238 : vector<16x16xf32> to vector<16x16xbf16>
    %cst_75 = arith.constant dense<0.000000e+00> : vector<16x128xf32>
    %241 = tpu.matmul %240, %239, %cst_75 {dimension_numbers = #tpu.dot_dimension_numbers<[1], [0], [0], [1], [0, 0, 1, 1], [], []>} : vector<16x16xbf16>, vector<16x128xbf16>, vector<16x128xf32> -> vector<16x128xf32>
    %242 = arith.addf %236, %241 : vector<16x128xf32>
    %243 = arith.addf %108, %242 : vector<16x128xf32>
    %cst_76 = arith.constant dense<0.000000e+00> : vector<16xf32>
    %244 = vector.multi_reduction <add>, %243, %cst_76 [1] : vector<16x128xf32> to vector<16xf32>
    %245 = vector.shape_cast %244 : vector<16xf32> to vector<16x1xf32>
    %cst_77 = arith.constant 1.280000e+02 : f32
    %246 = vector.broadcast %cst_77 : f32 to vector<16x1xf32>
    %247 = arith.divf %245, %246 : vector<16x1xf32>
    %248 = vector.broadcast %247 : vector<16x1xf32> to vector<16x128xf32>
    %249 = arith.subf %243, %248 : vector<16x128xf32>
    %250 = arith.mulf %249, %249 : vector<16x128xf32>
    %cst_78 = arith.constant dense<0.000000e+00> : vector<16xf32>
    %251 = vector.multi_reduction <add>, %250, %cst_78 [1] : vector<16x128xf32> to vector<16xf32>
    %252 = vector.shape_cast %251 : vector<16xf32> to vector<16x1xf32>
    %cst_79 = arith.constant 1.280000e+02 : f32
    %253 = vector.broadcast %cst_79 : f32 to vector<16x1xf32>
    %254 = arith.divf %252, %253 : vector<16x1xf32>
    %255 = vector.broadcast %247 : vector<16x1xf32> to vector<16x128xf32>
    %256 = arith.subf %243, %255 : vector<16x128xf32>
    %cst_80 = arith.constant 9.99999974E-6 : f32
    %257 = vector.broadcast %cst_80 : f32 to vector<16x1xf32>
    %258 = arith.addf %254, %257 : vector<16x1xf32>
    %259 = math.rsqrt %258 : vector<16x1xf32>
    %260 = vector.broadcast %259 : vector<16x1xf32> to vector<16x128xf32>
    %261 = arith.mulf %256, %260 : vector<16x128xf32>
    %262 = vector.broadcast %3 : vector<1x128xf32> to vector<16x128xf32>
    %263 = arith.mulf %261, %262 : vector<16x128xf32>
    %264 = vector.broadcast %4 : vector<1x128xf32> to vector<16x128xf32>
    %265 = arith.addf %263, %264 : vector<16x128xf32>
    %c0_81 = arith.constant 0 : index
    %c0_82 = arith.constant 0 : index
    %266 = vector.load %arg13[%c0_81, %c0_82] : memref<128x384xbf16, #tpu.memory_space<vmem>>, vector<128x128xbf16>
    %267 = arith.truncf %265 : vector<16x128xf32> to vector<16x128xbf16>
    %cst_83 = arith.constant dense<0.000000e+00> : vector<16x128xf32>
    %268 = tpu.matmul %267, %266, %cst_83 {dimension_numbers = #tpu.dot_dimension_numbers<[1], [0], [0], [1], [0, 0, 1, 1], [], []>} : vector<16x128xbf16>, vector<128x128xbf16>, vector<16x128xf32> -> vector<16x128xf32>
    %c0_84 = arith.constant 0 : index
    %c0_85 = arith.constant 0 : index
    %269 = vector.load %arg21[%c0_84, %c0_85] : memref<1x384xf32, #tpu.memory_space<vmem>>, vector<1x128xf32>
    %270 = vector.broadcast %269 : vector<1x128xf32> to vector<16x128xf32>
    %271 = arith.addf %268, %270 : vector<16x128xf32>
    %c0_86 = arith.constant 0 : index
    %c128 = arith.constant 128 : index
    %272 = vector.load %arg13[%c0_86, %c128] : memref<128x384xbf16, #tpu.memory_space<vmem>>, vector<128x256xbf16>
    %cst_87 = arith.constant dense<0.000000e+00> : vector<16x256xf32>
    %273 = tpu.matmul %16, %272, %cst_87 {dimension_numbers = #tpu.dot_dimension_numbers<[1], [0], [0], [1], [0, 0, 1, 1], [], []>} : vector<16x128xbf16>, vector<128x256xbf16>, vector<16x256xf32> -> vector<16x256xf32>
    %c0_88 = arith.constant 0 : index
    %c128_89 = arith.constant 128 : index
    %274 = vector.load %arg21[%c0_88, %c128_89] : memref<1x384xf32, #tpu.memory_space<vmem>>, vector<1x256xf32>
    %275 = vector.broadcast %274 : vector<1x256xf32> to vector<16x256xf32>
    %276 = arith.addf %273, %275 : vector<16x256xf32>
    %277 = vector.extract_strided_slice %276 {offsets = [0, 0], sizes = [16, 128], strides = [1, 1]} : vector<16x256xf32> to vector<16x128xf32>
    %278 = vector.extract_strided_slice %276 {offsets = [0, 128], sizes = [16, 128], strides = [1, 1]} : vector<16x256xf32> to vector<16x128xf32>
    %279 = vector.extract_strided_slice %271 {offsets = [0, 0], sizes = [16, 16], strides = [1, 1]} : vector<16x128xf32> to vector<16x16xf32>
    %280 = vector.extract_strided_slice %271 {offsets = [0, 16], sizes = [16, 16], strides = [1, 1]} : vector<16x128xf32> to vector<16x16xf32>
    %281 = vector.extract_strided_slice %271 {offsets = [0, 32], sizes = [16, 16], strides = [1, 1]} : vector<16x128xf32> to vector<16x16xf32>
    %282 = vector.extract_strided_slice %271 {offsets = [0, 48], sizes = [16, 16], strides = [1, 1]} : vector<16x128xf32> to vector<16x16xf32>
    %283 = vector.extract_strided_slice %271 {offsets = [0, 64], sizes = [16, 16], strides = [1, 1]} : vector<16x128xf32> to vector<16x16xf32>
    %284 = vector.extract_strided_slice %271 {offsets = [0, 80], sizes = [16, 16], strides = [1, 1]} : vector<16x128xf32> to vector<16x16xf32>
    %285 = vector.extract_strided_slice %271 {offsets = [0, 96], sizes = [16, 16], strides = [1, 1]} : vector<16x128xf32> to vector<16x16xf32>
    %286 = vector.extract_strided_slice %271 {offsets = [0, 112], sizes = [16, 16], strides = [1, 1]} : vector<16x128xf32> to vector<16x16xf32>
    %287 = vector.shape_cast %279 : vector<16x16xf32> to vector<1x16x16xf32>
    %288 = vector.shape_cast %280 : vector<16x16xf32> to vector<1x16x16xf32>
    %289 = vector.shape_cast %281 : vector<16x16xf32> to vector<1x16x16xf32>
    %290 = vector.shape_cast %282 : vector<16x16xf32> to vector<1x16x16xf32>
    %291 = vector.shape_cast %283 : vector<16x16xf32> to vector<1x16x16xf32>
    %292 = vector.shape_cast %284 : vector<16x16xf32> to vector<1x16x16xf32>
    %293 = vector.shape_cast %285 : vector<16x16xf32> to vector<1x16x16xf32>
    %294 = vector.shape_cast %286 : vector<16x16xf32> to vector<1x16x16xf32>
    %295 = tpu.concatenate %287, %288, %289, %290, %291, %292, %293, %294 in 0 : vector<1x16x16xf32>, vector<1x16x16xf32>, vector<1x16x16xf32>, vector<1x16x16xf32>, vector<1x16x16xf32>, vector<1x16x16xf32>, vector<1x16x16xf32>, vector<1x16x16xf32> -> vector<8x16x16xf32>
    %296 = vector.shape_cast %295 : vector<8x16x16xf32> to vector<16x8x16xf32>
    %297 = arith.truncf %296 : vector<16x8x16xf32> to vector<16x8x16xbf16>
    %298 = vector.extract_strided_slice %277 {offsets = [0, 0], sizes = [16, 16], strides = [1, 1]} : vector<16x128xf32> to vector<16x16xf32>
    %299 = vector.extract_strided_slice %277 {offsets = [0, 16], sizes = [16, 16], strides = [1, 1]} : vector<16x128xf32> to vector<16x16xf32>
    %300 = vector.extract_strided_slice %277 {offsets = [0, 32], sizes = [16, 16], strides = [1, 1]} : vector<16x128xf32> to vector<16x16xf32>
    %301 = vector.extract_strided_slice %277 {offsets = [0, 48], sizes = [16, 16], strides = [1, 1]} : vector<16x128xf32> to vector<16x16xf32>
    %302 = vector.extract_strided_slice %277 {offsets = [0, 64], sizes = [16, 16], strides = [1, 1]} : vector<16x128xf32> to vector<16x16xf32>
    %303 = vector.extract_strided_slice %277 {offsets = [0, 80], sizes = [16, 16], strides = [1, 1]} : vector<16x128xf32> to vector<16x16xf32>
    %304 = vector.extract_strided_slice %277 {offsets = [0, 96], sizes = [16, 16], strides = [1, 1]} : vector<16x128xf32> to vector<16x16xf32>
    %305 = vector.extract_strided_slice %277 {offsets = [0, 112], sizes = [16, 16], strides = [1, 1]} : vector<16x128xf32> to vector<16x16xf32>
    %306 = vector.shape_cast %298 : vector<16x16xf32> to vector<1x16x16xf32>
    %307 = vector.shape_cast %299 : vector<16x16xf32> to vector<1x16x16xf32>
    %308 = vector.shape_cast %300 : vector<16x16xf32> to vector<1x16x16xf32>
    %309 = vector.shape_cast %301 : vector<16x16xf32> to vector<1x16x16xf32>
    %310 = vector.shape_cast %302 : vector<16x16xf32> to vector<1x16x16xf32>
    %311 = vector.shape_cast %303 : vector<16x16xf32> to vector<1x16x16xf32>
    %312 = vector.shape_cast %304 : vector<16x16xf32> to vector<1x16x16xf32>
    %313 = vector.shape_cast %305 : vector<16x16xf32> to vector<1x16x16xf32>
    %314 = tpu.concatenate %306, %307, %308, %309, %310, %311, %312, %313 in 0 : vector<1x16x16xf32>, vector<1x16x16xf32>, vector<1x16x16xf32>, vector<1x16x16xf32>, vector<1x16x16xf32>, vector<1x16x16xf32>, vector<1x16x16xf32>, vector<1x16x16xf32> -> vector<8x16x16xf32>
    %315 = vector.shape_cast %314 : vector<8x16x16xf32> to vector<16x8x16xf32>
    %316 = arith.truncf %315 : vector<16x8x16xf32> to vector<16x8x16xbf16>
    %317 = vector.extract_strided_slice %278 {offsets = [0, 0], sizes = [16, 16], strides = [1, 1]} : vector<16x128xf32> to vector<16x16xf32>
    %318 = vector.extract_strided_slice %278 {offsets = [0, 16], sizes = [16, 16], strides = [1, 1]} : vector<16x128xf32> to vector<16x16xf32>
    %319 = vector.extract_strided_slice %278 {offsets = [0, 32], sizes = [16, 16], strides = [1, 1]} : vector<16x128xf32> to vector<16x16xf32>
    %320 = vector.extract_strided_slice %278 {offsets = [0, 48], sizes = [16, 16], strides = [1, 1]} : vector<16x128xf32> to vector<16x16xf32>
    %321 = vector.extract_strided_slice %278 {offsets = [0, 64], sizes = [16, 16], strides = [1, 1]} : vector<16x128xf32> to vector<16x16xf32>
    %322 = vector.extract_strided_slice %278 {offsets = [0, 80], sizes = [16, 16], strides = [1, 1]} : vector<16x128xf32> to vector<16x16xf32>
    %323 = vector.extract_strided_slice %278 {offsets = [0, 96], sizes = [16, 16], strides = [1, 1]} : vector<16x128xf32> to vector<16x16xf32>
    %324 = vector.extract_strided_slice %278 {offsets = [0, 112], sizes = [16, 16], strides = [1, 1]} : vector<16x128xf32> to vector<16x16xf32>
    %325 = vector.shape_cast %317 : vector<16x16xf32> to vector<1x16x16xf32>
    %326 = vector.shape_cast %318 : vector<16x16xf32> to vector<1x16x16xf32>
    %327 = vector.shape_cast %319 : vector<16x16xf32> to vector<1x16x16xf32>
    %328 = vector.shape_cast %320 : vector<16x16xf32> to vector<1x16x16xf32>
    %329 = vector.shape_cast %321 : vector<16x16xf32> to vector<1x16x16xf32>
    %330 = vector.shape_cast %322 : vector<16x16xf32> to vector<1x16x16xf32>
    %331 = vector.shape_cast %323 : vector<16x16xf32> to vector<1x16x16xf32>
    %332 = vector.shape_cast %324 : vector<16x16xf32> to vector<1x16x16xf32>
    %333 = tpu.concatenate %325, %326, %327, %328, %329, %330, %331, %332 in 0 : vector<1x16x16xf32>, vector<1x16x16xf32>, vector<1x16x16xf32>, vector<1x16x16xf32>, vector<1x16x16xf32>, vector<1x16x16xf32>, vector<1x16x16xf32>, vector<1x16x16xf32> -> vector<8x16x16xf32>
    %334 = vector.shape_cast %333 : vector<8x16x16xf32> to vector<16x8x16xf32>
    %335 = arith.truncf %334 : vector<16x8x16xf32> to vector<16x8x16xbf16>
    "tpu.trace_start"() <{level = 10 : i32, message = "bqd,bkd->bqk"}> : () -> ()
    %cst_90 = arith.constant dense<0.000000e+00> : vector<16x8x8xf32>
    %336 = tpu.matmul %297, %316, %cst_90 {dimension_numbers = #tpu.dot_dimension_numbers<[2], [2], [1], [1], [0, 0, 0, 1, 1, 1], [0], [0]>} : vector<16x8x16xbf16>, vector<16x8x16xbf16>, vector<16x8x8xf32> -> vector<16x8x8xf32>
    "tpu.trace_stop"() : () -> ()
    %337 = vector.shape_cast %336 : vector<16x8x8xf32> to vector<8x2x8x8xf32>
    %338 = vector.shape_cast %21 : vector<2x1x8xf32> to vector<1x2x1x8xf32>
    %339 = vector.broadcast %338 : vector<1x2x1x8xf32> to vector<8x2x8x8xf32>
    %340 = arith.addf %337, %339 : vector<8x2x8x8xf32>
    %cst_91 = arith.constant dense<0xFF800000> : vector<8x2x8xf32>
    %341 = vector.multi_reduction <maximumf>, %340, %cst_91 [3] : vector<8x2x8x8xf32> to vector<8x2x8xf32>
    %342 = vector.shape_cast %341 : vector<8x2x8xf32> to vector<8x2x8x1xf32>
    %343 = vector.broadcast %342 : vector<8x2x8x1xf32> to vector<8x2x8x8xf32>
    %344 = arith.subf %340, %343 : vector<8x2x8x8xf32>
    %345 = math.exp %344 : vector<8x2x8x8xf32>
    %cst_92 = arith.constant dense<0.000000e+00> : vector<8x2x8xf32>
    %346 = vector.multi_reduction <add>, %345, %cst_92 [3] : vector<8x2x8x8xf32> to vector<8x2x8xf32>
    %347 = vector.shape_cast %346 : vector<8x2x8xf32> to vector<8x2x8x1xf32>
    %348 = tpu.reciprocal %347 {approx = true} : vector<8x2x8x1xf32> -> vector<8x2x8x1xf32>
    %349 = vector.broadcast %348 : vector<8x2x8x1xf32> to vector<8x2x8x8xf32>
    %350 = arith.mulf %345, %349 : vector<8x2x8x8xf32>
    %351 = vector.shape_cast %350 : vector<8x2x8x8xf32> to vector<16x8x8xf32>
    %352 = arith.truncf %351 : vector<16x8x8xf32> to vector<16x8x8xbf16>
    "tpu.trace_start"() <{level = 10 : i32, message = "bqk,bkd->bqd"}> : () -> ()
    %cst_93 = arith.constant dense<0.000000e+00> : vector<16x8x16xf32>
    %353 = tpu.matmul %352, %335, %cst_93 {dimension_numbers = #tpu.dot_dimension_numbers<[2], [1], [1], [2], [0, 0, 0, 1, 1, 2], [0], [0]>} : vector<16x8x8xbf16>, vector<16x8x16xbf16>, vector<16x8x16xf32> -> vector<16x8x16xf32>
    "tpu.trace_stop"() : () -> ()
    %354 = vector.shape_cast %353 : vector<16x8x16xf32> to vector<8x16x16xf32>
    %355 = vector.extract_strided_slice %354 {offsets = [0, 0, 0], sizes = [1, 16, 16], strides = [1, 1, 1]} : vector<8x16x16xf32> to vector<1x16x16xf32>
    %356 = vector.shape_cast %355 : vector<1x16x16xf32> to vector<16x16xf32>
    %c0_94 = arith.constant 0 : index
    %c0_95 = arith.constant 0 : index
    %357 = vector.load %arg14[%c0_94, %c0_95] : memref<128x128xbf16, #tpu.memory_space<vmem>>, vector<16x128xbf16>
    %358 = arith.truncf %356 : vector<16x16xf32> to vector<16x16xbf16>
    %cst_96 = arith.constant dense<0.000000e+00> : vector<16x128xf32>
    %359 = tpu.matmul %358, %357, %cst_96 {dimension_numbers = #tpu.dot_dimension_numbers<[1], [0], [0], [1], [0, 0, 1, 1], [], []>} : vector<16x16xbf16>, vector<16x128xbf16>, vector<16x128xf32> -> vector<16x128xf32>
    %360 = vector.broadcast %11 : vector<1x128xf32> to vector<16x128xf32>
    %361 = arith.addf %360, %359 : vector<16x128xf32>
    %362 = vector.extract_strided_slice %354 {offsets = [1, 0, 0], sizes = [1, 16, 16], strides = [1, 1, 1]} : vector<8x16x16xf32> to vector<1x16x16xf32>
    %363 = vector.shape_cast %362 : vector<1x16x16xf32> to vector<16x16xf32>
    %c16_97 = arith.constant 16 : index
    %c0_98 = arith.constant 0 : index
    %364 = vector.load %arg14[%c16_97, %c0_98] : memref<128x128xbf16, #tpu.memory_space<vmem>>, vector<16x128xbf16>
    %365 = arith.truncf %363 : vector<16x16xf32> to vector<16x16xbf16>
    %cst_99 = arith.constant dense<0.000000e+00> : vector<16x128xf32>
    %366 = tpu.matmul %365, %364, %cst_99 {dimension_numbers = #tpu.dot_dimension_numbers<[1], [0], [0], [1], [0, 0, 1, 1], [], []>} : vector<16x16xbf16>, vector<16x128xbf16>, vector<16x128xf32> -> vector<16x128xf32>
    %367 = arith.addf %361, %366 : vector<16x128xf32>
    %368 = vector.extract_strided_slice %354 {offsets = [2, 0, 0], sizes = [1, 16, 16], strides = [1, 1, 1]} : vector<8x16x16xf32> to vector<1x16x16xf32>
    %369 = vector.shape_cast %368 : vector<1x16x16xf32> to vector<16x16xf32>
    %c32_100 = arith.constant 32 : index
    %c0_101 = arith.constant 0 : index
    %370 = vector.load %arg14[%c32_100, %c0_101] : memref<128x128xbf16, #tpu.memory_space<vmem>>, vector<16x128xbf16>
    %371 = arith.truncf %369 : vector<16x16xf32> to vector<16x16xbf16>
    %cst_102 = arith.constant dense<0.000000e+00> : vector<16x128xf32>
    %372 = tpu.matmul %371, %370, %cst_102 {dimension_numbers = #tpu.dot_dimension_numbers<[1], [0], [0], [1], [0, 0, 1, 1], [], []>} : vector<16x16xbf16>, vector<16x128xbf16>, vector<16x128xf32> -> vector<16x128xf32>
    %373 = arith.addf %367, %372 : vector<16x128xf32>
    %374 = vector.extract_strided_slice %354 {offsets = [3, 0, 0], sizes = [1, 16, 16], strides = [1, 1, 1]} : vector<8x16x16xf32> to vector<1x16x16xf32>
    %375 = vector.shape_cast %374 : vector<1x16x16xf32> to vector<16x16xf32>
    %c48_103 = arith.constant 48 : index
    %c0_104 = arith.constant 0 : index
    %376 = vector.load %arg14[%c48_103, %c0_104] : memref<128x128xbf16, #tpu.memory_space<vmem>>, vector<16x128xbf16>
    %377 = arith.truncf %375 : vector<16x16xf32> to vector<16x16xbf16>
    %cst_105 = arith.constant dense<0.000000e+00> : vector<16x128xf32>
    %378 = tpu.matmul %377, %376, %cst_105 {dimension_numbers = #tpu.dot_dimension_numbers<[1], [0], [0], [1], [0, 0, 1, 1], [], []>} : vector<16x16xbf16>, vector<16x128xbf16>, vector<16x128xf32> -> vector<16x128xf32>
    %379 = arith.addf %373, %378 : vector<16x128xf32>
    %380 = vector.extract_strided_slice %354 {offsets = [4, 0, 0], sizes = [1, 16, 16], strides = [1, 1, 1]} : vector<8x16x16xf32> to vector<1x16x16xf32>
    %381 = vector.shape_cast %380 : vector<1x16x16xf32> to vector<16x16xf32>
    %c64_106 = arith.constant 64 : index
    %c0_107 = arith.constant 0 : index
    %382 = vector.load %arg14[%c64_106, %c0_107] : memref<128x128xbf16, #tpu.memory_space<vmem>>, vector<16x128xbf16>
    %383 = arith.truncf %381 : vector<16x16xf32> to vector<16x16xbf16>
    %cst_108 = arith.constant dense<0.000000e+00> : vector<16x128xf32>
    %384 = tpu.matmul %383, %382, %cst_108 {dimension_numbers = #tpu.dot_dimension_numbers<[1], [0], [0], [1], [0, 0, 1, 1], [], []>} : vector<16x16xbf16>, vector<16x128xbf16>, vector<16x128xf32> -> vector<16x128xf32>
    %385 = arith.addf %379, %384 : vector<16x128xf32>
    %386 = vector.extract_strided_slice %354 {offsets = [5, 0, 0], sizes = [1, 16, 16], strides = [1, 1, 1]} : vector<8x16x16xf32> to vector<1x16x16xf32>
    %387 = vector.shape_cast %386 : vector<1x16x16xf32> to vector<16x16xf32>
    %c80_109 = arith.constant 80 : index
    %c0_110 = arith.constant 0 : index
    %388 = vector.load %arg14[%c80_109, %c0_110] : memref<128x128xbf16, #tpu.memory_space<vmem>>, vector<16x128xbf16>
    %389 = arith.truncf %387 : vector<16x16xf32> to vector<16x16xbf16>
    %cst_111 = arith.constant dense<0.000000e+00> : vector<16x128xf32>
    %390 = tpu.matmul %389, %388, %cst_111 {dimension_numbers = #tpu.dot_dimension_numbers<[1], [0], [0], [1], [0, 0, 1, 1], [], []>} : vector<16x16xbf16>, vector<16x128xbf16>, vector<16x128xf32> -> vector<16x128xf32>
    %391 = arith.addf %385, %390 : vector<16x128xf32>
    %392 = vector.extract_strided_slice %354 {offsets = [6, 0, 0], sizes = [1, 16, 16], strides = [1, 1, 1]} : vector<8x16x16xf32> to vector<1x16x16xf32>
    %393 = vector.shape_cast %392 : vector<1x16x16xf32> to vector<16x16xf32>
    %c96_112 = arith.constant 96 : index
    %c0_113 = arith.constant 0 : index
    %394 = vector.load %arg14[%c96_112, %c0_113] : memref<128x128xbf16, #tpu.memory_space<vmem>>, vector<16x128xbf16>
    %395 = arith.truncf %393 : vector<16x16xf32> to vector<16x16xbf16>
    %cst_114 = arith.constant dense<0.000000e+00> : vector<16x128xf32>
    %396 = tpu.matmul %395, %394, %cst_114 {dimension_numbers = #tpu.dot_dimension_numbers<[1], [0], [0], [1], [0, 0, 1, 1], [], []>} : vector<16x16xbf16>, vector<16x128xbf16>, vector<16x128xf32> -> vector<16x128xf32>
    %397 = arith.addf %391, %396 : vector<16x128xf32>
    %398 = vector.extract_strided_slice %354 {offsets = [7, 0, 0], sizes = [1, 16, 16], strides = [1, 1, 1]} : vector<8x16x16xf32> to vector<1x16x16xf32>
    %399 = vector.shape_cast %398 : vector<1x16x16xf32> to vector<16x16xf32>
    %c112_115 = arith.constant 112 : index
    %c0_116 = arith.constant 0 : index
    %400 = vector.load %arg14[%c112_115, %c0_116] : memref<128x128xbf16, #tpu.memory_space<vmem>>, vector<16x128xbf16>
    %401 = arith.truncf %399 : vector<16x16xf32> to vector<16x16xbf16>
    %cst_117 = arith.constant dense<0.000000e+00> : vector<16x128xf32>
    %402 = tpu.matmul %401, %400, %cst_117 {dimension_numbers = #tpu.dot_dimension_numbers<[1], [0], [0], [1], [0, 0, 1, 1], [], []>} : vector<16x16xbf16>, vector<16x128xbf16>, vector<16x128xf32> -> vector<16x128xf32>
    %403 = arith.addf %397, %402 : vector<16x128xf32>
    %404 = arith.addf %265, %403 : vector<16x128xf32>
    %cst_118 = arith.constant dense<0.000000e+00> : vector<16xf32>
    %405 = vector.multi_reduction <add>, %404, %cst_118 [1] : vector<16x128xf32> to vector<16xf32>
    %406 = vector.shape_cast %405 : vector<16xf32> to vector<16x1xf32>
    %cst_119 = arith.constant 1.280000e+02 : f32
    %407 = vector.broadcast %cst_119 : f32 to vector<16x1xf32>
    %408 = arith.divf %406, %407 : vector<16x1xf32>
    %409 = vector.broadcast %408 : vector<16x1xf32> to vector<16x128xf32>
    %410 = arith.subf %404, %409 : vector<16x128xf32>
    %411 = arith.mulf %410, %410 : vector<16x128xf32>
    %cst_120 = arith.constant dense<0.000000e+00> : vector<16xf32>
    %412 = vector.multi_reduction <add>, %411, %cst_120 [1] : vector<16x128xf32> to vector<16xf32>
    %413 = vector.shape_cast %412 : vector<16xf32> to vector<16x1xf32>
    %cst_121 = arith.constant 1.280000e+02 : f32
    %414 = vector.broadcast %cst_121 : f32 to vector<16x1xf32>
    %415 = arith.divf %413, %414 : vector<16x1xf32>
    %416 = vector.broadcast %408 : vector<16x1xf32> to vector<16x128xf32>
    %417 = arith.subf %404, %416 : vector<16x128xf32>
    %cst_122 = arith.constant 9.99999974E-6 : f32
    %418 = vector.broadcast %cst_122 : f32 to vector<16x1xf32>
    %419 = arith.addf %415, %418 : vector<16x1xf32>
    %420 = math.rsqrt %419 : vector<16x1xf32>
    %421 = vector.broadcast %420 : vector<16x1xf32> to vector<16x128xf32>
    %422 = arith.mulf %417, %421 : vector<16x128xf32>
    %423 = vector.broadcast %5 : vector<1x128xf32> to vector<16x128xf32>
    %424 = arith.mulf %422, %423 : vector<16x128xf32>
    %425 = vector.broadcast %6 : vector<1x128xf32> to vector<16x128xf32>
    %426 = arith.addf %424, %425 : vector<16x128xf32>
    %c0_123 = arith.constant 0 : index
    %c0_124 = arith.constant 0 : index
    %427 = vector.load %arg15[%c0_123, %c0_124] : memref<128x256xbf16, #tpu.memory_space<vmem>>, vector<128x256xbf16>
    %428 = arith.truncf %426 : vector<16x128xf32> to vector<16x128xbf16>
    %cst_125 = arith.constant dense<0.000000e+00> : vector<16x256xf32>
    %429 = tpu.matmul %428, %427, %cst_125 {dimension_numbers = #tpu.dot_dimension_numbers<[1], [0], [0], [1], [0, 0, 1, 1], [], []>} : vector<16x128xbf16>, vector<128x256xbf16>, vector<16x256xf32> -> vector<16x256xf32>
    %c0_126 = arith.constant 0 : index
    %c0_127 = arith.constant 0 : index
    %430 = vector.load %arg22[%c0_126, %c0_127] : memref<1x256xf32, #tpu.memory_space<vmem>>, vector<1x256xf32>
    %431 = vector.broadcast %430 : vector<1x256xf32> to vector<16x256xf32>
    %432 = arith.addf %429, %431 : vector<16x256xf32>
    %cst_128 = arith.constant 0.000000e+00 : f32
    %433 = vector.broadcast %cst_128 : f32 to vector<16x256xf32>
    %434 = arith.maximumf %432, %433 : vector<16x256xf32>
    %c0_129 = arith.constant 0 : index
    %c0_130 = arith.constant 0 : index
    %435 = vector.load %arg16[%c0_129, %c0_130] : memref<256x128xbf16, #tpu.memory_space<vmem>>, vector<256x128xbf16>
    %436 = arith.truncf %434 : vector<16x256xf32> to vector<16x256xbf16>
    %cst_131 = arith.constant dense<0.000000e+00> : vector<16x128xf32>
    %437 = tpu.matmul %436, %435, %cst_131 {dimension_numbers = #tpu.dot_dimension_numbers<[1], [0], [0], [1], [0, 0, 1, 1], [], []>} : vector<16x256xbf16>, vector<256x128xbf16>, vector<16x128xf32> -> vector<16x128xf32>
    %438 = vector.broadcast %12 : vector<1x128xf32> to vector<16x128xf32>
    %439 = arith.addf %437, %438 : vector<16x128xf32>
    %440 = arith.addf %426, %439 : vector<16x128xf32>
    %cst_132 = arith.constant dense<0.000000e+00> : vector<16xf32>
    %441 = vector.multi_reduction <add>, %440, %cst_132 [1] : vector<16x128xf32> to vector<16xf32>
    %442 = vector.shape_cast %441 : vector<16xf32> to vector<16x1xf32>
    %cst_133 = arith.constant 1.280000e+02 : f32
    %443 = vector.broadcast %cst_133 : f32 to vector<16x1xf32>
    %444 = arith.divf %442, %443 : vector<16x1xf32>
    %445 = vector.broadcast %444 : vector<16x1xf32> to vector<16x128xf32>
    %446 = arith.subf %440, %445 : vector<16x128xf32>
    %447 = arith.mulf %446, %446 : vector<16x128xf32>
    %cst_134 = arith.constant dense<0.000000e+00> : vector<16xf32>
    %448 = vector.multi_reduction <add>, %447, %cst_134 [1] : vector<16x128xf32> to vector<16xf32>
    %449 = vector.shape_cast %448 : vector<16xf32> to vector<16x1xf32>
    %cst_135 = arith.constant 1.280000e+02 : f32
    %450 = vector.broadcast %cst_135 : f32 to vector<16x1xf32>
    %451 = arith.divf %449, %450 : vector<16x1xf32>
    %452 = vector.broadcast %444 : vector<16x1xf32> to vector<16x128xf32>
    %453 = arith.subf %440, %452 : vector<16x128xf32>
    %cst_136 = arith.constant 9.99999974E-6 : f32
    %454 = vector.broadcast %cst_136 : f32 to vector<16x1xf32>
    %455 = arith.addf %451, %454 : vector<16x1xf32>
    %456 = math.rsqrt %455 : vector<16x1xf32>
    %457 = vector.broadcast %456 : vector<16x1xf32> to vector<16x128xf32>
    %458 = arith.mulf %453, %457 : vector<16x128xf32>
    %459 = vector.broadcast %7 : vector<1x128xf32> to vector<16x128xf32>
    %460 = arith.mulf %458, %459 : vector<16x128xf32>
    %461 = vector.broadcast %8 : vector<1x128xf32> to vector<16x128xf32>
    %462 = arith.addf %460, %461 : vector<16x128xf32>
    %463 = vector.shape_cast %462 : vector<16x128xf32> to vector<2x8x128xf32>
    %464 = arith.truncf %463 : vector<2x8x128xf32> to vector<2x8x128xbf16>
    %c0_137 = arith.constant 0 : index
    %c0_138 = arith.constant 0 : index
    %c0_139 = arith.constant 0 : index
    %465 = vector.load %arg24[%c0_137, %c0_138, %c0_139] : memref<2x8x128xbf16, #tpu.memory_space<vmem>>, vector<2x8x128xbf16>
    tpu.vector_store %arg24[%c0_137, %c0_138, %c0_139], %464 {strides = array<i32>} : memref<2x8x128xbf16, #tpu.memory_space<vmem>>, vector<2x8x128xbf16>,
    return
  }
  func.func @transform_0(%arg0: i32) -> (i32, i32, i32) {
    %c0_i32 = arith.constant 0 : i32
    %c0_i32_0 = arith.constant 0 : i32
    %c0_i32_1 = arith.constant 0 : i32
    return %arg0, %c0_i32, %c0_i32_0 : i32, i32, i32
  }
  func.func @transform_1(%arg0: i32) -> (i32, i32, i32) {
    %c0_i32 = arith.constant 0 : i32
    %c0_i32_0 = arith.constant 0 : i32
    %c0_i32_1 = arith.constant 0 : i32
    return %arg0, %c0_i32, %c0_i32_0 : i32, i32, i32
  }
  func.func @transform_2(%arg0: i32) -> (i32, i32, i32) {
    %c0_i32 = arith.constant 0 : i32
    %c0_i32_0 = arith.constant 0 : i32
    %c0_i32_1 = arith.constant 0 : i32
    return %arg0, %c0_i32, %c0_i32_0 : i32, i32, i32
  }
  func.func @transform_3(%arg0: i32) -> (i32, i32, i32) {
    %c0_i32 = arith.constant 0 : i32
    %c0_i32_0 = arith.constant 0 : i32
    %c0_i32_1 = arith.constant 0 : i32
    return %arg0, %c0_i32, %c0_i32_0 : i32, i32, i32
  }
  func.func @transform_4(%arg0: i32) -> (i32, i32, i32) {
    %c0_i32 = arith.constant 0 : i32
    %c0_i32_0 = arith.constant 0 : i32
    %c0_i32_1 = arith.constant 0 : i32
    return %arg0, %c0_i32, %c0_i32_0 : i32, i32, i32
  }
  func.func @transform_5(%arg0: i32) -> (i32, i32) {
    %c0_i32 = arith.constant 0 : i32
    %c0_i32_0 = arith.constant 0 : i32
    %c0_i32_1 = arith.constant 0 : i32
    return %c0_i32, %c0_i32_0 : i32, i32
  }
  func.func @transform_6(%arg0: i32) -> (i32, i32) {
    %c0_i32 = arith.constant 0 : i32
    %c0_i32_0 = arith.constant 0 : i32
    %c0_i32_1 = arith.constant 0 : i32
    return %c0_i32, %c0_i32_0 : i32, i32
  }
  func.func @transform_7(%arg0: i32) -> (i32, i32) {
    %c0_i32 = arith.constant 0 : i32
    %c0_i32_0 = arith.constant 0 : i32
    %c0_i32_1 = arith.constant 0 : i32
    return %c0_i32, %c0_i32_0 : i32, i32
  }
  func.func @transform_8(%arg0: i32) -> (i32, i32) {
    %c0_i32 = arith.constant 0 : i32
    %c0_i32_0 = arith.constant 0 : i32
    %c0_i32_1 = arith.constant 0 : i32
    return %c0_i32, %c0_i32_0 : i32, i32
  }
  func.func @transform_9(%arg0: i32) -> (i32, i32) {
    %c0_i32 = arith.constant 0 : i32
    %c0_i32_0 = arith.constant 0 : i32
    %c0_i32_1 = arith.constant 0 : i32
    return %c0_i32, %c0_i32_0 : i32, i32
  }
  func.func @transform_10(%arg0: i32) -> (i32, i32) {
    %c0_i32 = arith.constant 0 : i32
    %c0_i32_0 = arith.constant 0 : i32
    %c0_i32_1 = arith.constant 0 : i32
    return %c0_i32, %c0_i32_0 : i32, i32
  }
  func.func @transform_11(%arg0: i32) -> (i32, i32) {
    %c0_i32 = arith.constant 0 : i32
    %c0_i32_0 = arith.constant 0 : i32
    %c0_i32_1 = arith.constant 0 : i32
    return %c0_i32, %c0_i32_0 : i32, i32
  }
  func.func @transform_12(%arg0: i32) -> (i32, i32) {
    %c0_i32 = arith.constant 0 : i32
    %c0_i32_0 = arith.constant 0 : i32
    %c0_i32_1 = arith.constant 0 : i32
    return %c0_i32, %c0_i32_0 : i32, i32
  }
  func.func @transform_13(%arg0: i32) -> (i32, i32) {
    %c0_i32 = arith.constant 0 : i32
    %c0_i32_0 = arith.constant 0 : i32
    %c0_i32_1 = arith.constant 0 : i32
    return %c0_i32, %c0_i32_0 : i32, i32
  }
  func.func @transform_14(%arg0: i32) -> (i32, i32) {
    %c0_i32 = arith.constant 0 : i32
    %c0_i32_0 = arith.constant 0 : i32
    %c0_i32_1 = arith.constant 0 : i32
    return %c0_i32, %c0_i32_0 : i32, i32
  }
  func.func @transform_15(%arg0: i32) -> (i32, i32) {
    %c0_i32 = arith.constant 0 : i32
    %c0_i32_0 = arith.constant 0 : i32
    %c0_i32_1 = arith.constant 0 : i32
    return %c0_i32, %c0_i32_0 : i32, i32
  }
  func.func @transform_16(%arg0: i32) -> (i32, i32) {
    %c0_i32 = arith.constant 0 : i32
    %c0_i32_0 = arith.constant 0 : i32
    %c0_i32_1 = arith.constant 0 : i32
    return %c0_i32, %c0_i32_0 : i32, i32
  }
  func.func @transform_17(%arg0: i32) -> (i32, i32) {
    %c0_i32 = arith.constant 0 : i32
    %c0_i32_0 = arith.constant 0 : i32
    %c0_i32_1 = arith.constant 0 : i32
    return %c0_i32, %c0_i32_0 : i32, i32
  }
  func.func @transform_18(%arg0: i32) -> (i32, i32) {
    %c0_i32 = arith.constant 0 : i32
    %c0_i32_0 = arith.constant 0 : i32
    %c0_i32_1 = arith.constant 0 : i32
    return %c0_i32, %c0_i32_0 : i32, i32
  }
  func.func @transform_19(%arg0: i32) -> (i32, i32) {
    %c0_i32 = arith.constant 0 : i32
    %c0_i32_0 = arith.constant 0 : i32
    %c0_i32_1 = arith.constant 0 : i32
    return %c0_i32, %c0_i32_0 : i32, i32
  }
  func.func @transform_20(%arg0: i32) -> (i32, i32) {
    %c0_i32 = arith.constant 0 : i32
    %c0_i32_0 = arith.constant 0 : i32
    %c0_i32_1 = arith.constant 0 : i32
    return %c0_i32, %c0_i32_0 : i32, i32
  }
  func.func @transform_21(%arg0: i32) -> (i32, i32) {
    %c0_i32 = arith.constant 0 : i32
    %c0_i32_0 = arith.constant 0 : i32
    %c0_i32_1 = arith.constant 0 : i32
    return %c0_i32, %c0_i32_0 : i32, i32
  }
  func.func @transform_22(%arg0: i32) -> (i32, i32) {
    %c0_i32 = arith.constant 0 : i32
    %c0_i32_0 = arith.constant 0 : i32
    %c0_i32_1 = arith.constant 0 : i32
    return %c0_i32, %c0_i32_0 : i32, i32
  }
  func.func @transform_23(%arg0: i32) -> (i32, i32, i32) {
    %c0_i32 = arith.constant 0 : i32
    %c0_i32_0 = arith.constant 0 : i32
    %c0_i32_1 = arith.constant 0 : i32
    return %arg0, %c0_i32, %c0_i32_0 : i32, i32, i32
  }
}

</mosaic_0001>

<llo_original>
// kernel: tpu_custom_call.1
$region0: #{tpu_custom_call.1}
  #allocation0 [shape = 'u32[]', space=smem, size = 0x4, offset = 0x4, fixed_abs, tag = 'smem constant byte address 0x4 - core index']
  #allocation1 [shape = 'u32[72,128]{1,0:T(1,128)}', space=vmem, size = 0x9000, scoped, tag = 'internal scratch']
  %s0 = inlined_call_operand.vmem [shape: bf16[4,8,128], index: 0, kind: input, shape index: {}]
  %s1 = inlined_call_operand.hbm [shape: bf16[4,8,128], index: 1, kind: input, shape index: {}]
  %s2 = inlined_call_operand.hbm [shape: bf16[4,8,128], index: 2, kind: input, shape index: {}]
  %s3 = inlined_call_operand.hbm [shape: f32[4,1,8], index: 3, kind: input, shape index: {}]
  %s4 = inlined_call_operand.hbm [shape: f32[4,1,8], index: 4, kind: input, shape index: {}]
  %s5 = inlined_call_operand.vmem [shape: bf16[128,32], index: 5, kind: input, shape index: {}]
  %s6 = inlined_call_operand.hbm [shape: bf16[32,32], index: 6, kind: input, shape index: {}]
  %s7 = inlined_call_operand.vmem [shape: bf16[128,32], index: 7, kind: input, shape index: {}]
  %s8 = inlined_call_operand.vmem [shape: bf16[32,2], index: 8, kind: input, shape index: {}]
  %s9 = inlined_call_operand.hbm [shape: bf16[64,128], index: 9, kind: input, shape index: {}]
  %s10 = inlined_call_operand.hbm [shape: bf16[128,384], index: 10, kind: input, shape index: {}]
  %s11 = inlined_call_operand.hbm [shape: bf16[128,128], index: 11, kind: input, shape index: {}]
  %s12 = inlined_call_operand.hbm [shape: bf16[128,384], index: 12, kind: input, shape index: {}]
  %s13 = inlined_call_operand.hbm [shape: bf16[128,128], index: 13, kind: input, shape index: {}]
  %s14 = inlined_call_operand.vmem [shape: bf16[128,256], index: 14, kind: input, shape index: {}]
  %s15 = inlined_call_operand.hbm [shape: bf16[256,128], index: 15, kind: input, shape index: {}]
  %s16 = inlined_call_operand.vmem [shape: f32[1,32], index: 16, kind: input, shape index: {}]
  %s17 = inlined_call_operand.hbm [shape: f32[1,32], index: 17, kind: input, shape index: {}]
  %s18 = inlined_call_operand.hbm [shape: f32[1,2], index: 18, kind: input, shape index: {}]
  %s19 = inlined_call_operand.hbm [shape: f32[1,384], index: 19, kind: input, shape index: {}]
  %s20 = inlined_call_operand.hbm [shape: f32[1,384], index: 20, kind: input, shape index: {}]
  %s21 = inlined_call_operand.vmem [shape: f32[1,256], index: 21, kind: input, shape index: {}]
  %s22 = inlined_call_operand.vmem [shape: f32[12,128], index: 22, kind: input, shape index: {}]
  %s23 = inlined_call_operand.hbm [shape: bf16[4,8,128], index: 23, kind: output, shape index: {}]
  %s24 = sld [smem:[#allocation0]]
  $region185: #{tpu_custom_call.1} parent=0
    _
  %s26 = ssub.s32 1, %s24
  %s27 = scalar_select 0, %s26, %s24
  $region1: #{tpu_custom_call.1} parent=0
    #allocation2 [shape = 'u8[8192]{0}', space=vmem, size = 0x2000, scoped, tag = 'input window, operand 1']
    #allocation3 [shape = 's32[2]{0}', space=sflag, size = 0x8, scoped, tag = 'scoped memory for tpu_custom_call.1']
    #allocation4 [shape = 's32[2]{0}', space=sflag, size = 0x8, scoped, tag = 'scoped memory for tpu_custom_call.1']
    #allocation5 [shape = 'u8[8192]{0}', space=vmem, size = 0x2000, scoped, tag = 'input window, operand 2']
    #allocation6 [shape = 's32[2]{0}', space=sflag, size = 0x8, scoped, tag = 'scoped memory for tpu_custom_call.1']
    #allocation7 [shape = 'u8[2048]{0}', space=vmem, size = 0x800, scoped, tag = 'input window, operand 3']
    #allocation8 [shape = 'u8[2048]{0}', space=vmem, size = 0x800, scoped, tag = 'input window, operand 4']
    #allocation9 [shape = 's32[2]{0}', space=sflag, size = 0x8, scoped, tag = 'scoped memory for tpu_custom_call.1']
    #allocation10 [shape = 'u8[8192]{0}', space=vmem, size = 0x2000, scoped, tag = 'input window, operand 6, single buffered']
    #allocation11 [shape = 'u8[16384]{0}', space=vmem, size = 0x4000, scoped, tag = 'input window, operand 9, single buffered']
    #allocation12 [shape = 's32[1]{0}', space=sflag, size = 0x4, scoped, tag = 'scoped memory for tpu_custom_call.1']
    #allocation13 [shape = 'u8[98304]{0}', space=vmem, size = 0x18000, scoped, tag = 'input window, operand 10, single buffered']
    #allocation14 [shape = 'u8[32768]{0}', space=vmem, size = 0x8000, scoped, tag = 'input window, operand 11, single buffered']
    #allocation15 [shape = 's32[1]{0}', space=sflag, size = 0x4, scoped, tag = 'scoped memory for tpu_custom_call.1']
    #allocation16 [shape = 'u8[98304]{0}', space=vmem, size = 0x18000, scoped, tag = 'input window, operand 12, single buffered']
    #allocation17 [shape = 'u8[32768]{0}', space=vmem, size = 0x8000, scoped, tag = 'input window, operand 13, single buffered']
    #allocation18 [shape = 's32[1]{0}', space=sflag, size = 0x4, scoped, tag = 'scoped memory for tpu_custom_call.1']
    #allocation19 [shape = 'u8[65536]{0}', space=vmem, size = 0x10000, scoped, tag = 'input window, operand 15, single buffered']
    #allocation20 [shape = 'u8[512]{0}', space=vmem, size = 0x400, scoped, tag = 'input window, operand 17, single buffered']
    #allocation21 [shape = 's32[1]{0}', space=sflag, size = 0x4, scoped, tag = 'scoped memory for tpu_custom_call.1']
    #allocation22 [shape = 'u8[512]{0}', space=vmem, size = 0x400, scoped, tag = 'input window, operand 18, single buffered']
    #allocation23 [shape = 'u8[1536]{0}', space=vmem, size = 0x800, scoped, tag = 'input window, operand 19, single buffered']
    #allocation24 [shape = 's32[1]{0}', space=sflag, size = 0x4, scoped, tag = 'scoped memory for tpu_custom_call.1']
    #allocation25 [shape = 'u8[1536]{0}', space=vmem, size = 0x800, scoped, tag = 'input window, operand 20, single buffered']
    #allocation26 [shape = 'u8[8192]{0}', space=vmem, size = 0x2000, scoped, tag = 'output window, operand 0']
    %28 = vsyncpa [#allocation3], 0
    %s29 = scalar_lea.sflag [#allocation3], 1
    %30 = vsyncpa %s29, 0
    %31 = vsyncpa [#allocation6], 0
    %s32 = scalar_lea.sflag [#allocation6], 1
    %33 = vsyncpa %s32, 0
    %34 = vsyncpa [#allocation9], 0
    %s35 = scalar_lea.sflag [#allocation9], 1
    %36 = vsyncpa %s35, 0
    %37 = vsyncpa [#allocation12], 0
    %38 = vsyncpa [#allocation15], 0
    %39 = vsyncpa [#allocation18], 0
    %40 = vsyncpa [#allocation21], 0
    %41 = vsyncpa [#allocation24], 0
    %42 = vsyncpa [#allocation4], 0
    %s43 = scalar_lea.sflag [#allocation4], 1
    %44 = vsyncpa %s43, 0
    loop: start=0, step=1, limit=4
    $region2: #{tpu_custom_call.1} parent=1 // loop_pre_header
      _
    $region3: #{tpu_custom_call.1} parent=1 // loop_header
      %s46 = sphi 0, %s50
      %p47 = scmp.ge.s32.totalorder %s46, 4
      %s56 = sphi 0, %s58
      %s59 = sphi 0, %s56
      %s60 = sphi 0, %s59
      %s76 = sphi 0, %s60
      %s82 = sphi 0, %s84
      %s85 = sphi 0, %s82
      %s86 = sphi 0, %s85
      %s102 = sphi 0, %s86
      %s108 = sphi 0, %s110
      %s111 = sphi 0, %s108
      %s112 = sphi 0, %s111
      %s128 = sphi 0, %s112
      %s134 = sphi 0, %s136
      %s137 = sphi 0, %s134
      %s138 = sphi 0, %s137
      %s154 = sphi 0, %s138
      %s160 = sphi 0, %s162
      %s163 = sphi 0, %s160
      %s164 = sphi 0, %s163
      %s180 = sphi 0, %s164
      %s184 = sphi 0, %s184
      %s186 = sphi 0, %s184
      %s187 = sphi 0, %s186
      %s201 = sphi 0, %s187
      %s205 = sphi 0, %s205
      %s207 = sphi 0, %s205
      %s208 = sphi 0, %s207
      %s222 = sphi 0, %s208
      %s226 = sphi 0, %s226
      %s228 = sphi 0, %s226
      %s229 = sphi 0, %s228
      %s243 = sphi 0, %s229
      %s247 = sphi 0, %s247
      %s249 = sphi 0, %s247
      %s250 = sphi 0, %s249
      %s264 = sphi 0, %s250
      %s268 = sphi 0, %s268
      %s270 = sphi 0, %s268
      %s271 = sphi 0, %s270
      %s285 = sphi 0, %s271
      %s289 = sphi 0, %s289
      %s291 = sphi 0, %s289
      %s292 = sphi 0, %s291
      %s306 = sphi 0, %s292
      %s310 = sphi 0, %s310
      %s312 = sphi 0, %s310
      %s313 = sphi 0, %s312
      %s327 = sphi 0, %s313
      %s331 = sphi 0, %s331
      %s333 = sphi 0, %s331
      %s334 = sphi 0, %s333
      %s348 = sphi 0, %s334
      %s352 = sphi 0, %s352
      %s354 = sphi 0, %s352
      %s355 = sphi 0, %s354
      %s369 = sphi 0, %s355
      %s373 = sphi 0, %s373
      %s375 = sphi 0, %s373
      %s376 = sphi 0, %s375
      %s390 = sphi 0, %s376
      %s394 = sphi 0, %s394
      %s396 = sphi 0, %s394
      %s397 = sphi 0, %s396
      %s411 = sphi 0, %s397
      %s415 = sphi 0, %s415
      %s417 = sphi 0, %s415
      %s418 = sphi 0, %s417
      %s432 = sphi 0, %s418
      %s436 = sphi 0, %s436
      %s438 = sphi 0, %s436
      %s439 = sphi 0, %s438
      %s453 = sphi 0, %s439
      %s457 = sphi 0, %s457
      %s459 = sphi 0, %s457
      %s460 = sphi 0, %s459
      %s474 = sphi 0, %s460
      %s478 = sphi 0, %s478
      %s480 = sphi 0, %s478
      %s481 = sphi 0, %s480
      %s495 = sphi 0, %s481
      %s499 = sphi 0, %s499
      %s501 = sphi 0, %s499
      %s502 = sphi 0, %s501
      %s516 = sphi 0, %s502
      %s520 = sphi 0, %s520
      %s522 = sphi 0, %s520
      %s523 = sphi 0, %s522
      %s537 = sphi 0, %s523
      %s541 = sphi 0, %s541
      %s543 = sphi 0, %s541
      %s544 = sphi 0, %s543
      %s558 = sphi 0, %s544
      %s564 = sphi 0, %s566
      %s567 = sphi 0, %s564
      %s568 = sphi 0, %s567
      %s584 = sphi 0, %s568
    $region4: #{tpu_custom_call.1} parent=1 // loop_header_branch
      %49 = sbr.rel (%p47) target = $region8
    $region5: #{tpu_custom_call.1} parent=1 // loop_body
      %s51 = ssub.s32 %s46, 1
      %s52 = ssub.s32 %s46, 2
      %s53 = sadd.s32 %s46, 1
      %s54 = ssub.s32 %s46, %s53
      %p55 = scmp.eq.s32.totalorder %s54, 0
      %s57 = sadd.s32 %s56, 1
      %s58 = scalar_select %p55, %s56, %s57
      %p61 = pneg %p55
      %p62 = scmp.eq.s32.totalorder %s46, 1
      %p63 = por %p61, %p62
      %p64 = scmp.ne.s32.totalorder %s56, %s59
      %p65 = scmp.eq.s32.totalorder %s46, 0
      %p66 = por %p64, %p65
      %p67 = scmp.ne.s32.totalorder %s56, %s59
      %p68 = scmp.eq.s32.totalorder %s51, 1
      %p69 = por %p67, %p68
      %p70 = scmp.ne.s32.totalorder %s59, %s60
      %p71 = scmp.eq.s32.totalorder %s51, 0
      %p72 = por %p70, %p71
      %p73 = scmp.ne.s32.totalorder %s59, %s60
      %p74 = scmp.eq.s32.totalorder %s52, 1
      %p75 = por %p73, %p74
      %p77 = scmp.ne.s32.totalorder %s60, %s76
      %p78 = scmp.eq.s32.totalorder %s52, 0
      %p79 = por %p77, %p78
      %s80 = ssub.s32 %s46, %s53
      %p81 = scmp.eq.s32.totalorder %s80, 0
      %s83 = sadd.s32 %s82, 1
      %s84 = scalar_select %p81, %s82, %s83
      %p87 = pneg %p81
      %p88 = scmp.eq.s32.totalorder %s46, 1
      %p89 = por %p87, %p88
      %p90 = scmp.ne.s32.totalorder %s82, %s85
      %p91 = scmp.eq.s32.totalorder %s46, 0
      %p92 = por %p90, %p91
      %p93 = scmp.ne.s32.totalorder %s82, %s85
      %p94 = scmp.eq.s32.totalorder %s51, 1
      %p95 = por %p93, %p94
      %p96 = scmp.ne.s32.totalorder %s85, %s86
      %p97 = scmp.eq.s32.totalorder %s51, 0
      %p98 = por %p96, %p97
      %p99 = scmp.ne.s32.totalorder %s85, %s86
      %p100 = scmp.eq.s32.totalorder %s52, 1
      %p101 = por %p99, %p100
      %p103 = scmp.ne.s32.totalorder %s86, %s102
      %p104 = scmp.eq.s32.totalorder %s52, 0
      %p105 = por %p103, %p104
      %s106 = ssub.s32 %s46, %s53
      %p107 = scmp.eq.s32.totalorder %s106, 0
      %s109 = sadd.s32 %s108, 1
      %s110 = scalar_select %p107, %s108, %s109
      %p113 = pneg %p107
      %p114 = scmp.eq.s32.totalorder %s46, 1
      %p115 = por %p113, %p114
      %p116 = scmp.ne.s32.totalorder %s108, %s111
      %p117 = scmp.eq.s32.totalorder %s46, 0
      %p118 = por %p116, %p117
      %p119 = scmp.ne.s32.totalorder %s108, %s111
      %p120 = scmp.eq.s32.totalorder %s51, 1
      %p121 = por %p119, %p120
      %p122 = scmp.ne.s32.totalorder %s111, %s112
      %p123 = scmp.eq.s32.totalorder %s51, 0
      %p124 = por %p122, %p123
      %p125 = scmp.ne.s32.totalorder %s111, %s112
      %p126 = scmp.eq.s32.totalorder %s52, 1
      %p127 = por %p125, %p126
      %p129 = scmp.ne.s32.totalorder %s112, %s128
      %p130 = scmp.eq.s32.totalorder %s52, 0
      %p131 = por %p129, %p130
      %s132 = ssub.s32 %s46, %s53
      %p133 = scmp.eq.s32.totalorder %s132, 0
      %s135 = sadd.s32 %s134, 1
      %s136 = scalar_select %p133, %s134, %s135
      %p139 = pneg %p133
      %p140 = scmp.eq.s32.totalorder %s46, 1
      %p141 = por %p139, %p140
      %p142 = scmp.ne.s32.totalorder %s134, %s137
      %p143 = scmp.eq.s32.totalorder %s46, 0
      %p144 = por %p142, %p143
      %p145 = scmp.ne.s32.totalorder %s134, %s137
      %p146 = scmp.eq.s32.totalorder %s51, 1
      %p147 = por %p145, %p146
      %p148 = scmp.ne.s32.totalorder %s137, %s138
      %p149 = scmp.eq.s32.totalorder %s51, 0
      %p150 = por %p148, %p149
      %p151 = scmp.ne.s32.totalorder %s137, %s138
      %p152 = scmp.eq.s32.totalorder %s52, 1
      %p153 = por %p151, %p152
      %p155 = scmp.ne.s32.totalorder %s138, %s154
      %p156 = scmp.eq.s32.totalorder %s52, 0
      %p157 = por %p155, %p156
      %s158 = ssub.s32 %s46, %s53
      %p159 = scmp.eq.s32.totalorder %s158, 0
      %s161 = sadd.s32 %s160, 1
      %s162 = scalar_select %p159, %s160, %s161
      %p165 = pneg %p159
      %p166 = scmp.eq.s32.totalorder %s46, 1
      %p167 = por %p165, %p166
      %p168 = scmp.ne.s32.totalorder %s160, %s163
      %p169 = scmp.eq.s32.totalorder %s46, 0
      %p170 = por %p168, %p169
      %p171 = scmp.ne.s32.totalorder %s160, %s163
      %p172 = scmp.eq.s32.totalorder %s51, 1
      %p173 = por %p171, %p172
      %p174 = scmp.ne.s32.totalorder %s163, %s164
      %p175 = scmp.eq.s32.totalorder %s51, 0
      %p176 = por %p174, %p175
      %p177 = scmp.ne.s32.totalorder %s163, %s164
      %p178 = scmp.eq.s32.totalorder %s52, 1
      %p179 = por %p177, %p178
      %p181 = scmp.ne.s32.totalorder %s164, %s180
      %p182 = scmp.eq.s32.totalorder %s52, 0
      %p183 = por %p181, %p182
      %s185 = sadd.s32 %s184, 1
      %p188 = scmp.eq.s32.totalorder %s46, 1
      %p189 = scmp.ne.s32.totalorder %s184, %s186
      %p190 = scmp.eq.s32.totalorder %s46, 0
      %p191 = por %p189, %p190
      %p192 = scmp.ne.s32.totalorder %s184, %s186
      %p193 = scmp.eq.s32.totalorder %s51, 1
      %p194 = por %p192, %p193
      %p195 = scmp.ne.s32.totalorder %s186, %s187
      %p196 = scmp.eq.s32.totalorder %s51, 0
      %p197 = por %p195, %p196
      %p198 = scmp.ne.s32.totalorder %s186, %s187
      %p199 = scmp.eq.s32.totalorder %s52, 1
      %p200 = por %p198, %p199
      %p202 = scmp.ne.s32.totalorder %s187, %s201
      %p203 = scmp.eq.s32.totalorder %s52, 0
      %p204 = por %p202, %p203
      %s206 = sadd.s32 %s205, 1
      %p209 = scmp.eq.s32.totalorder %s46, 1
      %p210 = scmp.ne.s32.totalorder %s205, %s207
      %p211 = scmp.eq.s32.totalorder %s46, 0
      %p212 = por %p210, %p211
      %p213 = scmp.ne.s32.totalorder %s205, %s207
      %p214 = scmp.eq.s32.totalorder %s51, 1
      %p215 = por %p213, %p214
      %p216 = scmp.ne.s32.totalorder %s207, %s208
      %p217 = scmp.eq.s32.totalorder %s51, 0
      %p218 = por %p216, %p217
      %p219 = scmp.ne.s32.totalorder %s207, %s208
      %p220 = scmp.eq.s32.totalorder %s52, 1
      %p221 = por %p219, %p220
      %p223 = scmp.ne.s32.totalorder %s208, %s222
      %p224 = scmp.eq.s32.totalorder %s52, 0
      %p225 = por %p223, %p224
      %s227 = sadd.s32 %s226, 1
      %p230 = scmp.eq.s32.totalorder %s46, 1
      %p231 = scmp.ne.s32.totalorder %s226, %s228
      %p232 = scmp.eq.s32.totalorder %s46, 0
      %p233 = por %p231, %p232
      %p234 = scmp.ne.s32.totalorder %s226, %s228
      %p235 = scmp.eq.s32.totalorder %s51, 1
      %p236 = por %p234, %p235
      %p237 = scmp.ne.s32.totalorder %s228, %s229
      %p238 = scmp.eq.s32.totalorder %s51, 0
      %p239 = por %p237, %p238
      %p240 = scmp.ne.s32.totalorder %s228, %s229
      %p241 = scmp.eq.s32.totalorder %s52, 1
      %p242 = por %p240, %p241
      %p244 = scmp.ne.s32.totalorder %s229, %s243
      %p245 = scmp.eq.s32.totalorder %s52, 0
      %p246 = por %p244, %p245
      %s248 = sadd.s32 %s247, 1
      %p251 = scmp.eq.s32.totalorder %s46, 1
      %p252 = scmp.ne.s32.totalorder %s247, %s249
      %p253 = scmp.eq.s32.totalorder %s46, 0
      %p254 = por %p252, %p253
      %p255 = scmp.ne.s32.totalorder %s247, %s249
      %p256 = scmp.eq.s32.totalorder %s51, 1
      %p257 = por %p255, %p256
      %p258 = scmp.ne.s32.totalorder %s249, %s250
      %p259 = scmp.eq.s32.totalorder %s51, 0
      %p260 = por %p258, %p259
      %p261 = scmp.ne.s32.totalorder %s249, %s250
      %p262 = scmp.eq.s32.totalorder %s52, 1
      %p263 = por %p261, %p262
      %p265 = scmp.ne.s32.totalorder %s250, %s264
      %p266 = scmp.eq.s32.totalorder %s52, 0
      %p267 = por %p265, %p266
      %s269 = sadd.s32 %s268, 1
      %p272 = scmp.eq.s32.totalorder %s46, 1
      %p273 = scmp.ne.s32.totalorder %s268, %s270
      %p274 = scmp.eq.s32.totalorder %s46, 0
      %p275 = por %p273, %p274
      %p276 = scmp.ne.s32.totalorder %s268, %s270
      %p277 = scmp.eq.s32.totalorder %s51, 1
      %p278 = por %p276, %p277
      %p279 = scmp.ne.s32.totalorder %s270, %s271
      %p280 = scmp.eq.s32.totalorder %s51, 0
      %p281 = por %p279, %p280
      %p282 = scmp.ne.s32.totalorder %s270, %s271
      %p283 = scmp.eq.s32.totalorder %s52, 1
      %p284 = por %p282, %p283
      %p286 = scmp.ne.s32.totalorder %s271, %s285
      %p287 = scmp.eq.s32.totalorder %s52, 0
      %p288 = por %p286, %p287
      %s290 = sadd.s32 %s289, 1
      %p293 = scmp.eq.s32.totalorder %s46, 1
      %p294 = scmp.ne.s32.totalorder %s289, %s291
      %p295 = scmp.eq.s32.totalorder %s46, 0
      %p296 = por %p294, %p295
      %p297 = scmp.ne.s32.totalorder %s289, %s291
      %p298 = scmp.eq.s32.totalorder %s51, 1
      %p299 = por %p297, %p298
      %p300 = scmp.ne.s32.totalorder %s291, %s292
      %p301 = scmp.eq.s32.totalorder %s51, 0
      %p302 = por %p300, %p301
      %p303 = scmp.ne.s32.totalorder %s291, %s292
      %p304 = scmp.eq.s32.totalorder %s52, 1
      %p305 = por %p303, %p304
      %p307 = scmp.ne.s32.totalorder %s292, %s306
      %p308 = scmp.eq.s32.totalorder %s52, 0
      %p309 = por %p307, %p308
      %s311 = sadd.s32 %s310, 1
      %p314 = scmp.eq.s32.totalorder %s46, 1
      %p315 = scmp.ne.s32.totalorder %s310, %s312
      %p316 = scmp.eq.s32.totalorder %s46, 0
      %p317 = por %p315, %p316
      %p318 = scmp.ne.s32.totalorder %s310, %s312
      %p319 = scmp.eq.s32.totalorder %s51, 1
      %p320 = por %p318, %p319
      %p321 = scmp.ne.s32.totalorder %s312, %s313
      %p322 = scmp.eq.s32.totalorder %s51, 0
      %p323 = por %p321, %p322
      %p324 = scmp.ne.s32.totalorder %s312, %s313
      %p325 = scmp.eq.s32.totalorder %s52, 1
      %p326 = por %p324, %p325
      %p328 = scmp.ne.s32.totalorder %s313, %s327
      %p329 = scmp.eq.s32.totalorder %s52, 0
      %p330 = por %p328, %p329
      %s332 = sadd.s32 %s331, 1
      %p335 = scmp.eq.s32.totalorder %s46, 1
      %p336 = scmp.ne.s32.totalorder %s331, %s333
      %p337 = scmp.eq.s32.totalorder %s46, 0
      %p338 = por %p336, %p337
      %p339 = scmp.ne.s32.totalorder %s331, %s333
      %p340 = scmp.eq.s32.totalorder %s51, 1
      %p341 = por %p339, %p340
      %p342 = scmp.ne.s32.totalorder %s333, %s334
      %p343 = scmp.eq.s32.totalorder %s51, 0
      %p344 = por %p342, %p343
      %p345 = scmp.ne.s32.totalorder %s333, %s334
      %p346 = scmp.eq.s32.totalorder %s52, 1
      %p347 = por %p345, %p346
      %p349 = scmp.ne.s32.totalorder %s334, %s348
      %p350 = scmp.eq.s32.totalorder %s52, 0
      %p351 = por %p349, %p350
      %s353 = sadd.s32 %s352, 1
      %p356 = scmp.eq.s32.totalorder %s46, 1
      %p357 = scmp.ne.s32.totalorder %s352, %s354
      %p358 = scmp.eq.s32.totalorder %s46, 0
      %p359 = por %p357, %p358
      %p360 = scmp.ne.s32.totalorder %s352, %s354
      %p361 = scmp.eq.s32.totalorder %s51, 1
      %p362 = por %p360, %p361
      %p363 = scmp.ne.s32.totalorder %s354, %s355
      %p364 = scmp.eq.s32.totalorder %s51, 0
      %p365 = por %p363, %p364
      %p366 = scmp.ne.s32.totalorder %s354, %s355
      %p367 = scmp.eq.s32.totalorder %s52, 1
      %p368 = por %p366, %p367
      %p370 = scmp.ne.s32.totalorder %s355, %s369
      %p371 = scmp.eq.s32.totalorder %s52, 0
      %p372 = por %p370, %p371
      %s374 = sadd.s32 %s373, 1
      %p377 = scmp.eq.s32.totalorder %s46, 1
      %p378 = scmp.ne.s32.totalorder %s373, %s375
      %p379 = scmp.eq.s32.totalorder %s46, 0
      %p380 = por %p378, %p379
      %p381 = scmp.ne.s32.totalorder %s373, %s375
      %p382 = scmp.eq.s32.totalorder %s51, 1
      %p383 = por %p381, %p382
      %p384 = scmp.ne.s32.totalorder %s375, %s376
      %p385 = scmp.eq.s32.totalorder %s51, 0
      %p386 = por %p384, %p385
      %p387 = scmp.ne.s32.totalorder %s375, %s376
      %p388 = scmp.eq.s32.totalorder %s52, 1
      %p389 = por %p387, %p388
      %p391 = scmp.ne.s32.totalorder %s376, %s390
      %p392 = scmp.eq.s32.totalorder %s52, 0
      %p393 = por %p391, %p392
      %s395 = sadd.s32 %s394, 1
      %p398 = scmp.eq.s32.totalorder %s46, 1
      %p399 = scmp.ne.s32.totalorder %s394, %s396
      %p400 = scmp.eq.s32.totalorder %s46, 0
      %p401 = por %p399, %p400
      %p402 = scmp.ne.s32.totalorder %s394, %s396
      %p403 = scmp.eq.s32.totalorder %s51, 1
      %p404 = por %p402, %p403
      %p405 = scmp.ne.s32.totalorder %s396, %s397
      %p406 = scmp.eq.s32.totalorder %s51, 0
      %p407 = por %p405, %p406
      %p408 = scmp.ne.s32.totalorder %s396, %s397
      %p409 = scmp.eq.s32.totalorder %s52, 1
      %p410 = por %p408, %p409
      %p412 = scmp.ne.s32.totalorder %s397, %s411
      %p413 = scmp.eq.s32.totalorder %s52, 0
      %p414 = por %p412, %p413
      %s416 = sadd.s32 %s415, 1
      %p419 = scmp.eq.s32.totalorder %s46, 1
      %p420 = scmp.ne.s32.totalorder %s415, %s417
      %p421 = scmp.eq.s32.totalorder %s46, 0
      %p422 = por %p420, %p421
      %p423 = scmp.ne.s32.totalorder %s415, %s417
      %p424 = scmp.eq.s32.totalorder %s51, 1
      %p425 = por %p423, %p424
      %p426 = scmp.ne.s32.totalorder %s417, %s418
      %p427 = scmp.eq.s32.totalorder %s51, 0
      %p428 = por %p426, %p427
      %p429 = scmp.ne.s32.totalorder %s417, %s418
      %p430 = scmp.eq.s32.totalorder %s52, 1
      %p431 = por %p429, %p430
      %p433 = scmp.ne.s32.totalorder %s418, %s432
      %p434 = scmp.eq.s32.totalorder %s52, 0
      %p435 = por %p433, %p434
      %s437 = sadd.s32 %s436, 1
      %p440 = scmp.eq.s32.totalorder %s46, 1
      %p441 = scmp.ne.s32.totalorder %s436, %s438
      %p442 = scmp.eq.s32.totalorder %s46, 0
      %p443 = por %p441, %p442
      %p444 = scmp.ne.s32.totalorder %s436, %s438
      %p445 = scmp.eq.s32.totalorder %s51, 1
      %p446 = por %p444, %p445
      %p447 = scmp.ne.s32.totalorder %s438, %s439
      %p448 = scmp.eq.s32.totalorder %s51, 0
      %p449 = por %p447, %p448
      %p450 = scmp.ne.s32.totalorder %s438, %s439
      %p451 = scmp.eq.s32.totalorder %s52, 1
      %p452 = por %p450, %p451
      %p454 = scmp.ne.s32.totalorder %s439, %s453
      %p455 = scmp.eq.s32.totalorder %s52, 0
      %p456 = por %p454, %p455
      %s458 = sadd.s32 %s457, 1
      %p461 = scmp.eq.s32.totalorder %s46, 1
      %p462 = scmp.ne.s32.totalorder %s457, %s459
      %p463 = scmp.eq.s32.totalorder %s46, 0
      %p464 = por %p462, %p463
      %p465 = scmp.ne.s32.totalorder %s457, %s459
      %p466 = scmp.eq.s32.totalorder %s51, 1
      %p467 = por %p465, %p466
      %p468 = scmp.ne.s32.totalorder %s459, %s460
      %p469 = scmp.eq.s32.totalorder %s51, 0
      %p470 = por %p468, %p469
      %p471 = scmp.ne.s32.totalorder %s459, %s460
      %p472 = scmp.eq.s32.totalorder %s52, 1
      %p473 = por %p471, %p472
      %p475 = scmp.ne.s32.totalorder %s460, %s474
      %p476 = scmp.eq.s32.totalorder %s52, 0
      %p477 = por %p475, %p476
      %s479 = sadd.s32 %s478, 1
      %p482 = scmp.eq.s32.totalorder %s46, 1
      %p483 = scmp.ne.s32.totalorder %s478, %s480
      %p484 = scmp.eq.s32.totalorder %s46, 0
      %p485 = por %p483, %p484
      %p486 = scmp.ne.s32.totalorder %s478, %s480
      %p487 = scmp.eq.s32.totalorder %s51, 1
      %p488 = por %p486, %p487
      %p489 = scmp.ne.s32.totalorder %s480, %s481
      %p490 = scmp.eq.s32.totalorder %s51, 0
      %p491 = por %p489, %p490
      %p492 = scmp.ne.s32.totalorder %s480, %s481
      %p493 = scmp.eq.s32.totalorder %s52, 1
      %p494 = por %p492, %p493
      %p496 = scmp.ne.s32.totalorder %s481, %s495
      %p497 = scmp.eq.s32.totalorder %s52, 0
      %p498 = por %p496, %p497
      %s500 = sadd.s32 %s499, 1
      %p503 = scmp.eq.s32.totalorder %s46, 1
      %p504 = scmp.ne.s32.totalorder %s499, %s501
      %p505 = scmp.eq.s32.totalorder %s46, 0
      %p506 = por %p504, %p505
      %p507 = scmp.ne.s32.totalorder %s499, %s501
      %p508 = scmp.eq.s32.totalorder %s51, 1
      %p509 = por %p507, %p508
      %p510 = scmp.ne.s32.totalorder %s501, %s502
      %p511 = scmp.eq.s32.totalorder %s51, 0
      %p512 = por %p510, %p511
      %p513 = scmp.ne.s32.totalorder %s501, %s502
      %p514 = scmp.eq.s32.totalorder %s52, 1
      %p515 = por %p513, %p514
      %p517 = scmp.ne.s32.totalorder %s502, %s516
      %p518 = scmp.eq.s32.totalorder %s52, 0
      %p519 = por %p517, %p518
      %s521 = sadd.s32 %s520, 1
      %p524 = scmp.eq.s32.totalorder %s46, 1
      %p525 = scmp.ne.s32.totalorder %s520, %s522
      %p526 = scmp.eq.s32.totalorder %s46, 0
      %p527 = por %p525, %p526
      %p528 = scmp.ne.s32.totalorder %s520, %s522
      %p529 = scmp.eq.s32.totalorder %s51, 1
      %p530 = por %p528, %p529
      %p531 = scmp.ne.s32.totalorder %s522, %s523
      %p532 = scmp.eq.s32.totalorder %s51, 0
      %p533 = por %p531, %p532
      %p534 = scmp.ne.s32.totalorder %s522, %s523
      %p535 = scmp.eq.s32.totalorder %s52, 1
      %p536 = por %p534, %p535
      %p538 = scmp.ne.s32.totalorder %s523, %s537
      %p539 = scmp.eq.s32.totalorder %s52, 0
      %p540 = por %p538, %p539
      %s542 = sadd.s32 %s541, 1
      %p545 = scmp.eq.s32.totalorder %s46, 1
      %p546 = scmp.ne.s32.totalorder %s541, %s543
      %p547 = scmp.eq.s32.totalorder %s46, 0
      %p548 = por %p546, %p547
      %p549 = scmp.ne.s32.totalorder %s541, %s543
      %p550 = scmp.eq.s32.totalorder %s51, 1
      %p551 = por %p549, %p550
      %p552 = scmp.ne.s32.totalorder %s543, %s544
      %p553 = scmp.eq.s32.totalorder %s51, 0
      %p554 = por %p552, %p553
      %p555 = scmp.ne.s32.totalorder %s543, %s544
      %p556 = scmp.eq.s32.totalorder %s52, 1
      %p557 = por %p555, %p556
      %p559 = scmp.ne.s32.totalorder %s544, %s558
      %p560 = scmp.eq.s32.totalorder %s52, 0
      %p561 = por %p559, %p560
      %s562 = ssub.s32 %s46, %s53
      %p563 = scmp.eq.s32.totalorder %s562, 0
      %s565 = sadd.s32 %s564, 1
      %s566 = scalar_select %p563, %s564, %s565
      %p569 = pneg %p563
      %p570 = scmp.eq.s32.totalorder %s46, 1
      %p571 = por %p569, %p570
      %p572 = scmp.ne.s32.totalorder %s564, %s567
      %p573 = scmp.eq.s32.totalorder %s46, 0
      %p574 = por %p572, %p573
      %p575 = scmp.ne.s32.totalorder %s564, %s567
      %p576 = scmp.eq.s32.totalorder %s51, 1
      %p577 = por %p575, %p576
      %p578 = scmp.ne.s32.totalorder %s567, %s568
      %p579 = scmp.eq.s32.totalorder %s51, 0
      %p580 = por %p578, %p579
      %p581 = scmp.ne.s32.totalorder %s567, %s568
      %p582 = scmp.eq.s32.totalorder %s52, 1
      %p583 = por %p581, %p582
      %p585 = scmp.ne.s32.totalorder %s568, %s584
      %p586 = scmp.eq.s32.totalorder %s52, 0
      %p587 = por %p585, %p586
      %p588 = scmp.le.s32.totalorder 1, %s46
      %p589 = scmp.lt.s32.totalorder %s46, 3
      %p590 = pnand %p588, %p589
      %p591 = pneg %p590
      // Predicated region
      $region9: #{tpu_custom_call.1} parent=5 // pred_check
        _
      $region10: #{tpu_custom_call.1} parent=5 // pred_check_branch
        %593 = sbr.rel (%p590) target = $region12
      $region11: #{tpu_custom_call.1} parent=5 // pred_region
        %s594 = ssub.s32 %s46, 1
        // Predicated region
        $region13: #{tpu_custom_call.1} parent=11 // pred_check
          %p595 = pneg %p197
        $region14: #{tpu_custom_call.1} parent=11 // pred_check_branch
          %597 = sbr.rel (%p595) target = $region16
        $region15: #{tpu_custom_call.1} parent=11 // pred_region
          _
        $region16: #{tpu_custom_call.1} parent=11 // pred_fallthru
          _
        // Predicated region
        $region17: #{tpu_custom_call.1} parent=11 // pred_check
          %p598 = pneg %p218
        $region18: #{tpu_custom_call.1} parent=11 // pred_check_branch
          %600 = sbr.rel (%p598) target = $region20
        $region19: #{tpu_custom_call.1} parent=11 // pred_region
          %602 = vsyncadd [#allocation9], 0
          %s603 = sshll.u32 %s6, 4
          %s604 = int_to_ptr.hbm [resolvable:$true] %s603
          %s605 = sshll.u32 [#allocation10], 4
          %s606 = int_to_ptr.vmem [resolvable:$true] %s605
          %611 = dma.hbm_to_vmem [thread:$0]  %s604, 256, %s606, [#allocation9], 64, 64, 4
        $region20: #{tpu_custom_call.1} parent=11 // pred_fallthru
          _
        // Predicated region
        $region21: #{tpu_custom_call.1} parent=11 // pred_check
          %p612 = pneg %p239
        $region22: #{tpu_custom_call.1} parent=11 // pred_check_branch
          %614 = sbr.rel (%p612) target = $region24
        $region23: #{tpu_custom_call.1} parent=11 // pred_region
          _
        $region24: #{tpu_custom_call.1} parent=11 // pred_fallthru
          _
        // Predicated region
        $region25: #{tpu_custom_call.1} parent=11 // pred_check
          %p615 = pneg %p260
        $region26: #{tpu_custom_call.1} parent=11 // pred_check_branch
          %617 = sbr.rel (%p615) target = $region28
        $region27: #{tpu_custom_call.1} parent=11 // pred_region
          _
        $region28: #{tpu_custom_call.1} parent=11 // pred_fallthru
          _
        // Predicated region
        $region29: #{tpu_custom_call.1} parent=11 // pred_check
          %p618 = pneg %p281
        $region30: #{tpu_custom_call.1} parent=11 // pred_check_branch
          %620 = sbr.rel (%p618) target = $region32
        $region31: #{tpu_custom_call.1} parent=11 // pred_region
          %622 = vsyncadd [#allocation12], 0
          %s623 = sshll.u32 %s9, 4
          %s624 = int_to_ptr.hbm [resolvable:$true] %s623
          %s625 = sshll.u32 [#allocation11], 4
          %s626 = int_to_ptr.vmem [resolvable:$true] %s625
          %631 = dma.hbm_to_vmem [thread:$0]  %s624, 512, %s626, [#allocation12], 64, 64, 4
        $region32: #{tpu_custom_call.1} parent=11 // pred_fallthru
          _
        // Predicated region
        $region33: #{tpu_custom_call.1} parent=11 // pred_check
          %p632 = pneg %p302
        $region34: #{tpu_custom_call.1} parent=11 // pred_check_branch
          %634 = sbr.rel (%p632) target = $region36
        $region35: #{tpu_custom_call.1} parent=11 // pred_region
          %636 = vsyncadd [#allocation12], 0
          %s637 = sshll.u32 %s10, 4
          %s638 = int_to_ptr.hbm [resolvable:$true] %s637
          %s639 = sshll.u32 [#allocation13], 4
          %s640 = int_to_ptr.vmem [resolvable:$true] %s639
          %645 = dma.hbm_to_vmem [thread:$0]  %s638, 3072, %s640, [#allocation12], 192, 192, 12
        $region36: #{tpu_custom_call.1} parent=11 // pred_fallthru
          _
        // Predicated region
        $region37: #{tpu_custom_call.1} parent=11 // pred_check
          %p646 = pneg %p323
        $region38: #{tpu_custom_call.1} parent=11 // pred_check_branch
          %648 = sbr.rel (%p646) target = $region40
        $region39: #{tpu_custom_call.1} parent=11 // pred_region
          %650 = vsyncadd [#allocation15], 0
          %s651 = sshll.u32 %s11, 4
          %s652 = int_to_ptr.hbm [resolvable:$true] %s651
          %s653 = sshll.u32 [#allocation14], 4
          %s654 = int_to_ptr.vmem [resolvable:$true] %s653
          %659 = dma.hbm_to_vmem [thread:$0]  %s652, 1024, %s654, [#allocation15], 64, 64, 4
        $region40: #{tpu_custom_call.1} parent=11 // pred_fallthru
          _
        // Predicated region
        $region41: #{tpu_custom_call.1} parent=11 // pred_check
          %p660 = pneg %p344
        $region42: #{tpu_custom_call.1} parent=11 // pred_check_branch
          %662 = sbr.rel (%p660) target = $region44
        $region43: #{tpu_custom_call.1} parent=11 // pred_region
          %664 = vsyncadd [#allocation15], 0
          %s665 = sshll.u32 %s12, 4
          %s666 = int_to_ptr.hbm [resolvable:$true] %s665
          %s667 = sshll.u32 [#allocation16], 4
          %s668 = int_to_ptr.vmem [resolvable:$true] %s667
          %673 = dma.hbm_to_vmem [thread:$0]  %s666, 3072, %s668, [#allocation15], 192, 192, 12
        $region44: #{tpu_custom_call.1} parent=11 // pred_fallthru
          _
        // Predicated region
        $region45: #{tpu_custom_call.1} parent=11 // pred_check
          %p674 = pneg %p365
        $region46: #{tpu_custom_call.1} parent=11 // pred_check_branch
          %676 = sbr.rel (%p674) target = $region48
        $region47: #{tpu_custom_call.1} parent=11 // pred_region
          %678 = vsyncadd [#allocation18], 0
          %s679 = sshll.u32 %s13, 4
          %s680 = int_to_ptr.hbm [resolvable:$true] %s679
          %s681 = sshll.u32 [#allocation17], 4
          %s682 = int_to_ptr.vmem [resolvable:$true] %s681
          %687 = dma.hbm_to_vmem [thread:$0]  %s680, 1024, %s682, [#allocation18], 64, 64, 4
        $region48: #{tpu_custom_call.1} parent=11 // pred_fallthru
          _
        // Predicated region
        $region49: #{tpu_custom_call.1} parent=11 // pred_check
          %p688 = pneg %p386
        $region50: #{tpu_custom_call.1} parent=11 // pred_check_branch
          %690 = sbr.rel (%p688) target = $region52
        $region51: #{tpu_custom_call.1} parent=11 // pred_region
          _
        $region52: #{tpu_custom_call.1} parent=11 // pred_fallthru
          _
        // Predicated region
        $region53: #{tpu_custom_call.1} parent=11 // pred_check
          %p691 = pneg %p407
        $region54: #{tpu_custom_call.1} parent=11 // pred_check_branch
          %693 = sbr.rel (%p691) target = $region56
        $region55: #{tpu_custom_call.1} parent=11 // pred_region
          %695 = vsyncadd [#allocation18], 0
          %s696 = sshll.u32 %s15, 4
          %s697 = int_to_ptr.hbm [resolvable:$true] %s696
          %s698 = sshll.u32 [#allocation19], 4
          %s699 = int_to_ptr.vmem [resolvable:$true] %s698
          %704 = dma.hbm_to_vmem [thread:$0]  %s697, 2048, %s699, [#allocation18], 64, 64, 4
        $region56: #{tpu_custom_call.1} parent=11 // pred_fallthru
          _
        // Predicated region
        $region57: #{tpu_custom_call.1} parent=11 // pred_check
          %p705 = pneg %p428
        $region58: #{tpu_custom_call.1} parent=11 // pred_check_branch
          %707 = sbr.rel (%p705) target = $region60
        $region59: #{tpu_custom_call.1} parent=11 // pred_region
          _
        $region60: #{tpu_custom_call.1} parent=11 // pred_fallthru
          _
        // Predicated region
        $region61: #{tpu_custom_call.1} parent=11 // pred_check
          %p708 = pneg %p449
        $region62: #{tpu_custom_call.1} parent=11 // pred_check_branch
          %710 = sbr.rel (%p708) target = $region64
        $region63: #{tpu_custom_call.1} parent=11 // pred_region
          %712 = vsyncadd [#allocation21], 0
          %s714 = sshll.u32 %s17, 4
          %s715 = int_to_ptr.hbm [resolvable:$true] %s714
          %s716 = sshll.u32 [#allocation20], 4
          %s717 = int_to_ptr.vmem [resolvable:$true] %s716
          %719 = dma.hbm_to_vmem [thread:$0]  %s715, 16, %s717, [#allocation21]
        $region64: #{tpu_custom_call.1} parent=11 // pred_fallthru
          _
        // Predicated region
        $region65: #{tpu_custom_call.1} parent=11 // pred_check
          %p720 = pneg %p470
        $region66: #{tpu_custom_call.1} parent=11 // pred_check_branch
          %722 = sbr.rel (%p720) target = $region68
        $region67: #{tpu_custom_call.1} parent=11 // pred_region
          %724 = vsyncadd [#allocation21], 0
          %s726 = sshll.u32 %s18, 4
          %s727 = int_to_ptr.hbm [resolvable:$true] %s726
          %s728 = sshll.u32 [#allocation22], 4
          %s729 = int_to_ptr.vmem [resolvable:$true] %s728
          %731 = dma.hbm_to_vmem [thread:$0]  %s727, 16, %s729, [#allocation21]
        $region68: #{tpu_custom_call.1} parent=11 // pred_fallthru
          _
        // Predicated region
        $region69: #{tpu_custom_call.1} parent=11 // pred_check
          %p732 = pneg %p491
        $region70: #{tpu_custom_call.1} parent=11 // pred_check_branch
          %734 = sbr.rel (%p732) target = $region72
        $region71: #{tpu_custom_call.1} parent=11 // pred_region
          %736 = vsyncadd [#allocation24], 0
          %s738 = sshll.u32 %s19, 4
          %s739 = int_to_ptr.hbm [resolvable:$true] %s738
          %s740 = sshll.u32 [#allocation23], 4
          %s741 = int_to_ptr.vmem [resolvable:$true] %s740
          %743 = dma.hbm_to_vmem [thread:$0]  %s739, 48, %s741, [#allocation24]
        $region72: #{tpu_custom_call.1} parent=11 // pred_fallthru
          _
        // Predicated region
        $region73: #{tpu_custom_call.1} parent=11 // pred_check
          %p744 = pneg %p512
        $region74: #{tpu_custom_call.1} parent=11 // pred_check_branch
          %746 = sbr.rel (%p744) target = $region76
        $region75: #{tpu_custom_call.1} parent=11 // pred_region
          %748 = vsyncadd [#allocation24], 0
          %s750 = sshll.u32 %s20, 4
          %s751 = int_to_ptr.hbm [resolvable:$true] %s750
          %s752 = sshll.u32 [#allocation25], 4
          %s753 = int_to_ptr.vmem [resolvable:$true] %s752
          %755 = dma.hbm_to_vmem [thread:$0]  %s751, 48, %s753, [#allocation24]
        $region76: #{tpu_custom_call.1} parent=11 // pred_fallthru
          _
        // Predicated region
        $region77: #{tpu_custom_call.1} parent=11 // pred_check
          %p756 = pneg %p533
        $region78: #{tpu_custom_call.1} parent=11 // pred_check_branch
          %758 = sbr.rel (%p756) target = $region80
        $region79: #{tpu_custom_call.1} parent=11 // pred_region
          _
        $region80: #{tpu_custom_call.1} parent=11 // pred_fallthru
          _
        // Predicated region
        $region81: #{tpu_custom_call.1} parent=11 // pred_check
          %p759 = pneg %p554
        $region82: #{tpu_custom_call.1} parent=11 // pred_check_branch
          %761 = sbr.rel (%p759) target = $region84
        $region83: #{tpu_custom_call.1} parent=11 // pred_region
          _
        $region84: #{tpu_custom_call.1} parent=11 // pred_fallthru
          _
      $region12: #{tpu_custom_call.1} parent=5 // pred_fallthru
        _
      %p762 = scmp.lt.s32.totalorder %s46, 2
      // Predicated region
      $region85: #{tpu_custom_call.1} parent=5 // pred_check
        %p763 = pneg %p762
      $region86: #{tpu_custom_call.1} parent=5 // pred_check_branch
        %765 = sbr.rel (%p763) target = $region88
      $region87: #{tpu_custom_call.1} parent=5 // pred_region
        // Predicated region
        $region89: #{tpu_custom_call.1} parent=87 // pred_check
          %p766 = pneg %p66
        $region90: #{tpu_custom_call.1} parent=87 // pred_check_branch
          %768 = sbr.rel (%p766) target = $region92
        $region91: #{tpu_custom_call.1} parent=87 // pred_region
          %s769 = smul.u32 2, %s46
          %p770 = scmp.lt.s32.totalorder %s769, 3
          %s771 = scalar_select %p770, %s769, 3
          %s772 = smul.addr %s771, 4
          %s773 = scalar_lea.vmem %s0, %s772
          %s774 = smul.u32 2, %s46
        $region92: #{tpu_custom_call.1} parent=87 // pred_fallthru
          _
        // Predicated region
        $region93: #{tpu_custom_call.1} parent=87 // pred_check
          %p775 = pneg %p92
        $region94: #{tpu_custom_call.1} parent=87 // pred_check_branch
          %777 = sbr.rel (%p775) target = $region96
        $region95: #{tpu_custom_call.1} parent=87 // pred_region
          %s778 = sand.u32 %s82, 1
          %s779 = scalar_lea.sflag [#allocation3], %s778
          %s780 = sand.u32 %s82, 1
          %s781 = smul.addr %s780, 8
          %s782 = scalar_lea.vmem [#allocation2], %s781
          %s783 = smul.u32 2, %s46
          %785 = vsyncadd %s779, 0
          %s786 = smul.addr %s783, 4
          %s787 = scalar_lea.hbm %s1, %s786
          %s788 = sshll.u32 %s787, 4
          %s789 = int_to_ptr.hbm [resolvable:$true] %s788
          %s790 = sshll.u32 %s782, 4
          %s791 = int_to_ptr.vmem [resolvable:$true] %s790
          %796 = dma.hbm_to_vmem [thread:$0]  %s789, 128, %s791, %s779, 64, 64, 4
        $region96: #{tpu_custom_call.1} parent=87 // pred_fallthru
          _
        // Predicated region
        $region97: #{tpu_custom_call.1} parent=87 // pred_check
          %p797 = pneg %p118
        $region98: #{tpu_custom_call.1} parent=87 // pred_check_branch
          %799 = sbr.rel (%p797) target = $region100
        $region99: #{tpu_custom_call.1} parent=87 // pred_region
          %s800 = sand.u32 %s46, 1
          %s801 = scalar_lea.sflag [#allocation6], %s800
          %s802 = sand.u32 %s108, 1
          %s803 = smul.addr %s802, 8
          %s804 = scalar_lea.vmem [#allocation5], %s803
          %s805 = smul.u32 2, %s46
          %807 = vsyncadd %s801, 0
          %s808 = smul.addr %s805, 4
          %s809 = scalar_lea.hbm %s2, %s808
          %s810 = sshll.u32 %s809, 4
          %s811 = int_to_ptr.hbm [resolvable:$true] %s810
          %s812 = sshll.u32 %s804, 4
          %s813 = int_to_ptr.vmem [resolvable:$true] %s812
          %818 = dma.hbm_to_vmem [thread:$0]  %s811, 128, %s813, %s801, 64, 64, 4
        $region100: #{tpu_custom_call.1} parent=87 // pred_fallthru
          _
        // Predicated region
        $region101: #{tpu_custom_call.1} parent=87 // pred_check
          %p819 = pneg %p144
        $region102: #{tpu_custom_call.1} parent=87 // pred_check_branch
          %821 = sbr.rel (%p819) target = $region104
        $region103: #{tpu_custom_call.1} parent=87 // pred_region
          %s822 = sand.u32 %s46, 1
          %s823 = scalar_lea.sflag [#allocation6], %s822
          %s824 = sand.u32 %s134, 1
          %s825 = smul.addr %s824, 2
          %s826 = scalar_lea.vmem [#allocation7], %s825
          %s827 = smul.u32 2, %s46
          %829 = vsyncadd %s823, 0
          %s830 = scalar_lea.hbm %s3, %s827
          %s831 = sshll.u32 %s830, 4
          %s832 = int_to_ptr.hbm [resolvable:$true] %s831
          %s833 = sshll.u32 %s826, 4
          %s834 = int_to_ptr.vmem [resolvable:$true] %s833
          %839 = dma.hbm_to_vmem [thread:$0]  %s832, 32, %s834, %s823, 16, 16, 1
        $region104: #{tpu_custom_call.1} parent=87 // pred_fallthru
          _
        // Predicated region
        $region105: #{tpu_custom_call.1} parent=87 // pred_check
          %p840 = pneg %p170
        $region106: #{tpu_custom_call.1} parent=87 // pred_check_branch
          %842 = sbr.rel (%p840) target = $region108
        $region107: #{tpu_custom_call.1} parent=87 // pred_region
          %s843 = sand.u32 %s46, 1
          %s844 = scalar_lea.sflag [#allocation9], %s843
          %s845 = sand.u32 %s160, 1
          %s846 = smul.addr %s845, 2
          %s847 = scalar_lea.vmem [#allocation8], %s846
          %s848 = smul.u32 2, %s46
          %850 = vsyncadd %s844, 0
          %s851 = scalar_lea.hbm %s4, %s848
          %s852 = sshll.u32 %s851, 4
          %s853 = int_to_ptr.hbm [resolvable:$true] %s852
          %s854 = sshll.u32 %s847, 4
          %s855 = int_to_ptr.vmem [resolvable:$true] %s854
          %860 = dma.hbm_to_vmem [thread:$0]  %s853, 32, %s855, %s844, 16, 16, 1
        $region108: #{tpu_custom_call.1} parent=87 // pred_fallthru
          _
      $region88: #{tpu_custom_call.1} parent=5 // pred_fallthru
        _
      %p861 = scmp.le.s32.totalorder 1, %s46
      %p862 = scmp.lt.s32.totalorder %s46, 3
      %p863 = pnand %p861, %p862
      %p864 = pneg %p863
      // Predicated region
      $region109: #{tpu_custom_call.1} parent=5 // pred_check
        _
      $region110: #{tpu_custom_call.1} parent=5 // pred_check_branch
        %866 = sbr.rel (%p863) target = $region112
      $region111: #{tpu_custom_call.1} parent=5 // pred_region
        %s867 = ssub.s32 %s46, 1
        %s868 = sand.u32 %s85, 1
        %s869 = scalar_lea.sflag [#allocation3], %s868
        %s870 = sand.u32 %s85, 1
        %s871 = smul.addr %s870, 8
        %s872 = scalar_lea.vmem [#allocation2], %s871
        // Predicated region
        $region113: #{tpu_custom_call.1} parent=111 // pred_check
          %p873 = pneg %p98
        $region114: #{tpu_custom_call.1} parent=111 // pred_check_branch
          %875 = sbr.rel (%p873) target = $region116
        $region115: #{tpu_custom_call.1} parent=111 // pred_region
          %877 = dma.done %s869, 128
        $region116: #{tpu_custom_call.1} parent=111 // pred_fallthru
          _
        %s878 = sand.u32 %s51, 1
        %s879 = scalar_lea.sflag [#allocation6], %s878
        %s880 = sand.u32 %s111, 1
        %s881 = smul.addr %s880, 8
        %s882 = scalar_lea.vmem [#allocation5], %s881
        // Predicated region
        $region117: #{tpu_custom_call.1} parent=111 // pred_check
          %p883 = pneg %p124
        $region118: #{tpu_custom_call.1} parent=111 // pred_check_branch
          %885 = sbr.rel (%p883) target = $region120
        $region119: #{tpu_custom_call.1} parent=111 // pred_region
          %887 = dma.done %s879, 128
        $region120: #{tpu_custom_call.1} parent=111 // pred_fallthru
          _
        %s888 = sand.u32 %s51, 1
        %s889 = scalar_lea.sflag [#allocation6], %s888
        %s890 = sand.u32 %s137, 1
        %s891 = smul.addr %s890, 2
        %s892 = scalar_lea.vmem [#allocation7], %s891
        // Predicated region
        $region121: #{tpu_custom_call.1} parent=111 // pred_check
          %p893 = pneg %p150
        $region122: #{tpu_custom_call.1} parent=111 // pred_check_branch
          %895 = sbr.rel (%p893) target = $region124
        $region123: #{tpu_custom_call.1} parent=111 // pred_region
          %897 = dma.done %s889, 32
        $region124: #{tpu_custom_call.1} parent=111 // pred_fallthru
          _
        %s898 = sand.u32 %s51, 1
        %s899 = scalar_lea.sflag [#allocation9], %s898
        %s900 = sand.u32 %s163, 1
        %s901 = smul.addr %s900, 2
        %s902 = scalar_lea.vmem [#allocation8], %s901
        // Predicated region
        $region125: #{tpu_custom_call.1} parent=111 // pred_check
          %p903 = pneg %p176
        $region126: #{tpu_custom_call.1} parent=111 // pred_check_branch
          %905 = sbr.rel (%p903) target = $region128
        $region127: #{tpu_custom_call.1} parent=111 // pred_region
          %907 = dma.done %s899, 32
        $region128: #{tpu_custom_call.1} parent=111 // pred_fallthru
          _
        // Predicated region
        $region129: #{tpu_custom_call.1} parent=111 // pred_check
          %p908 = pneg %p218
        $region130: #{tpu_custom_call.1} parent=111 // pred_check_branch
          %910 = sbr.rel (%p908) target = $region132
        $region131: #{tpu_custom_call.1} parent=111 // pred_region
          %912 = dma.done [#allocation9], 256
        $region132: #{tpu_custom_call.1} parent=111 // pred_fallthru
          _
        // Predicated region
        $region133: #{tpu_custom_call.1} parent=111 // pred_check
          %p913 = pneg %p281
        $region134: #{tpu_custom_call.1} parent=111 // pred_check_branch
          %915 = sbr.rel (%p913) target = $region136
        $region135: #{tpu_custom_call.1} parent=111 // pred_region
          %917 = dma.done [#allocation12], 512
        $region136: #{tpu_custom_call.1} parent=111 // pred_fallthru
          _
        // Predicated region
        $region137: #{tpu_custom_call.1} parent=111 // pred_check
          %p918 = pneg %p302
        $region138: #{tpu_custom_call.1} parent=111 // pred_check_branch
          %920 = sbr.rel (%p918) target = $region140
        $region139: #{tpu_custom_call.1} parent=111 // pred_region
          %922 = dma.done [#allocation12], 3072
        $region140: #{tpu_custom_call.1} parent=111 // pred_fallthru
          _
        // Predicated region
        $region141: #{tpu_custom_call.1} parent=111 // pred_check
          %p923 = pneg %p323
        $region142: #{tpu_custom_call.1} parent=111 // pred_check_branch
          %925 = sbr.rel (%p923) target = $region144
        $region143: #{tpu_custom_call.1} parent=111 // pred_region
          %927 = dma.done [#allocation15], 1024
        $region144: #{tpu_custom_call.1} parent=111 // pred_fallthru
          _
        // Predicated region
        $region145: #{tpu_custom_call.1} parent=111 // pred_check
          %p928 = pneg %p344
        $region146: #{tpu_custom_call.1} parent=111 // pred_check_branch
          %930 = sbr.rel (%p928) target = $region148
        $region147: #{tpu_custom_call.1} parent=111 // pred_region
          %932 = dma.done [#allocation15], 3072
        $region148: #{tpu_custom_call.1} parent=111 // pred_fallthru
          _
        // Predicated region
        $region149: #{tpu_custom_call.1} parent=111 // pred_check
          %p933 = pneg %p365
        $region150: #{tpu_custom_call.1} parent=111 // pred_check_branch
          %935 = sbr.rel (%p933) target = $region152
        $region151: #{tpu_custom_call.1} parent=111 // pred_region
          %937 = dma.done [#allocation18], 1024
        $region152: #{tpu_custom_call.1} parent=111 // pred_fallthru
          _
        // Predicated region
        $region153: #{tpu_custom_call.1} parent=111 // pred_check
          %p938 = pneg %p407
        $region154: #{tpu_custom_call.1} parent=111 // pred_check_branch
          %940 = sbr.rel (%p938) target = $region156
        $region155: #{tpu_custom_call.1} parent=111 // pred_region
          %942 = dma.done [#allocation18], 2048
        $region156: #{tpu_custom_call.1} parent=111 // pred_fallthru
          _
        // Predicated region
        $region157: #{tpu_custom_call.1} parent=111 // pred_check
          %p943 = pneg %p449
        $region158: #{tpu_custom_call.1} parent=111 // pred_check_branch
          %945 = sbr.rel (%p943) target = $region160
        $region159: #{tpu_custom_call.1} parent=111 // pred_region
          %947 = dma.done [#allocation21], 16
        $region160: #{tpu_custom_call.1} parent=111 // pred_fallthru
          _
        // Predicated region
        $region161: #{tpu_custom_call.1} parent=111 // pred_check
          %p948 = pneg %p470
        $region162: #{tpu_custom_call.1} parent=111 // pred_check_branch
          %950 = sbr.rel (%p948) target = $region164
        $region163: #{tpu_custom_call.1} parent=111 // pred_region
          %952 = dma.done [#allocation21], 16
        $region164: #{tpu_custom_call.1} parent=111 // pred_fallthru
          _
        // Predicated region
        $region165: #{tpu_custom_call.1} parent=111 // pred_check
          %p953 = pneg %p491
        $region166: #{tpu_custom_call.1} parent=111 // pred_check_branch
          %955 = sbr.rel (%p953) target = $region168
        $region167: #{tpu_custom_call.1} parent=111 // pred_region
          %957 = dma.done [#allocation24], 48
        $region168: #{tpu_custom_call.1} parent=111 // pred_fallthru
          _
        // Predicated region
        $region169: #{tpu_custom_call.1} parent=111 // pred_check
          %p958 = pneg %p512
        $region170: #{tpu_custom_call.1} parent=111 // pred_check_branch
          %960 = sbr.rel (%p958) target = $region172
        $region171: #{tpu_custom_call.1} parent=111 // pred_region
          %962 = dma.done [#allocation24], 48
        $region172: #{tpu_custom_call.1} parent=111 // pred_fallthru
          _
        %s963 = smul.u32 2, %s51
        %p964 = scmp.lt.s32.totalorder %s963, 3
        %s965 = scalar_select %p964, %s963, 3
        %s966 = smul.addr %s965, 4
        %s967 = scalar_lea.vmem %s0, %s966
        %p968 = pneg %p72
        %p969 = pneg %p69
        %s970 = sand.u32 %s85, 1
        %s971 = scalar_lea.sflag [#allocation3], %s970
        %s972 = sand.u32 %s85, 1
        %s973 = smul.addr %s972, 8
        %s974 = scalar_lea.vmem [#allocation2], %s973
        %p975 = pneg %p98
        %p976 = pneg %p95
        %s977 = sand.u32 %s51, 1
        %s978 = scalar_lea.sflag [#allocation6], %s977
        %s979 = sand.u32 %s111, 1
        %s980 = smul.addr %s979, 8
        %s981 = scalar_lea.vmem [#allocation5], %s980
        %p982 = pneg %p124
        %p983 = pneg %p121
        %s984 = sand.u32 %s51, 1
        %s985 = scalar_lea.sflag [#allocation6], %s984
        %s986 = sand.u32 %s137, 1
        %s987 = smul.addr %s986, 2
        %s988 = scalar_lea.vmem [#allocation7], %s987
        %p989 = pneg %p150
        %p990 = pneg %p147
        %s991 = sand.u32 %s51, 1
        %s992 = scalar_lea.sflag [#allocation9], %s991
        %s993 = sand.u32 %s163, 1
        %s994 = smul.addr %s993, 2
        %s995 = scalar_lea.vmem [#allocation8], %s994
        %p996 = pneg %p176
        %p997 = pneg %p173
        %p998 = pneg %p197
        %p999 = pneg %p194
        %p1000 = pneg %p218
        %p1001 = pneg %p215
        %p1002 = pneg %p239
        %p1003 = pneg %p236
        %p1004 = pneg %p260
        %p1005 = pneg %p257
        %p1006 = pneg %p281
        %p1007 = pneg %p278
        %p1008 = pneg %p302
        %p1009 = pneg %p299
        %p1010 = pneg %p323
        %p1011 = pneg %p320
        %p1012 = pneg %p344
        %p1013 = pneg %p341
        %p1014 = pneg %p365
        %p1015 = pneg %p362
        %p1016 = pneg %p386
        %p1017 = pneg %p383
        %p1018 = pneg %p407
        %p1019 = pneg %p404
        %p1020 = pneg %p428
        %p1021 = pneg %p425
        %p1022 = pneg %p449
        %p1023 = pneg %p446
        %p1024 = pneg %p470
        %p1025 = pneg %p467
        %p1026 = pneg %p491
        %p1027 = pneg %p488
        %p1028 = pneg %p512
        %p1029 = pneg %p509
        %p1030 = pneg %p533
        %p1031 = pneg %p530
        %p1032 = pneg %p554
        %p1033 = pneg %p551
        %p1034 = pneg %p580
        %p1035 = pneg %p577
        %s1036 = sand.u32 %s567, 1
        %s1037 = scalar_lea.sflag [#allocation4], %s1036
        %s1038 = sand.u32 %s567, 1
        %s1039 = smul.addr %s1038, 8
        %s1040 = scalar_lea.vmem [#allocation26], %s1039
        %s1041 = smul.u32 2, %s51
        %p1042 = scmp.lt.s32.totalorder %s1041, 3
        %s1043 = scalar_select %p1042, %s1041, 3
        %s1044 = smul.addr %s1043, 4
        %s1045 = scalar_lea.vmem %s0, %s1044
        %s1046 = smul.u32 2, %s51
        %s1047 = smul.u32 2, %s51
        %s1048 = smul.u32 2, %s51
        %s1049 = smul.u32 2, %s51
        %s1050 = smul.u32 2, %s51
        %s1051 = smul.u32 2, %s51
        %v1053 = vld [vmem:[%s22] sm:$0xff]
        %v1054 = vld [vmem:[%s22 + $0x8] sm:$0xf]
        %v1055 = vld [vmem:[%s1045] sm:$0xf]
        %v1056 = vld [vmem:[%s1045 + $0x4] sm:$0xf]
        %v1057 = vld [vmem:[%s872] sm:$0xf]
        %v1058 = vld [vmem:[%s872 + $0x4] sm:$0xf]
        %v1059 = vld [vmem:[%s882] sm:$0xf]
        %v1060 = vld [vmem:[%s882 + $0x4] sm:$0xf]
        %v1061 = vunpack.c.l.bf16 %v1055
        %v1062 = vunpack.c.l.bf16 %v1056
        %v1063 = vld [vmem:[%s892] sm:$0x1]
        %v1064 = vld [vmem:[%s892 + $0x1] sm:$0x1]
        %v1065 = vld [vmem:[%s902] sm:$0x1]
        %v1066 = vld [vmem:[%s902 + $0x1] sm:$0x1]
        %v1067 = vld [vmem:[%s7] sm:$0xf]
        %v1068 = vld [vmem:[%s7 + $0x4] sm:$0xf]
        %v1069 = vld [vmem:[%s7 + $0x8] sm:$0xf]
        %v1070 = vld [vmem:[%s7 + $0xc] sm:$0xf]
        %v1071 = vld [vmem:[%s7 + $0x10] sm:$0xf]
        %v1072 = vld [vmem:[%s7 + $0x14] sm:$0xf]
        %v1073 = vld [vmem:[%s7 + $0x18] sm:$0xf]
        %v1074 = vld [vmem:[%s7 + $0x1c] sm:$0xf]
        %v1075 = vld [vmem:[%s7 + $0x20] sm:$0xf]
        %v1076 = vld [vmem:[%s7 + $0x24] sm:$0xf]
        %v1077 = vld [vmem:[%s7 + $0x28] sm:$0xf]
        %v1078 = vld [vmem:[%s7 + $0x2c] sm:$0xf]
        %v1079 = vld [vmem:[%s7 + $0x30] sm:$0xf]
        %v1080 = vld [vmem:[%s7 + $0x34] sm:$0xf]
        %v1081 = vld [vmem:[%s7 + $0x38] sm:$0xf]
        %v1082 = vld [vmem:[%s7 + $0x3c] sm:$0xf]
        %v1083 = vld [vmem:[#allocation20] sm:$0x1]
        %v1085 = vperm.slane %v1083, 0
        %v1089 = vunpack.c.l.b16 %v1059
        %v1090 = vunpack.c.l.b16 %v1060
        %v1091 = vpack.c.b16 %v1090, %v1089
        %v1109 = vunpack.c.l.b16 %v1067
        %v1110 = vunpack.c.l.b16 %v1068
        %v1111 = vunpack.c.l.b16 %v1069
        %v1112 = vunpack.c.l.b16 %v1070
        %v1113 = vunpack.c.l.b16 %v1071
        %v1114 = vunpack.c.l.b16 %v1072
        %v1115 = vunpack.c.l.b16 %v1073
        %v1116 = vunpack.c.l.b16 %v1074
        %v1117 = vunpack.c.l.b16 %v1075
        %v1118 = vunpack.c.l.b16 %v1076
        %v1119 = vunpack.c.l.b16 %v1077
        %v1120 = vunpack.c.l.b16 %v1078
        %v1121 = vunpack.c.l.b16 %v1079
        %v1122 = vunpack.c.l.b16 %v1080
        %v1123 = vunpack.c.l.b16 %v1081
        %v1124 = vunpack.c.l.b16 %v1082
        %v1125 = vpack.c.b16 %v1110, %v1109
        %v1126 = vpack.c.b16 %v1112, %v1111
        %v1127 = vpack.c.b16 %v1114, %v1113
        %v1128 = vpack.c.b16 %v1116, %v1115
        %v1129 = vpack.c.b16 %v1118, %v1117
        %v1130 = vpack.c.b16 %v1120, %v1119
        %v1131 = vpack.c.b16 %v1122, %v1121
        %v1132 = vpack.c.b16 %v1124, %v1123
        %1141 = vmatpush.bf16.msra.mxu0 %v1132
        %1142 = vmatpush.bf16.msra.mxu0 %v1131
        %1143 = vmatpush.bf16.msra.mxu0 %v1130
        %1144 = vmatpush.bf16.msra.mxu0 %v1129
        %1145 = vmatpush.bf16.msra.mxu0 %v1128
        %1146 = vmatpush.bf16.msra.mxu0 %v1127
        %1147 = vmatpush.bf16.msra.mxu0 %v1126
        %1148 = vmatpush.bf16.msra.mxu0 %v1125
        %1149 = vmatmul.bf16.gmra.mxu0 %v1091
        %v1150 = vpop.f32.mrf.mxu0
        %v1151 = vadd.f32 %v1085, %v1150
        %v1152 = vpop.f32.mrf.mxu0
        %v1153 = vadd.f32 %v1085, %v1152
        %1154 = vdwg.mxu0
        %v1155 = vtanh.pop %v1151
        %v1156 = vtanh.pop %v1153
        %v1157 = vld [vmem:[%s5] sm:$0xf]
        %v1158 = vld [vmem:[%s5 + $0x4] sm:$0xf]
        %v1159 = vld [vmem:[%s5 + $0x8] sm:$0xf]
        %v1160 = vld [vmem:[%s5 + $0xc] sm:$0xf]
        %v1161 = vld [vmem:[%s5 + $0x10] sm:$0xf]
        %v1162 = vld [vmem:[%s5 + $0x14] sm:$0xf]
        %v1163 = vld [vmem:[%s5 + $0x18] sm:$0xf]
        %v1164 = vld [vmem:[%s5 + $0x1c] sm:$0xf]
        %v1165 = vld [vmem:[%s5 + $0x20] sm:$0xf]
        %v1166 = vld [vmem:[%s5 + $0x24] sm:$0xf]
        %v1167 = vld [vmem:[%s5 + $0x28] sm:$0xf]
        %v1168 = vld [vmem:[%s5 + $0x2c] sm:$0xf]
        %v1169 = vld [vmem:[%s5 + $0x30] sm:$0xf]
        %v1170 = vld [vmem:[%s5 + $0x34] sm:$0xf]
        %v1171 = vld [vmem:[%s5 + $0x38] sm:$0xf]
        %v1172 = vld [vmem:[%s5 + $0x3c] sm:$0xf]
        %v1173 = vld [vmem:[%s16] sm:$0x1]
        %v1175 = vperm.slane %v1173, 0
        %v1179 = vunpack.c.l.b16 %v1055
        %v1180 = vunpack.c.l.b16 %v1056
        %v1181 = vpack.c.b16 %v1180, %v1179
        %v1199 = vunpack.c.l.b16 %v1157
        %v1200 = vunpack.c.l.b16 %v1158
        %v1201 = vunpack.c.l.b16 %v1159
        %v1202 = vunpack.c.l.b16 %v1160
        %v1203 = vunpack.c.l.b16 %v1161
        %v1204 = vunpack.c.l.b16 %v1162
        %v1205 = vunpack.c.l.b16 %v1163
        %v1206 = vunpack.c.l.b16 %v1164
        %v1207 = vunpack.c.l.b16 %v1165
        %v1208 = vunpack.c.l.b16 %v1166
        %v1209 = vunpack.c.l.b16 %v1167
        %v1210 = vunpack.c.l.b16 %v1168
        %v1211 = vunpack.c.l.b16 %v1169
        %v1212 = vunpack.c.l.b16 %v1170
        %v1213 = vunpack.c.l.b16 %v1171
        %v1214 = vunpack.c.l.b16 %v1172
        %v1215 = vpack.c.b16 %v1200, %v1199
        %v1216 = vpack.c.b16 %v1202, %v1201
        %v1217 = vpack.c.b16 %v1204, %v1203
        %v1218 = vpack.c.b16 %v1206, %v1205
        %v1219 = vpack.c.b16 %v1208, %v1207
        %v1220 = vpack.c.b16 %v1210, %v1209
        %v1221 = vpack.c.b16 %v1212, %v1211
        %v1222 = vpack.c.b16 %v1214, %v1213
        %1231 = vmatpush.bf16.msra.mxu0 %v1222
        %1232 = vmatpush.bf16.msra.mxu0 %v1221
        %1233 = vmatpush.bf16.msra.mxu0 %v1220
        %1234 = vmatpush.bf16.msra.mxu0 %v1219
        %1235 = vmatpush.bf16.msra.mxu0 %v1218
        %1236 = vmatpush.bf16.msra.mxu0 %v1217
        %1237 = vmatpush.bf16.msra.mxu0 %v1216
        %1238 = vmatpush.bf16.msra.mxu0 %v1215
        %1239 = vmatmul.bf16.gmra.mxu0 %v1181
        %v1240 = vpop.f32.mrf.mxu0
        %v1241 = vadd.f32 %v1175, %v1240
        %v1242 = vpop.f32.mrf.mxu0
        %v1243 = vadd.f32 %v1175, %v1242
        %1244 = vdwg.mxu0
        %v1245 = vld [vmem:[#allocation10] sm:$0xf]
        %v1246 = vld [vmem:[#allocation10 + $0x4] sm:$0xf]
        %v1247 = vld [vmem:[#allocation10 + $0x8] sm:$0xf]
        %v1248 = vld [vmem:[#allocation10 + $0xc] sm:$0xf]
        %v1249 = vpack.c.bf16 %v1243, %v1241
        %v1254 = vunpack.c.l.b16 %v1245
        %v1255 = vunpack.c.l.b16 %v1246
        %v1256 = vunpack.c.l.b16 %v1247
        %v1257 = vunpack.c.l.b16 %v1248
        %v1258 = vpack.c.b16 %v1255, %v1254
        %v1259 = vpack.c.b16 %v1257, %v1256
        %vm1262 = vcmask 261120
        %v1264 = vsel %vm1262, %v1249, 0
        %1266 = vmatpush.bf16.msra.mxu0 0
        %1267 = vmatpush.bf16.msra.mxu0 0
        %1268 = vmatpush.bf16.msra.mxu0 0
        %1269 = vmatpush.bf16.msra.mxu0 0
        %1270 = vmatpush.bf16.msra.mxu0 0
        %1271 = vmatpush.bf16.msra.mxu0 0
        %1272 = vmatpush.bf16.msra.mxu0 %v1259
        %1273 = vmatpush.bf16.msra.mxu0 %v1258
        %1274 = vmatmul.bf16.gmra.mxu0 %v1264
        %v1275 = vpop.f32.mrf.mxu0
        %v1276 = vadd.f32 0.0, %v1275
        %v1277 = vpop.f32.mrf.mxu0
        %v1278 = vadd.f32 0.0, %v1277
        %1279 = vdwg.mxu0
        %v1280 = vtanh.pop %v1276
        %v1281 = vtanh.pop %v1278
        %v1282 = vsub.f32 %v1280, %v1155
        %v1283 = vsub.f32 %v1281, %v1156
        %v1284 = vmul.f32 %v1282, %v1282
        %v1285 = vmul.f32 %v1283, %v1283
        %v1286 = vsub.f32 0.0, %v1284
        %v1287 = vsub.f32 0.0, %v1285
        %v1288 = vadd.f32 %v1280, %v1155
        %v1289 = vadd.f32 %v1281, %v1156
        %v1290 = vmax.f32 %v1288, 0.0
        %v1291 = vmax.f32 %v1289, 0.0
        %v1292 = vadd.f32 %v1286, %v1290
        %v1293 = vadd.f32 %v1287, %v1291
        %v1294 = vld [vmem:[%s8] sm:$0xf]
        %v1295 = vld [vmem:[%s8 + $0x4] sm:$0xf]
        %v1296 = vld [vmem:[%s8 + $0x8] sm:$0xf]
        %v1297 = vld [vmem:[%s8 + $0xc] sm:$0xf]
        %v1298 = vpack.c.bf16 %v1293, %v1292
        %v1299 = vld [vmem:[#allocation22] sm:$0x1]
        %v1301 = vperm.slane %v1299, 0
        %v1307 = vunpack.c.l.b16 %v1294
        %v1308 = vunpack.c.l.b16 %v1295
        %v1309 = vunpack.c.l.b16 %v1296
        %v1310 = vunpack.c.l.b16 %v1297
        %v1311 = vpack.c.b16 %v1308, %v1307
        %v1312 = vpack.c.b16 %v1310, %v1309
        %v1316 = vsel %vm1262, %v1298, 0
        %1318 = vmatpush.bf16.msra.mxu0 0
        %1319 = vmatpush.bf16.msra.mxu0 0
        %1320 = vmatpush.bf16.msra.mxu0 0
        %1321 = vmatpush.bf16.msra.mxu0 0
        %1322 = vmatpush.bf16.msra.mxu0 0
        %1323 = vmatpush.bf16.msra.mxu0 0
        %1324 = vmatpush.bf16.msra.mxu0 %v1312
        %1325 = vmatpush.bf16.msra.mxu0 %v1311
        %1326 = vmatmul.bf16.gmra.mxu0 %v1316
        %v1327 = vpop.f32.mrf.mxu0
        %v1328 = vadd.f32 %v1301, %v1327
        %v1329 = vpop.f32.mrf.mxu0
        %v1330 = vadd.f32 %v1301, %v1329
        %1331 = vdwg.mxu0
        %vm1332 = vcmask 15360
        %v1333 = vsel %vm1332, %v1328, -inf
        %v1334 = vrot.slane %v1333, 4
        %v1335 = vmax.f32 %v1333, %v1334
        %v1336 = vrot.slane %v1335, 2
        %v1337 = vmax.f32 %v1335, %v1336
        %v1338 = vrot.slane %v1337, 1
        %v1339 = vmax.f32 %v1337, %v1338
        %v1340 = vsel %vm1332, %v1330, -inf
        %v1341 = vrot.slane %v1340, 4
        %v1342 = vmax.f32 %v1340, %v1341
        %v1343 = vrot.slane %v1342, 2
        %v1344 = vmax.f32 %v1342, %v1343
        %v1345 = vrot.slane %v1344, 1
        %v1346 = vmax.f32 %v1344, %v1345
        %v1347 = vsub.f32 %v1328, %v1339
        %v1348 = vsub.f32 %v1330, %v1346
        %v1349 = vmul.f32 %v1347, 1.442695
        %v1350 = vpow.pop %v1349
        %v1351 = vmul.f32 %v1348, 1.442695
        %v1352 = vpow.pop %v1351
        %v1353 = vsel %vm1332, %v1350, 0.0
        %v1354 = vrot.slane %v1353, 4
        %v1355 = vadd.f32 %v1353, %v1354
        %v1356 = vrot.slane %v1355, 2
        %v1357 = vadd.f32 %v1355, %v1356
        %v1358 = vrot.slane %v1357, 1
        %v1359 = vadd.f32 %v1357, %v1358
        %v1360 = vsel %vm1332, %v1352, 0.0
        %v1361 = vrot.slane %v1360, 4
        %v1362 = vadd.f32 %v1360, %v1361
        %v1363 = vrot.slane %v1362, 2
        %v1364 = vadd.f32 %v1362, %v1363
        %v1365 = vrot.slane %v1364, 1
        %v1366 = vadd.f32 %v1364, %v1365
        %v1367 = vrcp.pop %v1359
        %v1368 = vrcp.pop %v1366
        %v1369 = vmul.f32 %v1350, %v1367
        %v1370 = vmul.f32 %v1352, %v1368
        %1372 = vset.pattern.permute.xlu0 0
        %1373 = vperm.xlu0 %1372, %v1369
        %v1374 = vpop.permute.xlu0 %1373
        %1377 = vset.pattern.permute.xlu0 0
        %1378 = vperm.xlu0 %1377, %v1370
        %v1379 = vpop.permute.xlu0 %1378
        %v1381 = vmul.f32 %v1374, %v1280
        %v1382 = vmul.f32 %v1379, %v1281
        %v1383 = vsel %vm1262, %v1381, 0.0
        %v1384 = vrot.slane %v1383, 4
        %v1385 = vadd.f32 %v1383, %v1384
        %v1386 = vrot.slane %v1385, 2
        %v1387 = vadd.f32 %v1385, %v1386
        %v1388 = vrot.slane %v1387, 1
        %v1389 = vadd.f32 %v1387, %v1388
        %v1390 = vsel %vm1262, %v1382, 0.0
        %v1391 = vrot.slane %v1390, 4
        %v1392 = vadd.f32 %v1390, %v1391
        %v1393 = vrot.slane %v1392, 2
        %v1394 = vadd.f32 %v1392, %v1393
        %v1395 = vrot.slane %v1394, 1
        %v1396 = vadd.f32 %v1394, %v1395
        %v1397 = vld [vmem:[#allocation11] sm:$0xf]
        %v1398 = vld [vmem:[#allocation11 + $0x4] sm:$0xf]
        %v1399 = vld [vmem:[#allocation11 + $0x8] sm:$0xf]
        %v1400 = vld [vmem:[#allocation11 + $0xc] sm:$0xf]
        %v1401 = vpack.c.bf16 %v1389, %v1389
        %v1402 = vpack.c.bf16 %v1396, %v1396
        %v1405 = vunpack.c.l.b16 %v1401
        %v1406 = vunpack.c.l.b16 %v1402
        %vm1407 = vcmask 1041409
        %v1408 = vsel %vm1407, %v1406, %v1405
        %v1409 = vpack.c.b16 %v1408, %v1408
        %v1414 = vunpack.c.l.b16 %v1397
        %v1415 = vunpack.c.l.b16 %v1398
        %v1416 = vunpack.c.l.b16 %v1399
        %v1417 = vunpack.c.l.b16 %v1400
        %v1418 = vpack.c.b16 %v1415, %v1414
        %v1419 = vpack.c.b16 %v1417, %v1416
        %v1423 = vsel %vm1262, %v1409, 0
        %1425 = vmatpush.bf16.msra.mxu0 0
        %1426 = vmatpush.bf16.msra.mxu0 0
        %1427 = vmatpush.bf16.msra.mxu0 0
        %1428 = vmatpush.bf16.msra.mxu0 0
        %1429 = vmatpush.bf16.msra.mxu0 0
        %1430 = vmatpush.bf16.msra.mxu0 0
        %1431 = vmatpush.bf16.msra.mxu0 %v1419
        %1432 = vmatpush.bf16.msra.mxu0 %v1418
        %1433 = vmatmul.bf16.gmra.mxu0 %v1423
        %v1434 = vpop.f32.mrf.mxu0
        %v1435 = vadd.f32 0.0, %v1434
        %v1436 = vpop.f32.mrf.mxu0
        %1437 = vdwg.mxu0
        %v1438 = vperm.slane %v1054, 0
        %v1439 = vadd.f32 %v1438, %v1435
        %1440 = vset.pattern.permute.xlu0 1
        %1441 = vperm.xlu0 %1440, %v1369
        %v1442 = vpop.permute.xlu0 %1441
        %1444 = vset.pattern.permute.xlu0 1
        %1445 = vperm.xlu0 %1444, %v1370
        %v1446 = vpop.permute.xlu0 %1445
        %v1448 = vmul.f32 %v1442, %v1280
        %v1449 = vmul.f32 %v1446, %v1281
        %v1450 = vsel %vm1262, %v1448, 0.0
        %v1451 = vrot.slane %v1450, 4
        %v1452 = vadd.f32 %v1450, %v1451
        %v1453 = vrot.slane %v1452, 2
        %v1454 = vadd.f32 %v1452, %v1453
        %v1455 = vrot.slane %v1454, 1
        %v1456 = vadd.f32 %v1454, %v1455
        %v1457 = vsel %vm1262, %v1449, 0.0
        %v1458 = vrot.slane %v1457, 4
        %v1459 = vadd.f32 %v1457, %v1458
        %v1460 = vrot.slane %v1459, 2
        %v1461 = vadd.f32 %v1459, %v1460
        %v1462 = vrot.slane %v1461, 1
        %v1463 = vadd.f32 %v1461, %v1462
        %v1464 = vld [vmem:[#allocation11 + $0x10] sm:$0xf]
        %v1465 = vld [vmem:[#allocation11 + $0x14] sm:$0xf]
        %v1466 = vld [vmem:[#allocation11 + $0x18] sm:$0xf]
        %v1467 = vld [vmem:[#allocation11 + $0x1c] sm:$0xf]
        %v1468 = vpack.c.bf16 %v1456, %v1456
        %v1469 = vpack.c.bf16 %v1463, %v1463
        %v1472 = vunpack.c.l.b16 %v1468
        %v1473 = vunpack.c.l.b16 %v1469
        %v1474 = vsel %vm1407, %v1473, %v1472
        %v1475 = vpack.c.b16 %v1474, %v1474
        %v1480 = vunpack.c.l.b16 %v1464
        %v1481 = vunpack.c.l.b16 %v1465
        %v1482 = vunpack.c.l.b16 %v1466
        %v1483 = vunpack.c.l.b16 %v1467
        %v1484 = vpack.c.b16 %v1481, %v1480
        %v1485 = vpack.c.b16 %v1483, %v1482
        %v1489 = vsel %vm1262, %v1475, 0
        %1491 = vmatpush.bf16.msra.mxu0 0
        %1492 = vmatpush.bf16.msra.mxu0 0
        %1493 = vmatpush.bf16.msra.mxu0 0
        %1494 = vmatpush.bf16.msra.mxu0 0
        %1495 = vmatpush.bf16.msra.mxu0 0
        %1496 = vmatpush.bf16.msra.mxu0 0
        %1497 = vmatpush.bf16.msra.mxu0 %v1485
        %1498 = vmatpush.bf16.msra.mxu0 %v1484
        %1499 = vmatmul.bf16.gmra.mxu0 %v1489
        %v1500 = vpop.f32.mrf.mxu0
        %v1501 = vadd.f32 0.0, %v1500
        %v1502 = vpop.f32.mrf.mxu0
        %1503 = vdwg.mxu0
        %v1504 = vadd.f32 %v1439, %v1501
        %v1506 = vrot.slane %v1504, 1
        %v1507 = vperm.slane %v1504, 0
        %v1508 = vperm.slane %v1506, 0
        %v1511 = vadd.f32 %v1061, %v1507
        %v1512 = vadd.f32 %v1062, %v1508
        %1513 = vadd.xlane.f32.xlu0 %v1511
        %v1514 = vpop.xlane.xlu0 %1513
        %1515 = vadd.xlane.f32.xlu0 %v1512
        %v1516 = vpop.xlane.xlu0 %1515
        %v1517 = vrcp.pop 128.0
        %v1518 = vmul.f32 128.0, %v1517
        %v1519 = vsub.f32 1.0, %v1518
        %v1520 = vmul.f32 %v1517, %v1519
        %v1521 = vadd.f32 %v1517, %v1520
        %vm1522 = vweird.f32 %v1517
        %v1523 = vsel %vm1522, %v1517, %v1521
        %v1524 = vmul.f32 %v1514, %v1523
        %v1525 = vmul.f32 %v1516, %v1523
        %v1526 = vsub.f32 %v1511, %v1524
        %v1527 = vsub.f32 %v1512, %v1525
        %v1528 = vmul.f32 %v1526, %v1526
        %v1529 = vmul.f32 %v1527, %v1527
        %1530 = vadd.xlane.f32.xlu0 %v1528
        %v1531 = vpop.xlane.xlu0 %1530
        %1532 = vadd.xlane.f32.xlu0 %v1529
        %v1533 = vpop.xlane.xlu0 %1532
        %v1534 = vmul.f32 %v1531, %v1523
        %v1535 = vmul.f32 %v1533, %v1523
        %v1536 = vadd.f32 %v1534, 1e-05
        %v1537 = vadd.f32 %v1535, 1e-05
        %v1538 = vrsqrt.pop %v1536
        %v1539 = vmul.f32 %v1538, %v1536
        %v1540 = vmul.f32 %v1539, %v1538
        %v1541 = vmul.f32 0.5, %v1540
        %v1542 = vsub.f32 1.5, %v1541
        %v1543 = vmul.f32 %v1538, %v1542
        %vm1544 = vweird.f32 %v1536
        %vm1545 = vweird.f32 %v1538
        %vm1546 = vmor %vm1544, %vm1545
        %v1547 = vsel %vm1546, %v1538, %v1543
        %v1548 = vrsqrt.pop %v1537
        %v1549 = vmul.f32 %v1548, %v1537
        %v1550 = vmul.f32 %v1549, %v1548
        %v1551 = vmul.f32 0.5, %v1550
        %v1552 = vsub.f32 1.5, %v1551
        %v1553 = vmul.f32 %v1548, %v1552
        %vm1554 = vweird.f32 %v1537
        %vm1555 = vweird.f32 %v1548
        %vm1556 = vmor %vm1554, %vm1555
        %v1557 = vsel %vm1556, %v1548, %v1553
        %v1558 = vmul.f32 %v1526, %v1547
        %v1559 = vmul.f32 %v1527, %v1557
        %v1560 = vperm.slane %v1053, 0
        %v1561 = vmul.f32 %v1558, %v1560
        %v1562 = vmul.f32 %v1559, %v1560
        %v1563 = vperm.slane %v1053, 1
        %v1564 = vadd.f32 %v1561, %v1563
        %v1565 = vadd.f32 %v1562, %v1563
        %v1566 = vld [vmem:[#allocation13] sm:$0xff]
        %v1567 = vld [vmem:[#allocation13 + $0x8] sm:$0xf]
        %v1568 = vld [vmem:[#allocation13 + $0xc] sm:$0xff]
        %v1569 = vld [vmem:[#allocation13 + $0x14] sm:$0xf]
        %v1570 = vld [vmem:[#allocation13 + $0x18] sm:$0xff]
        %v1571 = vld [vmem:[#allocation13 + $0x20] sm:$0xf]
        %v1572 = vld [vmem:[#allocation13 + $0x24] sm:$0xff]
        %v1573 = vld [vmem:[#allocation13 + $0x2c] sm:$0xf]
        %v1574 = vld [vmem:[#allocation13 + $0x30] sm:$0xff]
        %v1575 = vld [vmem:[#allocation13 + $0x38] sm:$0xf]
        %v1576 = vld [vmem:[#allocation13 + $0x3c] sm:$0xff]
        %v1577 = vld [vmem:[#allocation13 + $0x44] sm:$0xf]
        %v1578 = vld [vmem:[#allocation13 + $0x48] sm:$0xff]
        %v1579 = vld [vmem:[#allocation13 + $0x50] sm:$0xf]
        %v1580 = vld [vmem:[#allocation13 + $0x54] sm:$0xff]
        %v1581 = vld [vmem:[#allocation13 + $0x5c] sm:$0xf]
        %v1582 = vld [vmem:[#allocation13 + $0x60] sm:$0xff]
        %v1583 = vld [vmem:[#allocation13 + $0x68] sm:$0xf]
        %v1584 = vld [vmem:[#allocation13 + $0x6c] sm:$0xff]
        %v1585 = vld [vmem:[#allocation13 + $0x74] sm:$0xf]
        %v1586 = vld [vmem:[#allocation13 + $0x78] sm:$0xff]
        %v1587 = vld [vmem:[#allocation13 + $0x80] sm:$0xf]
        %v1588 = vld [vmem:[#allocation13 + $0x84] sm:$0xff]
        %v1589 = vld [vmem:[#allocation13 + $0x8c] sm:$0xf]
        %v1590 = vld [vmem:[#allocation13 + $0x90] sm:$0xff]
        %v1591 = vld [vmem:[#allocation13 + $0x98] sm:$0xf]
        %v1592 = vld [vmem:[#allocation13 + $0x9c] sm:$0xff]
        %v1593 = vld [vmem:[#allocation13 + $0xa4] sm:$0xf]
        %v1594 = vld [vmem:[#allocation13 + $0xa8] sm:$0xff]
        %v1595 = vld [vmem:[#allocation13 + $0xb0] sm:$0xf]
        %v1596 = vld [vmem:[#allocation13 + $0xb4] sm:$0xff]
        %v1597 = vld [vmem:[#allocation13 + $0xbc] sm:$0xf]
        %v1598 = vpack.c.bf16 %v1565, %v1564
        %v1599 = vld [vmem:[#allocation23] sm:$0x7]
        %v1601 = vperm.slane %v1599, 0
        %v1602 = vperm.slane %v1599, 1
        %v1603 = vperm.slane %v1599, 2
        %v1639 = vunpack.c.l.b16 %v1566
        %v1640 = vunpack.c.h.b16 %v1566
        %v1641 = vunpack.c.l.b16 %v1567
        %v1642 = vunpack.c.l.b16 %v1568
        %v1643 = vunpack.c.h.b16 %v1568
        %v1644 = vunpack.c.l.b16 %v1569
        %v1645 = vunpack.c.l.b16 %v1570
        %v1646 = vunpack.c.h.b16 %v1570
        %v1647 = vunpack.c.l.b16 %v1571
        %v1648 = vunpack.c.l.b16 %v1572
        %v1649 = vunpack.c.h.b16 %v1572
        %v1650 = vunpack.c.l.b16 %v1573
        %v1651 = vunpack.c.l.b16 %v1574
        %v1652 = vunpack.c.h.b16 %v1574
        %v1653 = vunpack.c.l.b16 %v1575
        %v1654 = vunpack.c.l.b16 %v1576
        %v1655 = vunpack.c.h.b16 %v1576
        %v1656 = vunpack.c.l.b16 %v1577
        %v1657 = vunpack.c.l.b16 %v1578
        %v1658 = vunpack.c.h.b16 %v1578
        %v1659 = vunpack.c.l.b16 %v1579
        %v1660 = vunpack.c.l.b16 %v1580
        %v1661 = vunpack.c.h.b16 %v1580
        %v1662 = vunpack.c.l.b16 %v1581
        %v1663 = vunpack.c.l.b16 %v1582
        %v1664 = vunpack.c.h.b16 %v1582
        %v1665 = vunpack.c.l.b16 %v1583
        %v1666 = vunpack.c.l.b16 %v1584
        %v1667 = vunpack.c.h.b16 %v1584
        %v1668 = vunpack.c.l.b16 %v1585
        %v1669 = vunpack.c.l.b16 %v1586
        %v1670 = vunpack.c.h.b16 %v1586
        %v1671 = vunpack.c.l.b16 %v1587
        %v1672 = vunpack.c.l.b16 %v1588
        %v1673 = vunpack.c.h.b16 %v1588
        %v1674 = vunpack.c.l.b16 %v1589
        %v1675 = vunpack.c.l.b16 %v1590
        %v1676 = vunpack.c.h.b16 %v1590
        %v1677 = vunpack.c.l.b16 %v1591
        %v1678 = vunpack.c.l.b16 %v1592
        %v1679 = vunpack.c.h.b16 %v1592
        %v1680 = vunpack.c.l.b16 %v1593
        %v1681 = vunpack.c.l.b16 %v1594
        %v1682 = vunpack.c.h.b16 %v1594
        %v1683 = vunpack.c.l.b16 %v1595
        %v1684 = vunpack.c.l.b16 %v1596
        %v1685 = vunpack.c.h.b16 %v1596
        %v1686 = vunpack.c.l.b16 %v1597
        %v1687 = vpack.c.b16 %v1642, %v1639
        %v1688 = vpack.c.b16 %v1643, %v1640
        %v1689 = vpack.c.b16 %v1644, %v1641
        %v1690 = vpack.c.b16 %v1648, %v1645
        %v1691 = vpack.c.b16 %v1649, %v1646
        %v1692 = vpack.c.b16 %v1650, %v1647
        %v1693 = vpack.c.b16 %v1654, %v1651
        %v1694 = vpack.c.b16 %v1655, %v1652
        %v1695 = vpack.c.b16 %v1656, %v1653
        %v1696 = vpack.c.b16 %v1660, %v1657
        %v1697 = vpack.c.b16 %v1661, %v1658
        %v1698 = vpack.c.b16 %v1662, %v1659
        %v1699 = vpack.c.b16 %v1666, %v1663
        %v1700 = vpack.c.b16 %v1667, %v1664
        %v1701 = vpack.c.b16 %v1668, %v1665
        %v1702 = vpack.c.b16 %v1672, %v1669
        %v1703 = vpack.c.b16 %v1673, %v1670
        %v1704 = vpack.c.b16 %v1674, %v1671
        %v1705 = vpack.c.b16 %v1678, %v1675
        %v1706 = vpack.c.b16 %v1679, %v1676
        %v1707 = vpack.c.b16 %v1680, %v1677
        %v1708 = vpack.c.b16 %v1684, %v1681
        %v1709 = vpack.c.b16 %v1685, %v1682
        %v1710 = vpack.c.b16 %v1686, %v1683
        %1735 = vmatpush.bf16.msra.mxu0 %v1708
        %1736 = vmatpush.bf16.msra.mxu0 %v1705
        %1737 = vmatpush.bf16.msra.mxu0 %v1702
        %1738 = vmatpush.bf16.msra.mxu0 %v1699
        %1739 = vmatpush.bf16.msra.mxu0 %v1696
        %1740 = vmatpush.bf16.msra.mxu0 %v1693
        %1741 = vmatpush.bf16.msra.mxu0 %v1690
        %1742 = vmatpush.bf16.msra.mxu0 %v1687
        %1743 = vmatmul.bf16.gmra.mxu0 %v1598
        %v1744 = vpop.f32.mrf.mxu0
        %v1745 = vadd.f32 %v1601, %v1744
        %v1746 = vpop.f32.mrf.mxu0
        %v1747 = vadd.f32 %v1601, %v1746
        %1748 = vdwg.mxu0
        %1749 = vmatpush.bf16.msra.mxu0 %v1709
        %1750 = vmatpush.bf16.msra.mxu0 %v1706
        %1751 = vmatpush.bf16.msra.mxu0 %v1703
        %1752 = vmatpush.bf16.msra.mxu0 %v1700
        %1753 = vmatpush.bf16.msra.mxu0 %v1697
        %1754 = vmatpush.bf16.msra.mxu0 %v1694
        %1755 = vmatpush.bf16.msra.mxu0 %v1691
        %1756 = vmatpush.bf16.msra.mxu0 %v1688
        %1757 = vmatmul.bf16.gmra.mxu0 %v1598
        %v1758 = vpop.f32.mrf.mxu0
        %v1759 = vadd.f32 %v1602, %v1758
        %v1760 = vpop.f32.mrf.mxu0
        %v1761 = vadd.f32 %v1602, %v1760
        %1762 = vdwg.mxu0
        %1763 = vmatpush.bf16.msra.mxu0 %v1710
        %1764 = vmatpush.bf16.msra.mxu0 %v1707
        %1765 = vmatpush.bf16.msra.mxu0 %v1704
        %1766 = vmatpush.bf16.msra.mxu0 %v1701
        %1767 = vmatpush.bf16.msra.mxu0 %v1698
        %1768 = vmatpush.bf16.msra.mxu0 %v1695
        %1769 = vmatpush.bf16.msra.mxu0 %v1692
        %1770 = vmatpush.bf16.msra.mxu0 %v1689
        %1771 = vmatmul.bf16.gmra.mxu0 %v1598
        %v1772 = vpop.f32.mrf.mxu0
        %v1773 = vadd.f32 %v1603, %v1772
        %v1774 = vpop.f32.mrf.mxu0
        %v1775 = vadd.f32 %v1603, %v1774
        %1776 = vdwg.mxu0
        %1779 = vrot.lane.b32.xlu0 %v1745, 112
        %v1780 = vpop.permute.xlu0 %1779
        %1781 = vrot.lane.b32.xlu0 %v1747, 112
        %v1782 = vpop.permute.xlu0 %1781
        %1785 = vrot.lane.b32.xlu0 %v1745, 96
        %v1786 = vpop.permute.xlu0 %1785
        %1787 = vrot.lane.b32.xlu0 %v1747, 96
        %v1788 = vpop.permute.xlu0 %1787
        %1791 = vrot.lane.b32.xlu0 %v1745, 80
        %v1792 = vpop.permute.xlu0 %1791
        %1793 = vrot.lane.b32.xlu0 %v1747, 80
        %v1794 = vpop.permute.xlu0 %1793
        %1797 = vrot.lane.b32.xlu0 %v1745, 64
        %v1798 = vpop.permute.xlu0 %1797
        %1799 = vrot.lane.b32.xlu0 %v1747, 64
        %v1800 = vpop.permute.xlu0 %1799
        %1803 = vrot.lane.b32.xlu0 %v1745, 48
        %v1804 = vpop.permute.xlu0 %1803
        %1805 = vrot.lane.b32.xlu0 %v1747, 48
        %v1806 = vpop.permute.xlu0 %1805
        %1809 = vrot.lane.b32.xlu0 %v1745, 32
        %v1810 = vpop.permute.xlu0 %1809
        %1811 = vrot.lane.b32.xlu0 %v1747, 32
        %v1812 = vpop.permute.xlu0 %1811
        %1815 = vrot.lane.b32.xlu0 %v1745, 16
        %v1816 = vpop.permute.xlu0 %1815
        %1817 = vrot.lane.b32.xlu0 %v1747, 16
        %v1818 = vpop.permute.xlu0 %1817
        %v1821 = vpack.c.bf16 %v1745, %v1745
        %v1822 = vpack.c.bf16 %v1747, %v1747
        %v1823 = vpack.c.bf16 %v1780, %v1780
        %v1824 = vpack.c.bf16 %v1782, %v1782
        %v1825 = vpack.c.bf16 %v1786, %v1786
        %v1826 = vpack.c.bf16 %v1788, %v1788
        %v1827 = vpack.c.bf16 %v1792, %v1792
        %v1828 = vpack.c.bf16 %v1794, %v1794
        %v1829 = vpack.c.bf16 %v1798, %v1798
        %v1830 = vpack.c.bf16 %v1800, %v1800
        %v1831 = vpack.c.bf16 %v1804, %v1804
        %v1832 = vpack.c.bf16 %v1806, %v1806
        %v1833 = vpack.c.bf16 %v1810, %v1810
        %v1834 = vpack.c.bf16 %v1812, %v1812
        %v1835 = vpack.c.bf16 %v1816, %v1816
        %v1836 = vpack.c.bf16 %v1818, %v1818
        %1839 = vrot.lane.b32.xlu0 %v1759, 112
        %v1840 = vpop.permute.xlu0 %1839
        %1841 = vrot.lane.b32.xlu0 %v1761, 112
        %v1842 = vpop.permute.xlu0 %1841
        %1845 = vrot.lane.b32.xlu0 %v1759, 96
        %v1846 = vpop.permute.xlu0 %1845
        %1847 = vrot.lane.b32.xlu0 %v1761, 96
        %v1848 = vpop.permute.xlu0 %1847
        %1851 = vrot.lane.b32.xlu0 %v1759, 80
        %v1852 = vpop.permute.xlu0 %1851
        %1853 = vrot.lane.b32.xlu0 %v1761, 80
        %v1854 = vpop.permute.xlu0 %1853
        %1857 = vrot.lane.b32.xlu0 %v1759, 64
        %v1858 = vpop.permute.xlu0 %1857
        %1859 = vrot.lane.b32.xlu0 %v1761, 64
        %v1860 = vpop.permute.xlu0 %1859
        %1863 = vrot.lane.b32.xlu0 %v1759, 48
        %v1864 = vpop.permute.xlu0 %1863
        %1865 = vrot.lane.b32.xlu0 %v1761, 48
        %v1866 = vpop.permute.xlu0 %1865
        %1869 = vrot.lane.b32.xlu0 %v1759, 32
        %v1870 = vpop.permute.xlu0 %1869
        %1871 = vrot.lane.b32.xlu0 %v1761, 32
        %v1872 = vpop.permute.xlu0 %1871
        %1875 = vrot.lane.b32.xlu0 %v1759, 16
        %v1876 = vpop.permute.xlu0 %1875
        %1877 = vrot.lane.b32.xlu0 %v1761, 16
        %v1878 = vpop.permute.xlu0 %1877
        %v1881 = vpack.c.bf16 %v1759, %v1759
        %v1882 = vpack.c.bf16 %v1761, %v1761
        %v1883 = vpack.c.bf16 %v1840, %v1840
        %v1884 = vpack.c.bf16 %v1842, %v1842
        %v1885 = vpack.c.bf16 %v1846, %v1846
        %v1886 = vpack.c.bf16 %v1848, %v1848
        %v1887 = vpack.c.bf16 %v1852, %v1852
        %v1888 = vpack.c.bf16 %v1854, %v1854
        %v1889 = vpack.c.bf16 %v1858, %v1858
        %v1890 = vpack.c.bf16 %v1860, %v1860
        %v1891 = vpack.c.bf16 %v1864, %v1864
        %v1892 = vpack.c.bf16 %v1866, %v1866
        %v1893 = vpack.c.bf16 %v1870, %v1870
        %v1894 = vpack.c.bf16 %v1872, %v1872
        %v1895 = vpack.c.bf16 %v1876, %v1876
        %v1896 = vpack.c.bf16 %v1878, %v1878
        %1899 = vrot.lane.b32.xlu0 %v1773, 112
        %v1900 = vpop.permute.xlu0 %1899
        %1901 = vrot.lane.b32.xlu0 %v1775, 112
        %v1902 = vpop.permute.xlu0 %1901
        %1905 = vrot.lane.b32.xlu0 %v1773, 96
        %v1906 = vpop.permute.xlu0 %1905
        %1907 = vrot.lane.b32.xlu0 %v1775, 96
        %v1908 = vpop.permute.xlu0 %1907
        %1911 = vrot.lane.b32.xlu0 %v1773, 80
        %v1912 = vpop.permute.xlu0 %1911
        %1913 = vrot.lane.b32.xlu0 %v1775, 80
        %v1914 = vpop.permute.xlu0 %1913
        %1917 = vrot.lane.b32.xlu0 %v1773, 64
        %v1918 = vpop.permute.xlu0 %1917
        %1919 = vrot.lane.b32.xlu0 %v1775, 64
        %v1920 = vpop.permute.xlu0 %1919
        %1923 = vrot.lane.b32.xlu0 %v1773, 48
        %v1924 = vpop.permute.xlu0 %1923
        %1925 = vrot.lane.b32.xlu0 %v1775, 48
        %v1926 = vpop.permute.xlu0 %1925
        %1929 = vrot.lane.b32.xlu0 %v1773, 32
        %v1930 = vpop.permute.xlu0 %1929
        %1931 = vrot.lane.b32.xlu0 %v1775, 32
        %v1932 = vpop.permute.xlu0 %1931
        %1935 = vrot.lane.b32.xlu0 %v1773, 16
        %v1936 = vpop.permute.xlu0 %1935
        %1937 = vrot.lane.b32.xlu0 %v1775, 16
        %v1938 = vpop.permute.xlu0 %1937
        %v1941 = vpack.c.bf16 %v1773, %v1773
        %v1942 = vpack.c.bf16 %v1775, %v1775
        %v1943 = vpack.c.bf16 %v1900, %v1900
        %v1944 = vpack.c.bf16 %v1902, %v1902
        %v1945 = vpack.c.bf16 %v1906, %v1906
        %v1946 = vpack.c.bf16 %v1908, %v1908
        %v1947 = vpack.c.bf16 %v1912, %v1912
        %v1948 = vpack.c.bf16 %v1914, %v1914
        %v1949 = vpack.c.bf16 %v1918, %v1918
        %v1950 = vpack.c.bf16 %v1920, %v1920
        %v1951 = vpack.c.bf16 %v1924, %v1924
        %v1952 = vpack.c.bf16 %v1926, %v1926
        %v1953 = vpack.c.bf16 %v1930, %v1930
        %v1954 = vpack.c.bf16 %v1932, %v1932
        %v1955 = vpack.c.bf16 %v1936, %v1936
        %v1956 = vpack.c.bf16 %v1938, %v1938
        %vm1957 = vcmask 130048
        %v1959 = vsel %vm1957, %v1821, 0
        %v1962 = vsel %vm1957, %v1881, 0
        %1964 = vmatpush.bf16.xpose.msra.mxu0 0
        %1965 = vmatpush.bf16.xpose.msra.mxu0 0
        %1966 = vmatpush.bf16.xpose.msra.mxu0 0
        %1967 = vmatpush.bf16.xpose.msra.mxu0 0
        %1968 = vmatpush.bf16.xpose.msra.mxu0 0
        %1969 = vmatpush.bf16.xpose.msra.mxu0 0
        %1970 = vmatpush.bf16.xpose.msra.mxu0 0
        %1971 = vmatpush.bf16.xpose.msra.mxu0 %v1962
        %1972 = vmatmul.bf16.gmra.mxu0 %v1959
        %v1973 = vpop.f32.mrf.mxu0
        %v1974 = vadd.f32 0.0, %v1973
        %v1975 = vpop.f32.mrf.mxu0
        %1976 = vdwg.mxu0
        %v1978 = vsel %vm1957, %v1822, 0
        %v1981 = vsel %vm1957, %v1882, 0
        %1983 = vmatpush.bf16.xpose.msra.mxu0 0
        %1984 = vmatpush.bf16.xpose.msra.mxu0 0
        %1985 = vmatpush.bf16.xpose.msra.mxu0 0
        %1986 = vmatpush.bf16.xpose.msra.mxu0 0
        %1987 = vmatpush.bf16.xpose.msra.mxu0 0
        %1988 = vmatpush.bf16.xpose.msra.mxu0 0
        %1989 = vmatpush.bf16.xpose.msra.mxu0 0
        %1990 = vmatpush.bf16.xpose.msra.mxu0 %v1981
        %1991 = vmatmul.bf16.gmra.mxu0 %v1978
        %v1992 = vpop.f32.mrf.mxu0
        %v1993 = vadd.f32 0.0, %v1992
        %v1994 = vpop.f32.mrf.mxu0
        %1995 = vdwg.mxu0
        %v1997 = vsel %vm1957, %v1823, 0
        %v2000 = vsel %vm1957, %v1883, 0
        %2002 = vmatpush.bf16.xpose.msra.mxu0 0
        %2003 = vmatpush.bf16.xpose.msra.mxu0 0
        %2004 = vmatpush.bf16.xpose.msra.mxu0 0
        %2005 = vmatpush.bf16.xpose.msra.mxu0 0
        %2006 = vmatpush.bf16.xpose.msra.mxu0 0
        %2007 = vmatpush.bf16.xpose.msra.mxu0 0
        %2008 = vmatpush.bf16.xpose.msra.mxu0 0
        %2009 = vmatpush.bf16.xpose.msra.mxu0 %v2000
        %2010 = vmatmul.bf16.gmra.mxu0 %v1997
        %v2011 = vpop.f32.mrf.mxu0
        %v2012 = vadd.f32 0.0, %v2011
        %v2013 = vpop.f32.mrf.mxu0
        %2014 = vdwg.mxu0
        %v2016 = vsel %vm1957, %v1824, 0
        %v2019 = vsel %vm1957, %v1884, 0
        %2021 = vmatpush.bf16.xpose.msra.mxu0 0
        %2022 = vmatpush.bf16.xpose.msra.mxu0 0
        %2023 = vmatpush.bf16.xpose.msra.mxu0 0
        %2024 = vmatpush.bf16.xpose.msra.mxu0 0
        %2025 = vmatpush.bf16.xpose.msra.mxu0 0
        %2026 = vmatpush.bf16.xpose.msra.mxu0 0
        %2027 = vmatpush.bf16.xpose.msra.mxu0 0
        %2028 = vmatpush.bf16.xpose.msra.mxu0 %v2019
        %2029 = vmatmul.bf16.gmra.mxu0 %v2016
        %v2030 = vpop.f32.mrf.mxu0
        %v2031 = vadd.f32 0.0, %v2030
        %v2032 = vpop.f32.mrf.mxu0
        %2033 = vdwg.mxu0
        %v2035 = vsel %vm1957, %v1825, 0
        %v2038 = vsel %vm1957, %v1885, 0
        %2040 = vmatpush.bf16.xpose.msra.mxu0 0
        %2041 = vmatpush.bf16.xpose.msra.mxu0 0
        %2042 = vmatpush.bf16.xpose.msra.mxu0 0
        %2043 = vmatpush.bf16.xpose.msra.mxu0 0
        %2044 = vmatpush.bf16.xpose.msra.mxu0 0
        %2045 = vmatpush.bf16.xpose.msra.mxu0 0
        %2046 = vmatpush.bf16.xpose.msra.mxu0 0
        %2047 = vmatpush.bf16.xpose.msra.mxu0 %v2038
        %2048 = vmatmul.bf16.gmra.mxu0 %v2035
        %v2049 = vpop.f32.mrf.mxu0
        %v2050 = vadd.f32 0.0, %v2049
        %v2051 = vpop.f32.mrf.mxu0
        %2052 = vdwg.mxu0
        %v2054 = vsel %vm1957, %v1826, 0
        %v2057 = vsel %vm1957, %v1886, 0
        %2059 = vmatpush.bf16.xpose.msra.mxu0 0
        %2060 = vmatpush.bf16.xpose.msra.mxu0 0
        %2061 = vmatpush.bf16.xpose.msra.mxu0 0
        %2062 = vmatpush.bf16.xpose.msra.mxu0 0
        %2063 = vmatpush.bf16.xpose.msra.mxu0 0
        %2064 = vmatpush.bf16.xpose.msra.mxu0 0
        %2065 = vmatpush.bf16.xpose.msra.mxu0 0
        %2066 = vmatpush.bf16.xpose.msra.mxu0 %v2057
        %2067 = vmatmul.bf16.gmra.mxu0 %v2054
        %v2068 = vpop.f32.mrf.mxu0
        %v2069 = vadd.f32 0.0, %v2068
        %v2070 = vpop.f32.mrf.mxu0
        %2071 = vdwg.mxu0
        %v2073 = vsel %vm1957, %v1827, 0
        %v2076 = vsel %vm1957, %v1887, 0
        %2078 = vmatpush.bf16.xpose.msra.mxu0 0
        %2079 = vmatpush.bf16.xpose.msra.mxu0 0
        %2080 = vmatpush.bf16.xpose.msra.mxu0 0
        %2081 = vmatpush.bf16.xpose.msra.mxu0 0
        %2082 = vmatpush.bf16.xpose.msra.mxu0 0
        %2083 = vmatpush.bf16.xpose.msra.mxu0 0
        %2084 = vmatpush.bf16.xpose.msra.mxu0 0
        %2085 = vmatpush.bf16.xpose.msra.mxu0 %v2076
        %2086 = vmatmul.bf16.gmra.mxu0 %v2073
        %v2087 = vpop.f32.mrf.mxu0
        %v2088 = vadd.f32 0.0, %v2087
        %v2089 = vpop.f32.mrf.mxu0
        %2090 = vdwg.mxu0
        %v2092 = vsel %vm1957, %v1828, 0
        %v2095 = vsel %vm1957, %v1888, 0
        %2097 = vmatpush.bf16.xpose.msra.mxu0 0
        %2098 = vmatpush.bf16.xpose.msra.mxu0 0
        %2099 = vmatpush.bf16.xpose.msra.mxu0 0
        %2100 = vmatpush.bf16.xpose.msra.mxu0 0
        %2101 = vmatpush.bf16.xpose.msra.mxu0 0
        %2102 = vmatpush.bf16.xpose.msra.mxu0 0
        %2103 = vmatpush.bf16.xpose.msra.mxu0 0
        %2104 = vmatpush.bf16.xpose.msra.mxu0 %v2095
        %2105 = vmatmul.bf16.gmra.mxu0 %v2092
        %v2106 = vpop.f32.mrf.mxu0
        %v2107 = vadd.f32 0.0, %v2106
        %v2108 = vpop.f32.mrf.mxu0
        %2109 = vdwg.mxu0
        %v2111 = vsel %vm1957, %v1829, 0
        %v2114 = vsel %vm1957, %v1889, 0
        %2116 = vmatpush.bf16.xpose.msra.mxu0 0
        %2117 = vmatpush.bf16.xpose.msra.mxu0 0
        %2118 = vmatpush.bf16.xpose.msra.mxu0 0
        %2119 = vmatpush.bf16.xpose.msra.mxu0 0
        %2120 = vmatpush.bf16.xpose.msra.mxu0 0
        %2121 = vmatpush.bf16.xpose.msra.mxu0 0
        %2122 = vmatpush.bf16.xpose.msra.mxu0 0
        %2123 = vmatpush.bf16.xpose.msra.mxu0 %v2114
        %2124 = vmatmul.bf16.gmra.mxu0 %v2111
        %v2125 = vpop.f32.mrf.mxu0
        %v2126 = vadd.f32 0.0, %v2125
        %v2127 = vpop.f32.mrf.mxu0
        %2128 = vdwg.mxu0
        %v2130 = vsel %vm1957, %v1830, 0
        %v2133 = vsel %vm1957, %v1890, 0
        %2135 = vmatpush.bf16.xpose.msra.mxu0 0
        %2136 = vmatpush.bf16.xpose.msra.mxu0 0
        %2137 = vmatpush.bf16.xpose.msra.mxu0 0
        %2138 = vmatpush.bf16.xpose.msra.mxu0 0
        %2139 = vmatpush.bf16.xpose.msra.mxu0 0
        %2140 = vmatpush.bf16.xpose.msra.mxu0 0
        %2141 = vmatpush.bf16.xpose.msra.mxu0 0
        %2142 = vmatpush.bf16.xpose.msra.mxu0 %v2133
        %2143 = vmatmul.bf16.gmra.mxu0 %v2130
        %v2144 = vpop.f32.mrf.mxu0
        %v2145 = vadd.f32 0.0, %v2144
        %v2146 = vpop.f32.mrf.mxu0
        %2147 = vdwg.mxu0
        %v2149 = vsel %vm1957, %v1831, 0
        %v2152 = vsel %vm1957, %v1891, 0
        %2154 = vmatpush.bf16.xpose.msra.mxu0 0
        %2155 = vmatpush.bf16.xpose.msra.mxu0 0
        %2156 = vmatpush.bf16.xpose.msra.mxu0 0
        %2157 = vmatpush.bf16.xpose.msra.mxu0 0
        %2158 = vmatpush.bf16.xpose.msra.mxu0 0
        %2159 = vmatpush.bf16.xpose.msra.mxu0 0
        %2160 = vmatpush.bf16.xpose.msra.mxu0 0
        %2161 = vmatpush.bf16.xpose.msra.mxu0 %v2152
        %2162 = vmatmul.bf16.gmra.mxu0 %v2149
        %v2163 = vpop.f32.mrf.mxu0
        %v2164 = vadd.f32 0.0, %v2163
        %v2165 = vpop.f32.mrf.mxu0
        %2166 = vdwg.mxu0
        %v2168 = vsel %vm1957, %v1832, 0
        %v2171 = vsel %vm1957, %v1892, 0
        %2173 = vmatpush.bf16.xpose.msra.mxu0 0
        %2174 = vmatpush.bf16.xpose.msra.mxu0 0
        %2175 = vmatpush.bf16.xpose.msra.mxu0 0
        %2176 = vmatpush.bf16.xpose.msra.mxu0 0
        %2177 = vmatpush.bf16.xpose.msra.mxu0 0
        %2178 = vmatpush.bf16.xpose.msra.mxu0 0
        %2179 = vmatpush.bf16.xpose.msra.mxu0 0
        %2180 = vmatpush.bf16.xpose.msra.mxu0 %v2171
        %2181 = vmatmul.bf16.gmra.mxu0 %v2168
        %v2182 = vpop.f32.mrf.mxu0
        %v2183 = vadd.f32 0.0, %v2182
        %v2184 = vpop.f32.mrf.mxu0
        %2185 = vdwg.mxu0
        %v2187 = vsel %vm1957, %v1833, 0
        %v2190 = vsel %vm1957, %v1893, 0
        %2192 = vmatpush.bf16.xpose.msra.mxu0 0
        %2193 = vmatpush.bf16.xpose.msra.mxu0 0
        %2194 = vmatpush.bf16.xpose.msra.mxu0 0
        %2195 = vmatpush.bf16.xpose.msra.mxu0 0
        %2196 = vmatpush.bf16.xpose.msra.mxu0 0
        %2197 = vmatpush.bf16.xpose.msra.mxu0 0
        %2198 = vmatpush.bf16.xpose.msra.mxu0 0
        %2199 = vmatpush.bf16.xpose.msra.mxu0 %v2190
        %2200 = vmatmul.bf16.gmra.mxu0 %v2187
        %v2201 = vpop.f32.mrf.mxu0
        %v2202 = vadd.f32 0.0, %v2201
        %v2203 = vpop.f32.mrf.mxu0
        %2204 = vdwg.mxu0
        %v2206 = vsel %vm1957, %v1834, 0
        %v2209 = vsel %vm1957, %v1894, 0
        %2211 = vmatpush.bf16.xpose.msra.mxu0 0
        %2212 = vmatpush.bf16.xpose.msra.mxu0 0
        %2213 = vmatpush.bf16.xpose.msra.mxu0 0
        %2214 = vmatpush.bf16.xpose.msra.mxu0 0
        %2215 = vmatpush.bf16.xpose.msra.mxu0 0
        %2216 = vmatpush.bf16.xpose.msra.mxu0 0
        %2217 = vmatpush.bf16.xpose.msra.mxu0 0
        %2218 = vmatpush.bf16.xpose.msra.mxu0 %v2209
        %2219 = vmatmul.bf16.gmra.mxu0 %v2206
        %v2220 = vpop.f32.mrf.mxu0
        %v2221 = vadd.f32 0.0, %v2220
        %v2222 = vpop.f32.mrf.mxu0
        %2223 = vdwg.mxu0
        %v2225 = vsel %vm1957, %v1835, 0
        %v2228 = vsel %vm1957, %v1895, 0
        %2230 = vmatpush.bf16.xpose.msra.mxu0 0
        %2231 = vmatpush.bf16.xpose.msra.mxu0 0
        %2232 = vmatpush.bf16.xpose.msra.mxu0 0
        %2233 = vmatpush.bf16.xpose.msra.mxu0 0
        %2234 = vmatpush.bf16.xpose.msra.mxu0 0
        %2235 = vmatpush.bf16.xpose.msra.mxu0 0
        %2236 = vmatpush.bf16.xpose.msra.mxu0 0
        %2237 = vmatpush.bf16.xpose.msra.mxu0 %v2228
        %2238 = vmatmul.bf16.gmra.mxu0 %v2225
        %v2239 = vpop.f32.mrf.mxu0
        %v2240 = vadd.f32 0.0, %v2239
        %v2241 = vpop.f32.mrf.mxu0
        %2242 = vdwg.mxu0
        %v2244 = vsel %vm1957, %v1836, 0
        %v2247 = vsel %vm1957, %v1896, 0
        %2249 = vmatpush.bf16.xpose.msra.mxu0 0
        %2250 = vmatpush.bf16.xpose.msra.mxu0 0
        %2251 = vmatpush.bf16.xpose.msra.mxu0 0
        %2252 = vmatpush.bf16.xpose.msra.mxu0 0
        %2253 = vmatpush.bf16.xpose.msra.mxu0 0
        %2254 = vmatpush.bf16.xpose.msra.mxu0 0
        %2255 = vmatpush.bf16.xpose.msra.mxu0 0
        %2256 = vmatpush.bf16.xpose.msra.mxu0 %v2247
        %2257 = vmatmul.bf16.gmra.mxu0 %v2244
        %v2258 = vpop.f32.mrf.mxu0
        %v2259 = vadd.f32 0.0, %v2258
        %v2260 = vpop.f32.mrf.mxu0
        %2261 = vdwg.mxu0
        %v2264 = vperm.slane %v1063, 0
        %v2265 = vperm.slane %v1064, 0
        %v2268 = vadd.f32 %v1974, %v2264
        %v2269 = vadd.f32 %v1993, %v2265
        %v2270 = vadd.f32 %v2012, %v2264
        %v2271 = vadd.f32 %v2031, %v2265
        %v2272 = vadd.f32 %v2050, %v2264
        %v2273 = vadd.f32 %v2069, %v2265
        %v2274 = vadd.f32 %v2088, %v2264
        %v2275 = vadd.f32 %v2107, %v2265
        %v2276 = vadd.f32 %v2126, %v2264
        %v2277 = vadd.f32 %v2145, %v2265
        %v2278 = vadd.f32 %v2164, %v2264
        %v2279 = vadd.f32 %v2183, %v2265
        %v2280 = vadd.f32 %v2202, %v2264
        %v2281 = vadd.f32 %v2221, %v2265
        %v2282 = vadd.f32 %v2240, %v2264
        %v2283 = vadd.f32 %v2259, %v2265
        %vm2284 = vcmask 64512
        %v2285 = vsel %vm2284, %v2268, -inf
        %2286 = vmax.xlane.f32.xlu0 %v2285
        %v2287 = vpop.xlane.xlu0 %2286
        %v2288 = vsel %vm2284, %v2269, -inf
        %2289 = vmax.xlane.f32.xlu0 %v2288
        %v2290 = vpop.xlane.xlu0 %2289
        %v2291 = vsel %vm2284, %v2270, -inf
        %2292 = vmax.xlane.f32.xlu0 %v2291
        %v2293 = vpop.xlane.xlu0 %2292
        %v2294 = vsel %vm2284, %v2271, -inf
        %2295 = vmax.xlane.f32.xlu0 %v2294
        %v2296 = vpop.xlane.xlu0 %2295
        %v2297 = vsel %vm2284, %v2272, -inf
        %2298 = vmax.xlane.f32.xlu0 %v2297
        %v2299 = vpop.xlane.xlu0 %2298
        %v2300 = vsel %vm2284, %v2273, -inf
        %2301 = vmax.xlane.f32.xlu0 %v2300
        %v2302 = vpop.xlane.xlu0 %2301
        %v2303 = vsel %vm2284, %v2274, -inf
        %2304 = vmax.xlane.f32.xlu0 %v2303
        %v2305 = vpop.xlane.xlu0 %2304
        %v2306 = vsel %vm2284, %v2275, -inf
        %2307 = vmax.xlane.f32.xlu0 %v2306
        %v2308 = vpop.xlane.xlu0 %2307
        %v2309 = vsel %vm2284, %v2276, -inf
        %2310 = vmax.xlane.f32.xlu0 %v2309
        %v2311 = vpop.xlane.xlu0 %2310
        %v2312 = vsel %vm2284, %v2277, -inf
        %2313 = vmax.xlane.f32.xlu0 %v2312
        %v2314 = vpop.xlane.xlu0 %2313
        %v2315 = vsel %vm2284, %v2278, -inf
        %2316 = vmax.xlane.f32.xlu0 %v2315
        %v2317 = vpop.xlane.xlu0 %2316
        %v2318 = vsel %vm2284, %v2279, -inf
        %2319 = vmax.xlane.f32.xlu0 %v2318
        %v2320 = vpop.xlane.xlu0 %2319
        %v2321 = vsel %vm2284, %v2280, -inf
        %2322 = vmax.xlane.f32.xlu0 %v2321
        %v2323 = vpop.xlane.xlu0 %2322
        %v2324 = vsel %vm2284, %v2281, -inf
        %2325 = vmax.xlane.f32.xlu0 %v2324
        %v2326 = vpop.xlane.xlu0 %2325
        %v2327 = vsel %vm2284, %v2282, -inf
        %2328 = vmax.xlane.f32.xlu0 %v2327
        %v2329 = vpop.xlane.xlu0 %2328
        %v2330 = vsel %vm2284, %v2283, -inf
        %2331 = vmax.xlane.f32.xlu0 %v2330
        %v2332 = vpop.xlane.xlu0 %2331
        %v2333 = vsub.f32 %v2268, %v2287
        %v2334 = vsub.f32 %v2269, %v2290
        %v2335 = vsub.f32 %v2270, %v2293
        %v2336 = vsub.f32 %v2271, %v2296
        %v2337 = vsub.f32 %v2272, %v2299
        %v2338 = vsub.f32 %v2273, %v2302
        %v2339 = vsub.f32 %v2274, %v2305
        %v2340 = vsub.f32 %v2275, %v2308
        %v2341 = vsub.f32 %v2276, %v2311
        %v2342 = vsub.f32 %v2277, %v2314
        %v2343 = vsub.f32 %v2278, %v2317
        %v2344 = vsub.f32 %v2279, %v2320
        %v2345 = vsub.f32 %v2280, %v2323
        %v2346 = vsub.f32 %v2281, %v2326
        %v2347 = vsub.f32 %v2282, %v2329
        %v2348 = vsub.f32 %v2283, %v2332
        %v2349 = vmul.f32 %v2333, 1.442695
        %v2350 = vpow.pop %v2349
        %v2351 = vmul.f32 %v2334, 1.442695
        %v2352 = vpow.pop %v2351
        %v2353 = vmul.f32 %v2335, 1.442695
        %v2354 = vpow.pop %v2353
        %v2355 = vmul.f32 %v2336, 1.442695
        %v2356 = vpow.pop %v2355
        %v2357 = vmul.f32 %v2337, 1.442695
        %v2358 = vpow.pop %v2357
        %v2359 = vmul.f32 %v2338, 1.442695
        %v2360 = vpow.pop %v2359
        %v2361 = vmul.f32 %v2339, 1.442695
        %v2362 = vpow.pop %v2361
        %v2363 = vmul.f32 %v2340, 1.442695
        %v2364 = vpow.pop %v2363
        %v2365 = vmul.f32 %v2341, 1.442695
        %v2366 = vpow.pop %v2365
        %v2367 = vmul.f32 %v2342, 1.442695
        %v2368 = vpow.pop %v2367
        %v2369 = vmul.f32 %v2343, 1.442695
        %v2370 = vpow.pop %v2369
        %v2371 = vmul.f32 %v2344, 1.442695
        %v2372 = vpow.pop %v2371
        %v2373 = vmul.f32 %v2345, 1.442695
        %v2374 = vpow.pop %v2373
        %v2375 = vmul.f32 %v2346, 1.442695
        %v2376 = vpow.pop %v2375
        %v2377 = vmul.f32 %v2347, 1.442695
        %v2378 = vpow.pop %v2377
        %v2379 = vmul.f32 %v2348, 1.442695
        %v2380 = vpow.pop %v2379
        %v2381 = vsel %vm2284, %v2350, 0.0
        %2382 = vadd.xlane.f32.xlu0 %v2381
        %v2383 = vpop.xlane.xlu0 %2382
        %v2384 = vsel %vm2284, %v2352, 0.0
        %2385 = vadd.xlane.f32.xlu0 %v2384
        %v2386 = vpop.xlane.xlu0 %2385
        %v2387 = vsel %vm2284, %v2354, 0.0
        %2388 = vadd.xlane.f32.xlu0 %v2387
        %v2389 = vpop.xlane.xlu0 %2388
        %v2390 = vsel %vm2284, %v2356, 0.0
        %2391 = vadd.xlane.f32.xlu0 %v2390
        %v2392 = vpop.xlane.xlu0 %2391
        %v2393 = vsel %vm2284, %v2358, 0.0
        %2394 = vadd.xlane.f32.xlu0 %v2393
        %v2395 = vpop.xlane.xlu0 %2394
        %v2396 = vsel %vm2284, %v2360, 0.0
        %2397 = vadd.xlane.f32.xlu0 %v2396
        %v2398 = vpop.xlane.xlu0 %2397
        %v2399 = vsel %vm2284, %v2362, 0.0
        %2400 = vadd.xlane.f32.xlu0 %v2399
        %v2401 = vpop.xlane.xlu0 %2400
        %v2402 = vsel %vm2284, %v2364, 0.0
        %2403 = vadd.xlane.f32.xlu0 %v2402
        %v2404 = vpop.xlane.xlu0 %2403
        %v2405 = vsel %vm2284, %v2366, 0.0
        %2406 = vadd.xlane.f32.xlu0 %v2405
        %v2407 = vpop.xlane.xlu0 %2406
        %v2408 = vsel %vm2284, %v2368, 0.0
        %2409 = vadd.xlane.f32.xlu0 %v2408
        %v2410 = vpop.xlane.xlu0 %2409
        %v2411 = vsel %vm2284, %v2370, 0.0
        %2412 = vadd.xlane.f32.xlu0 %v2411
        %v2413 = vpop.xlane.xlu0 %2412
        %v2414 = vsel %vm2284, %v2372, 0.0
        %2415 = vadd.xlane.f32.xlu0 %v2414
        %v2416 = vpop.xlane.xlu0 %2415
        %v2417 = vsel %vm2284, %v2374, 0.0
        %2418 = vadd.xlane.f32.xlu0 %v2417
        %v2419 = vpop.xlane.xlu0 %2418
        %v2420 = vsel %vm2284, %v2376, 0.0
        %2421 = vadd.xlane.f32.xlu0 %v2420
        %v2422 = vpop.xlane.xlu0 %2421
        %v2423 = vsel %vm2284, %v2378, 0.0
        %2424 = vadd.xlane.f32.xlu0 %v2423
        %v2425 = vpop.xlane.xlu0 %2424
        %v2426 = vsel %vm2284, %v2380, 0.0
        %2427 = vadd.xlane.f32.xlu0 %v2426
        %v2428 = vpop.xlane.xlu0 %2427
        %v2429 = vrcp.pop %v2383
        %v2430 = vrcp.pop %v2386
        %v2431 = vrcp.pop %v2389
        %v2432 = vrcp.pop %v2392
        %v2433 = vrcp.pop %v2395
        %v2434 = vrcp.pop %v2398
        %v2435 = vrcp.pop %v2401
        %v2436 = vrcp.pop %v2404
        %v2437 = vrcp.pop %v2407
        %v2438 = vrcp.pop %v2410
        %v2439 = vrcp.pop %v2413
        %v2440 = vrcp.pop %v2416
        %v2441 = vrcp.pop %v2419
        %v2442 = vrcp.pop %v2422
        %v2443 = vrcp.pop %v2425
        %v2444 = vrcp.pop %v2428
        %v2445 = vmul.f32 %v2350, %v2429
        %v2446 = vmul.f32 %v2352, %v2430
        %v2447 = vmul.f32 %v2354, %v2431
        %v2448 = vmul.f32 %v2356, %v2432
        %v2449 = vmul.f32 %v2358, %v2433
        %v2450 = vmul.f32 %v2360, %v2434
        %v2451 = vmul.f32 %v2362, %v2435
        %v2452 = vmul.f32 %v2364, %v2436
        %v2453 = vmul.f32 %v2366, %v2437
        %v2454 = vmul.f32 %v2368, %v2438
        %v2455 = vmul.f32 %v2370, %v2439
        %v2456 = vmul.f32 %v2372, %v2440
        %v2457 = vmul.f32 %v2374, %v2441
        %v2458 = vmul.f32 %v2376, %v2442
        %v2459 = vmul.f32 %v2378, %v2443
        %v2460 = vmul.f32 %v2380, %v2444
        %v2461 = vpack.c.bf16 %v2445, %v2445
        %v2462 = vpack.c.bf16 %v2446, %v2446
        %v2463 = vpack.c.bf16 %v2447, %v2447
        %v2464 = vpack.c.bf16 %v2448, %v2448
        %v2465 = vpack.c.bf16 %v2449, %v2449
        %v2466 = vpack.c.bf16 %v2450, %v2450
        %v2467 = vpack.c.bf16 %v2451, %v2451
        %v2468 = vpack.c.bf16 %v2452, %v2452
        %v2469 = vpack.c.bf16 %v2453, %v2453
        %v2470 = vpack.c.bf16 %v2454, %v2454
        %v2471 = vpack.c.bf16 %v2455, %v2455
        %v2472 = vpack.c.bf16 %v2456, %v2456
        %v2473 = vpack.c.bf16 %v2457, %v2457
        %v2474 = vpack.c.bf16 %v2458, %v2458
        %v2475 = vpack.c.bf16 %v2459, %v2459
        %v2476 = vpack.c.bf16 %v2460, %v2460
        %v2478 = vsel %vm2284, %v2461, 0
        %vm2480 = vcmask 1043456
        %v2482 = vsel %vm2480, %v1941, 0
        %2484 = vmatpush.bf16.msra.mxu0 0
        %2485 = vmatpush.bf16.msra.mxu0 0
        %2486 = vmatpush.bf16.msra.mxu0 0
        %2487 = vmatpush.bf16.msra.mxu0 0
        %2488 = vmatpush.bf16.msra.mxu0 0
        %2489 = vmatpush.bf16.msra.mxu0 0
        %2490 = vmatpush.bf16.msra.mxu0 0
        %2491 = vmatpush.bf16.msra.mxu0 %v2482
        %2492 = vmatmul.bf16.gmra.mxu0 %v2478
        %v2493 = vpop.f32.mrf.mxu0
        %v2494 = vadd.f32 0.0, %v2493
        %v2495 = vpop.f32.mrf.mxu0
        %2496 = vdwg.mxu0
        %v2498 = vsel %vm2284, %v2462, 0
        %v2501 = vsel %vm2480, %v1942, 0
        %2503 = vmatpush.bf16.msra.mxu0 0
        %2504 = vmatpush.bf16.msra.mxu0 0
        %2505 = vmatpush.bf16.msra.mxu0 0
        %2506 = vmatpush.bf16.msra.mxu0 0
        %2507 = vmatpush.bf16.msra.mxu0 0
        %2508 = vmatpush.bf16.msra.mxu0 0
        %2509 = vmatpush.bf16.msra.mxu0 0
        %2510 = vmatpush.bf16.msra.mxu0 %v2501
        %2511 = vmatmul.bf16.gmra.mxu0 %v2498
        %v2512 = vpop.f32.mrf.mxu0
        %v2513 = vadd.f32 0.0, %v2512
        %v2514 = vpop.f32.mrf.mxu0
        %2515 = vdwg.mxu0
        %v2517 = vsel %vm2284, %v2463, 0
        %v2520 = vsel %vm2480, %v1943, 0
        %2522 = vmatpush.bf16.msra.mxu0 0
        %2523 = vmatpush.bf16.msra.mxu0 0
        %2524 = vmatpush.bf16.msra.mxu0 0
        %2525 = vmatpush.bf16.msra.mxu0 0
        %2526 = vmatpush.bf16.msra.mxu0 0
        %2527 = vmatpush.bf16.msra.mxu0 0
        %2528 = vmatpush.bf16.msra.mxu0 0
        %2529 = vmatpush.bf16.msra.mxu0 %v2520
        %2530 = vmatmul.bf16.gmra.mxu0 %v2517
        %v2531 = vpop.f32.mrf.mxu0
        %v2532 = vadd.f32 0.0, %v2531
        %v2533 = vpop.f32.mrf.mxu0
        %2534 = vdwg.mxu0
        %v2536 = vsel %vm2284, %v2464, 0
        %v2539 = vsel %vm2480, %v1944, 0
        %2541 = vmatpush.bf16.msra.mxu0 0
        %2542 = vmatpush.bf16.msra.mxu0 0
        %2543 = vmatpush.bf16.msra.mxu0 0
        %2544 = vmatpush.bf16.msra.mxu0 0
        %2545 = vmatpush.bf16.msra.mxu0 0
        %2546 = vmatpush.bf16.msra.mxu0 0
        %2547 = vmatpush.bf16.msra.mxu0 0
        %2548 = vmatpush.bf16.msra.mxu0 %v2539
        %2549 = vmatmul.bf16.gmra.mxu0 %v2536
        %v2550 = vpop.f32.mrf.mxu0
        %v2551 = vadd.f32 0.0, %v2550
        %v2552 = vpop.f32.mrf.mxu0
        %2553 = vdwg.mxu0
        %v2555 = vsel %vm2284, %v2465, 0
        %v2558 = vsel %vm2480, %v1945, 0
        %2560 = vmatpush.bf16.msra.mxu0 0
        %2561 = vmatpush.bf16.msra.mxu0 0
        %2562 = vmatpush.bf16.msra.mxu0 0
        %2563 = vmatpush.bf16.msra.mxu0 0
        %2564 = vmatpush.bf16.msra.mxu0 0
        %2565 = vmatpush.bf16.msra.mxu0 0
        %2566 = vmatpush.bf16.msra.mxu0 0
        %2567 = vmatpush.bf16.msra.mxu0 %v2558
        %2568 = vmatmul.bf16.gmra.mxu0 %v2555
        %v2569 = vpop.f32.mrf.mxu0
        %v2570 = vadd.f32 0.0, %v2569
        %v2571 = vpop.f32.mrf.mxu0
        %2572 = vdwg.mxu0
        %v2574 = vsel %vm2284, %v2466, 0
        %v2577 = vsel %vm2480, %v1946, 0
        %2579 = vmatpush.bf16.msra.mxu0 0
        %2580 = vmatpush.bf16.msra.mxu0 0
        %2581 = vmatpush.bf16.msra.mxu0 0
        %2582 = vmatpush.bf16.msra.mxu0 0
        %2583 = vmatpush.bf16.msra.mxu0 0
        %2584 = vmatpush.bf16.msra.mxu0 0
        %2585 = vmatpush.bf16.msra.mxu0 0
        %2586 = vmatpush.bf16.msra.mxu0 %v2577
        %2587 = vmatmul.bf16.gmra.mxu0 %v2574
        %v2588 = vpop.f32.mrf.mxu0
        %v2589 = vadd.f32 0.0, %v2588
        %v2590 = vpop.f32.mrf.mxu0
        %2591 = vdwg.mxu0
        %v2593 = vsel %vm2284, %v2467, 0
        %v2596 = vsel %vm2480, %v1947, 0
        %2598 = vmatpush.bf16.msra.mxu0 0
        %2599 = vmatpush.bf16.msra.mxu0 0
        %2600 = vmatpush.bf16.msra.mxu0 0
        %2601 = vmatpush.bf16.msra.mxu0 0
        %2602 = vmatpush.bf16.msra.mxu0 0
        %2603 = vmatpush.bf16.msra.mxu0 0
        %2604 = vmatpush.bf16.msra.mxu0 0
        %2605 = vmatpush.bf16.msra.mxu0 %v2596
        %2606 = vmatmul.bf16.gmra.mxu0 %v2593
        %v2607 = vpop.f32.mrf.mxu0
        %v2608 = vadd.f32 0.0, %v2607
        %v2609 = vpop.f32.mrf.mxu0
        %2610 = vdwg.mxu0
        %v2612 = vsel %vm2284, %v2468, 0
        %v2615 = vsel %vm2480, %v1948, 0
        %2617 = vmatpush.bf16.msra.mxu0 0
        %2618 = vmatpush.bf16.msra.mxu0 0
        %2619 = vmatpush.bf16.msra.mxu0 0
        %2620 = vmatpush.bf16.msra.mxu0 0
        %2621 = vmatpush.bf16.msra.mxu0 0
        %2622 = vmatpush.bf16.msra.mxu0 0
        %2623 = vmatpush.bf16.msra.mxu0 0
        %2624 = vmatpush.bf16.msra.mxu0 %v2615
        %2625 = vmatmul.bf16.gmra.mxu0 %v2612
        %v2626 = vpop.f32.mrf.mxu0
        %v2627 = vadd.f32 0.0, %v2626
        %v2628 = vpop.f32.mrf.mxu0
        %2629 = vdwg.mxu0
        %v2631 = vsel %vm2284, %v2469, 0
        %v2634 = vsel %vm2480, %v1949, 0
        %2636 = vmatpush.bf16.msra.mxu0 0
        %2637 = vmatpush.bf16.msra.mxu0 0
        %2638 = vmatpush.bf16.msra.mxu0 0
        %2639 = vmatpush.bf16.msra.mxu0 0
        %2640 = vmatpush.bf16.msra.mxu0 0
        %2641 = vmatpush.bf16.msra.mxu0 0
        %2642 = vmatpush.bf16.msra.mxu0 0
        %2643 = vmatpush.bf16.msra.mxu0 %v2634
        %2644 = vmatmul.bf16.gmra.mxu0 %v2631
        %v2645 = vpop.f32.mrf.mxu0
        %v2646 = vadd.f32 0.0, %v2645
        %v2647 = vpop.f32.mrf.mxu0
        %2648 = vdwg.mxu0
        %v2650 = vsel %vm2284, %v2470, 0
        %v2653 = vsel %vm2480, %v1950, 0
        %2655 = vmatpush.bf16.msra.mxu0 0
        %2656 = vmatpush.bf16.msra.mxu0 0
        %2657 = vmatpush.bf16.msra.mxu0 0
        %2658 = vmatpush.bf16.msra.mxu0 0
        %2659 = vmatpush.bf16.msra.mxu0 0
        %2660 = vmatpush.bf16.msra.mxu0 0
        %2661 = vmatpush.bf16.msra.mxu0 0
        %2662 = vmatpush.bf16.msra.mxu0 %v2653
        %2663 = vmatmul.bf16.gmra.mxu0 %v2650
        %v2664 = vpop.f32.mrf.mxu0
        %v2665 = vadd.f32 0.0, %v2664
        %v2666 = vpop.f32.mrf.mxu0
        %2667 = vdwg.mxu0
        %v2669 = vsel %vm2284, %v2471, 0
        %v2672 = vsel %vm2480, %v1951, 0
        %2674 = vmatpush.bf16.msra.mxu0 0
        %2675 = vmatpush.bf16.msra.mxu0 0
        %2676 = vmatpush.bf16.msra.mxu0 0
        %2677 = vmatpush.bf16.msra.mxu0 0
        %2678 = vmatpush.bf16.msra.mxu0 0
        %2679 = vmatpush.bf16.msra.mxu0 0
        %2680 = vmatpush.bf16.msra.mxu0 0
        %2681 = vmatpush.bf16.msra.mxu0 %v2672
        %2682 = vmatmul.bf16.gmra.mxu0 %v2669
        %v2683 = vpop.f32.mrf.mxu0
        %v2684 = vadd.f32 0.0, %v2683
        %v2685 = vpop.f32.mrf.mxu0
        %2686 = vdwg.mxu0
        %v2688 = vsel %vm2284, %v2472, 0
        %v2691 = vsel %vm2480, %v1952, 0
        %2693 = vmatpush.bf16.msra.mxu0 0
        %2694 = vmatpush.bf16.msra.mxu0 0
        %2695 = vmatpush.bf16.msra.mxu0 0
        %2696 = vmatpush.bf16.msra.mxu0 0
        %2697 = vmatpush.bf16.msra.mxu0 0
        %2698 = vmatpush.bf16.msra.mxu0 0
        %2699 = vmatpush.bf16.msra.mxu0 0
        %2700 = vmatpush.bf16.msra.mxu0 %v2691
        %2701 = vmatmul.bf16.gmra.mxu0 %v2688
        %v2702 = vpop.f32.mrf.mxu0
        %v2703 = vadd.f32 0.0, %v2702
        %v2704 = vpop.f32.mrf.mxu0
        %2705 = vdwg.mxu0
        %v2707 = vsel %vm2284, %v2473, 0
        %v2710 = vsel %vm2480, %v1953, 0
        %2712 = vmatpush.bf16.msra.mxu0 0
        %2713 = vmatpush.bf16.msra.mxu0 0
        %2714 = vmatpush.bf16.msra.mxu0 0
        %2715 = vmatpush.bf16.msra.mxu0 0
        %2716 = vmatpush.bf16.msra.mxu0 0
        %2717 = vmatpush.bf16.msra.mxu0 0
        %2718 = vmatpush.bf16.msra.mxu0 0
        %2719 = vmatpush.bf16.msra.mxu0 %v2710
        %2720 = vmatmul.bf16.gmra.mxu0 %v2707
        %v2721 = vpop.f32.mrf.mxu0
        %v2722 = vadd.f32 0.0, %v2721
        %v2723 = vpop.f32.mrf.mxu0
        %2724 = vdwg.mxu0
        %v2726 = vsel %vm2284, %v2474, 0
        %v2729 = vsel %vm2480, %v1954, 0
        %2731 = vmatpush.bf16.msra.mxu0 0
        %2732 = vmatpush.bf16.msra.mxu0 0
        %2733 = vmatpush.bf16.msra.mxu0 0
        %2734 = vmatpush.bf16.msra.mxu0 0
        %2735 = vmatpush.bf16.msra.mxu0 0
        %2736 = vmatpush.bf16.msra.mxu0 0
        %2737 = vmatpush.bf16.msra.mxu0 0
        %2738 = vmatpush.bf16.msra.mxu0 %v2729
        %2739 = vmatmul.bf16.gmra.mxu0 %v2726
        %v2740 = vpop.f32.mrf.mxu0
        %v2741 = vadd.f32 0.0, %v2740
        %v2742 = vpop.f32.mrf.mxu0
        %2743 = vdwg.mxu0
        %v2745 = vsel %vm2284, %v2475, 0
        %v2748 = vsel %vm2480, %v1955, 0
        %2750 = vmatpush.bf16.msra.mxu0 0
        %2751 = vmatpush.bf16.msra.mxu0 0
        %2752 = vmatpush.bf16.msra.mxu0 0
        %2753 = vmatpush.bf16.msra.mxu0 0
        %2754 = vmatpush.bf16.msra.mxu0 0
        %2755 = vmatpush.bf16.msra.mxu0 0
        %2756 = vmatpush.bf16.msra.mxu0 0
        %2757 = vmatpush.bf16.msra.mxu0 %v2748
        %2758 = vmatmul.bf16.gmra.mxu0 %v2745
        %v2759 = vpop.f32.mrf.mxu0
        %v2760 = vadd.f32 0.0, %v2759
        %v2761 = vpop.f32.mrf.mxu0
        %2762 = vdwg.mxu0
        %v2764 = vsel %vm2284, %v2476, 0
        %v2767 = vsel %vm2480, %v1956, 0
        %2769 = vmatpush.bf16.msra.mxu0 0
        %2770 = vmatpush.bf16.msra.mxu0 0
        %2771 = vmatpush.bf16.msra.mxu0 0
        %2772 = vmatpush.bf16.msra.mxu0 0
        %2773 = vmatpush.bf16.msra.mxu0 0
        %2774 = vmatpush.bf16.msra.mxu0 0
        %2775 = vmatpush.bf16.msra.mxu0 0
        %2776 = vmatpush.bf16.msra.mxu0 %v2767
        %2777 = vmatmul.bf16.gmra.mxu0 %v2764
        %v2778 = vpop.f32.mrf.mxu0
        %v2779 = vadd.f32 0.0, %v2778
        %v2780 = vpop.f32.mrf.mxu0
        %2781 = vdwg.mxu0
        %v2782 = vld [vmem:[#allocation14] sm:$0xf]
        %v2783 = vld [vmem:[#allocation14 + $0x4] sm:$0xf]
        %v2784 = vpack.c.bf16 %v2513, %v2494
        %v2787 = vunpack.c.l.b16 %v2782
        %v2788 = vunpack.c.l.b16 %v2783
        %v2789 = vpack.c.b16 %v2788, %v2787
        %v2792 = vsel %vm1957, %v2784, 0
        %2794 = vmatpush.bf16.msra.mxu0 0
        %2795 = vmatpush.bf16.msra.mxu0 0
        %2796 = vmatpush.bf16.msra.mxu0 0
        %2797 = vmatpush.bf16.msra.mxu0 0
        %2798 = vmatpush.bf16.msra.mxu0 0
        %2799 = vmatpush.bf16.msra.mxu0 0
        %2800 = vmatpush.bf16.msra.mxu0 0
        %2801 = vmatpush.bf16.msra.mxu0 %v2789
        %2802 = vmatmul.bf16.gmra.mxu0 %v2792
        %v2803 = vpop.f32.mrf.mxu0
        %v2804 = vadd.f32 0.0, %v2803
        %v2805 = vpop.f32.mrf.mxu0
        %v2806 = vadd.f32 0.0, %v2805
        %2807 = vdwg.mxu0
        %v2808 = vperm.slane %v1054, 1
        %v2809 = vadd.f32 %v2808, %v2804
        %v2810 = vadd.f32 %v2808, %v2806
        %v2811 = vld [vmem:[#allocation14 + $0x8] sm:$0xf]
        %v2812 = vld [vmem:[#allocation14 + $0xc] sm:$0xf]
        %v2813 = vpack.c.bf16 %v2551, %v2532
        %v2816 = vunpack.c.l.b16 %v2811
        %v2817 = vunpack.c.l.b16 %v2812
        %v2818 = vpack.c.b16 %v2817, %v2816
        %v2821 = vsel %vm1957, %v2813, 0
        %2823 = vmatpush.bf16.msra.mxu0 0
        %2824 = vmatpush.bf16.msra.mxu0 0
        %2825 = vmatpush.bf16.msra.mxu0 0
        %2826 = vmatpush.bf16.msra.mxu0 0
        %2827 = vmatpush.bf16.msra.mxu0 0
        %2828 = vmatpush.bf16.msra.mxu0 0
        %2829 = vmatpush.bf16.msra.mxu0 0
        %2830 = vmatpush.bf16.msra.mxu0 %v2818
        %2831 = vmatmul.bf16.gmra.mxu0 %v2821
        %v2832 = vpop.f32.mrf.mxu0
        %v2833 = vadd.f32 0.0, %v2832
        %v2834 = vpop.f32.mrf.mxu0
        %v2835 = vadd.f32 0.0, %v2834
        %2836 = vdwg.mxu0
        %v2837 = vadd.f32 %v2809, %v2833
        %v2838 = vadd.f32 %v2810, %v2835
        %v2839 = vld [vmem:[#allocation14 + $0x10] sm:$0xf]
        %v2840 = vld [vmem:[#allocation14 + $0x14] sm:$0xf]
        %v2841 = vpack.c.bf16 %v2589, %v2570
        %v2844 = vunpack.c.l.b16 %v2839
        %v2845 = vunpack.c.l.b16 %v2840
        %v2846 = vpack.c.b16 %v2845, %v2844
        %v2849 = vsel %vm1957, %v2841, 0
        %2851 = vmatpush.bf16.msra.mxu0 0
        %2852 = vmatpush.bf16.msra.mxu0 0
        %2853 = vmatpush.bf16.msra.mxu0 0
        %2854 = vmatpush.bf16.msra.mxu0 0
        %2855 = vmatpush.bf16.msra.mxu0 0
        %2856 = vmatpush.bf16.msra.mxu0 0
        %2857 = vmatpush.bf16.msra.mxu0 0
        %2858 = vmatpush.bf16.msra.mxu0 %v2846
        %2859 = vmatmul.bf16.gmra.mxu0 %v2849
        %v2860 = vpop.f32.mrf.mxu0
        %v2861 = vadd.f32 0.0, %v2860
        %v2862 = vpop.f32.mrf.mxu0
        %v2863 = vadd.f32 0.0, %v2862
        %2864 = vdwg.mxu0
        %v2865 = vadd.f32 %v2837, %v2861
        %v2866 = vadd.f32 %v2838, %v2863
        %v2867 = vld [vmem:[#allocation14 + $0x18] sm:$0xf]
        %v2868 = vld [vmem:[#allocation14 + $0x1c] sm:$0xf]
        %v2869 = vpack.c.bf16 %v2627, %v2608
        %v2872 = vunpack.c.l.b16 %v2867
        %v2873 = vunpack.c.l.b16 %v2868
        %v2874 = vpack.c.b16 %v2873, %v2872
        %v2877 = vsel %vm1957, %v2869, 0
        %2879 = vmatpush.bf16.msra.mxu0 0
        %2880 = vmatpush.bf16.msra.mxu0 0
        %2881 = vmatpush.bf16.msra.mxu0 0
        %2882 = vmatpush.bf16.msra.mxu0 0
        %2883 = vmatpush.bf16.msra.mxu0 0
        %2884 = vmatpush.bf16.msra.mxu0 0
        %2885 = vmatpush.bf16.msra.mxu0 0
        %2886 = vmatpush.bf16.msra.mxu0 %v2874
        %2887 = vmatmul.bf16.gmra.mxu0 %v2877
        %v2888 = vpop.f32.mrf.mxu0
        %v2889 = vadd.f32 0.0, %v2888
        %v2890 = vpop.f32.mrf.mxu0
        %v2891 = vadd.f32 0.0, %v2890
        %2892 = vdwg.mxu0
        %v2893 = vadd.f32 %v2865, %v2889
        %v2894 = vadd.f32 %v2866, %v2891
        %v2895 = vld [vmem:[#allocation14 + $0x20] sm:$0xf]
        %v2896 = vld [vmem:[#allocation14 + $0x24] sm:$0xf]
        %v2897 = vpack.c.bf16 %v2665, %v2646
        %v2900 = vunpack.c.l.b16 %v2895
        %v2901 = vunpack.c.l.b16 %v2896
        %v2902 = vpack.c.b16 %v2901, %v2900
        %v2905 = vsel %vm1957, %v2897, 0
        %2907 = vmatpush.bf16.msra.mxu0 0
        %2908 = vmatpush.bf16.msra.mxu0 0
        %2909 = vmatpush.bf16.msra.mxu0 0
        %2910 = vmatpush.bf16.msra.mxu0 0
        %2911 = vmatpush.bf16.msra.mxu0 0
        %2912 = vmatpush.bf16.msra.mxu0 0
        %2913 = vmatpush.bf16.msra.mxu0 0
        %2914 = vmatpush.bf16.msra.mxu0 %v2902
        %2915 = vmatmul.bf16.gmra.mxu0 %v2905
        %v2916 = vpop.f32.mrf.mxu0
        %v2917 = vadd.f32 0.0, %v2916
        %v2918 = vpop.f32.mrf.mxu0
        %v2919 = vadd.f32 0.0, %v2918
        %2920 = vdwg.mxu0
        %v2921 = vadd.f32 %v2893, %v2917
        %v2922 = vadd.f32 %v2894, %v2919
        %v2923 = vld [vmem:[#allocation14 + $0x28] sm:$0xf]
        %v2924 = vld [vmem:[#allocation14 + $0x2c] sm:$0xf]
        %v2925 = vpack.c.bf16 %v2703, %v2684
        %v2928 = vunpack.c.l.b16 %v2923
        %v2929 = vunpack.c.l.b16 %v2924
        %v2930 = vpack.c.b16 %v2929, %v2928
        %v2933 = vsel %vm1957, %v2925, 0
        %2935 = vmatpush.bf16.msra.mxu0 0
        %2936 = vmatpush.bf16.msra.mxu0 0
        %2937 = vmatpush.bf16.msra.mxu0 0
        %2938 = vmatpush.bf16.msra.mxu0 0
        %2939 = vmatpush.bf16.msra.mxu0 0
        %2940 = vmatpush.bf16.msra.mxu0 0
        %2941 = vmatpush.bf16.msra.mxu0 0
        %2942 = vmatpush.bf16.msra.mxu0 %v2930
        %2943 = vmatmul.bf16.gmra.mxu0 %v2933
        %v2944 = vpop.f32.mrf.mxu0
        %v2945 = vadd.f32 0.0, %v2944
        %v2946 = vpop.f32.mrf.mxu0
        %v2947 = vadd.f32 0.0, %v2946
        %2948 = vdwg.mxu0
        %v2949 = vadd.f32 %v2921, %v2945
        %v2950 = vadd.f32 %v2922, %v2947
        %v2951 = vld [vmem:[#allocation14 + $0x30] sm:$0xf]
        %v2952 = vld [vmem:[#allocation14 + $0x34] sm:$0xf]
        %v2953 = vpack.c.bf16 %v2741, %v2722
        %v2956 = vunpack.c.l.b16 %v2951
        %v2957 = vunpack.c.l.b16 %v2952
        %v2958 = vpack.c.b16 %v2957, %v2956
        %v2961 = vsel %vm1957, %v2953, 0
        %2963 = vmatpush.bf16.msra.mxu0 0
        %2964 = vmatpush.bf16.msra.mxu0 0
        %2965 = vmatpush.bf16.msra.mxu0 0
        %2966 = vmatpush.bf16.msra.mxu0 0
        %2967 = vmatpush.bf16.msra.mxu0 0
        %2968 = vmatpush.bf16.msra.mxu0 0
        %2969 = vmatpush.bf16.msra.mxu0 0
        %2970 = vmatpush.bf16.msra.mxu0 %v2958
        %2971 = vmatmul.bf16.gmra.mxu0 %v2961
        %v2972 = vpop.f32.mrf.mxu0
        %v2973 = vadd.f32 0.0, %v2972
        %v2974 = vpop.f32.mrf.mxu0
        %v2975 = vadd.f32 0.0, %v2974
        %2976 = vdwg.mxu0
        %v2977 = vadd.f32 %v2949, %v2973
        %v2978 = vadd.f32 %v2950, %v2975
        %v2979 = vld [vmem:[#allocation14 + $0x38] sm:$0xf]
        %v2980 = vld [vmem:[#allocation14 + $0x3c] sm:$0xf]
        %v2981 = vpack.c.bf16 %v2779, %v2760
        %v2984 = vunpack.c.l.b16 %v2979
        %v2985 = vunpack.c.l.b16 %v2980
        %v2986 = vpack.c.b16 %v2985, %v2984
        %v2989 = vsel %vm1957, %v2981, 0
        %2991 = vmatpush.bf16.msra.mxu0 0
        %2992 = vmatpush.bf16.msra.mxu0 0
        %2993 = vmatpush.bf16.msra.mxu0 0
        %2994 = vmatpush.bf16.msra.mxu0 0
        %2995 = vmatpush.bf16.msra.mxu0 0
        %2996 = vmatpush.bf16.msra.mxu0 0
        %2997 = vmatpush.bf16.msra.mxu0 0
        %2998 = vmatpush.bf16.msra.mxu0 %v2986
        %2999 = vmatmul.bf16.gmra.mxu0 %v2989
        %v3000 = vpop.f32.mrf.mxu0
        %v3001 = vadd.f32 0.0, %v3000
        %v3002 = vpop.f32.mrf.mxu0
        %v3003 = vadd.f32 0.0, %v3002
        %3004 = vdwg.mxu0
        %v3005 = vadd.f32 %v2977, %v3001
        %v3006 = vadd.f32 %v2978, %v3003
        %v3007 = vadd.f32 %v1564, %v3005
        %v3008 = vadd.f32 %v1565, %v3006
        %3009 = vadd.xlane.f32.xlu0 %v3007
        %v3010 = vpop.xlane.xlu0 %3009
        %3011 = vadd.xlane.f32.xlu0 %v3008
        %v3012 = vpop.xlane.xlu0 %3011
        %v3013 = vmul.f32 %v3010, %v1523
        %v3014 = vmul.f32 %v3012, %v1523
        %v3015 = vsub.f32 %v3007, %v3013
        %v3016 = vsub.f32 %v3008, %v3014
        %v3017 = vmul.f32 %v3015, %v3015
        %v3018 = vmul.f32 %v3016, %v3016
        %3019 = vadd.xlane.f32.xlu0 %v3017
        %v3020 = vpop.xlane.xlu0 %3019
        %3021 = vadd.xlane.f32.xlu0 %v3018
        %v3022 = vpop.xlane.xlu0 %3021
        %v3023 = vmul.f32 %v3020, %v1523
        %v3024 = vmul.f32 %v3022, %v1523
        %v3025 = vadd.f32 %v3023, 1e-05
        %v3026 = vadd.f32 %v3024, 1e-05
        %v3027 = vrsqrt.pop %v3025
        %v3028 = vmul.f32 %v3027, %v3025
        %v3029 = vmul.f32 %v3028, %v3027
        %v3030 = vmul.f32 0.5, %v3029
        %v3031 = vsub.f32 1.5, %v3030
        %v3032 = vmul.f32 %v3027, %v3031
        %vm3033 = vweird.f32 %v3025
        %vm3034 = vweird.f32 %v3027
        %vm3035 = vmor %vm3033, %vm3034
        %v3036 = vsel %vm3035, %v3027, %v3032
        %v3037 = vrsqrt.pop %v3026
        %v3038 = vmul.f32 %v3037, %v3026
        %v3039 = vmul.f32 %v3038, %v3037
        %v3040 = vmul.f32 0.5, %v3039
        %v3041 = vsub.f32 1.5, %v3040
        %v3042 = vmul.f32 %v3037, %v3041
        %vm3043 = vweird.f32 %v3026
        %vm3044 = vweird.f32 %v3037
        %vm3045 = vmor %vm3043, %vm3044
        %v3046 = vsel %vm3045, %v3037, %v3042
        %v3047 = vmul.f32 %v3015, %v3036
        %v3048 = vmul.f32 %v3016, %v3046
        %v3049 = vperm.slane %v1053, 2
        %v3050 = vmul.f32 %v3047, %v3049
        %v3051 = vmul.f32 %v3048, %v3049
        %v3052 = vperm.slane %v1053, 3
        %v3053 = vadd.f32 %v3050, %v3052
        %v3054 = vadd.f32 %v3051, %v3052
        %v3055 = vld [vmem:[#allocation16] sm:$0xf]
        %v3056 = vld [vmem:[#allocation16 + $0xc] sm:$0xf]
        %v3057 = vld [vmem:[#allocation16 + $0x18] sm:$0xf]
        %v3058 = vld [vmem:[#allocation16 + $0x24] sm:$0xf]
        %v3059 = vld [vmem:[#allocation16 + $0x30] sm:$0xf]
        %v3060 = vld [vmem:[#allocation16 + $0x3c] sm:$0xf]
        %v3061 = vld [vmem:[#allocation16 + $0x48] sm:$0xf]
        %v3062 = vld [vmem:[#allocation16 + $0x54] sm:$0xf]
        %v3063 = vld [vmem:[#allocation16 + $0x60] sm:$0xf]
        %v3064 = vld [vmem:[#allocation16 + $0x6c] sm:$0xf]
        %v3065 = vld [vmem:[#allocation16 + $0x78] sm:$0xf]
        %v3066 = vld [vmem:[#allocation16 + $0x84] sm:$0xf]
        %v3067 = vld [vmem:[#allocation16 + $0x90] sm:$0xf]
        %v3068 = vld [vmem:[#allocation16 + $0x9c] sm:$0xf]
        %v3069 = vld [vmem:[#allocation16 + $0xa8] sm:$0xf]
        %v3070 = vld [vmem:[#allocation16 + $0xb4] sm:$0xf]
        %v3071 = vpack.c.bf16 %v3054, %v3053
        %v3072 = vld [vmem:[#allocation25] sm:$0x1]
        %v3074 = vperm.slane %v3072, 0
        %v3092 = vunpack.c.l.b16 %v3055
        %v3093 = vunpack.c.l.b16 %v3056
        %v3094 = vunpack.c.l.b16 %v3057
        %v3095 = vunpack.c.l.b16 %v3058
        %v3096 = vunpack.c.l.b16 %v3059
        %v3097 = vunpack.c.l.b16 %v3060
        %v3098 = vunpack.c.l.b16 %v3061
        %v3099 = vunpack.c.l.b16 %v3062
        %v3100 = vunpack.c.l.b16 %v3063
        %v3101 = vunpack.c.l.b16 %v3064
        %v3102 = vunpack.c.l.b16 %v3065
        %v3103 = vunpack.c.l.b16 %v3066
        %v3104 = vunpack.c.l.b16 %v3067
        %v3105 = vunpack.c.l.b16 %v3068
        %v3106 = vunpack.c.l.b16 %v3069
        %v3107 = vunpack.c.l.b16 %v3070
        %v3108 = vpack.c.b16 %v3093, %v3092
        %v3109 = vpack.c.b16 %v3095, %v3094
        %v3110 = vpack.c.b16 %v3097, %v3096
        %v3111 = vpack.c.b16 %v3099, %v3098
        %v3112 = vpack.c.b16 %v3101, %v3100
        %v3113 = vpack.c.b16 %v3103, %v3102
        %v3114 = vpack.c.b16 %v3105, %v3104
        %v3115 = vpack.c.b16 %v3107, %v3106
        %3124 = vmatpush.bf16.msra.mxu0 %v3115
        %3125 = vmatpush.bf16.msra.mxu0 %v3114
        %3126 = vmatpush.bf16.msra.mxu0 %v3113
        %3127 = vmatpush.bf16.msra.mxu0 %v3112
        %3128 = vmatpush.bf16.msra.mxu0 %v3111
        %3129 = vmatpush.bf16.msra.mxu0 %v3110
        %3130 = vmatpush.bf16.msra.mxu0 %v3109
        %3131 = vmatpush.bf16.msra.mxu0 %v3108
        %3132 = vmatmul.bf16.gmra.mxu0 %v3071
        %v3133 = vpop.f32.mrf.mxu0
        %v3134 = vadd.f32 %v3074, %v3133
        %v3135 = vpop.f32.mrf.mxu0
        %v3136 = vadd.f32 %v3074, %v3135
        %3137 = vdwg.mxu0
        %v3138 = vld [vmem:[#allocation16 + $0x4] sm:$0xff]
        %v3139 = vld [vmem:[#allocation16 + $0x10] sm:$0xff]
        %v3140 = vld [vmem:[#allocation16 + $0x1c] sm:$0xff]
        %v3141 = vld [vmem:[#allocation16 + $0x28] sm:$0xff]
        %v3142 = vld [vmem:[#allocation16 + $0x34] sm:$0xff]
        %v3143 = vld [vmem:[#allocation16 + $0x40] sm:$0xff]
        %v3144 = vld [vmem:[#allocation16 + $0x4c] sm:$0xff]
        %v3145 = vld [vmem:[#allocation16 + $0x58] sm:$0xff]
        %v3146 = vld [vmem:[#allocation16 + $0x64] sm:$0xff]
        %v3147 = vld [vmem:[#allocation16 + $0x70] sm:$0xff]
        %v3148 = vld [vmem:[#allocation16 + $0x7c] sm:$0xff]
        %v3149 = vld [vmem:[#allocation16 + $0x88] sm:$0xff]
        %v3150 = vld [vmem:[#allocation16 + $0x94] sm:$0xff]
        %v3151 = vld [vmem:[#allocation16 + $0xa0] sm:$0xff]
        %v3152 = vld [vmem:[#allocation16 + $0xac] sm:$0xff]
        %v3153 = vld [vmem:[#allocation16 + $0xb8] sm:$0xff]
        %v3154 = vld [vmem:[#allocation25 + $0x1] sm:$0x3]
        %v3156 = vperm.slane %v3154, 0
        %v3157 = vperm.slane %v3154, 1
        %v3162 = vunpack.c.l.b16 %v1057
        %v3163 = vunpack.c.l.b16 %v1058
        %v3164 = vpack.c.b16 %v3163, %v3162
        %v3182 = vunpack.c.l.b16 %v3138
        %v3183 = vunpack.c.h.b16 %v3138
        %v3184 = vunpack.c.l.b16 %v3139
        %v3185 = vunpack.c.h.b16 %v3139
        %v3186 = vunpack.c.l.b16 %v3140
        %v3187 = vunpack.c.h.b16 %v3140
        %v3188 = vunpack.c.l.b16 %v3141
        %v3189 = vunpack.c.h.b16 %v3141
        %v3190 = vunpack.c.l.b16 %v3142
        %v3191 = vunpack.c.h.b16 %v3142
        %v3192 = vunpack.c.l.b16 %v3143
        %v3193 = vunpack.c.h.b16 %v3143
        %v3194 = vunpack.c.l.b16 %v3144
        %v3195 = vunpack.c.h.b16 %v3144
        %v3196 = vunpack.c.l.b16 %v3145
        %v3197 = vunpack.c.h.b16 %v3145
        %v3198 = vunpack.c.l.b16 %v3146
        %v3199 = vunpack.c.h.b16 %v3146
        %v3200 = vunpack.c.l.b16 %v3147
        %v3201 = vunpack.c.h.b16 %v3147
        %v3202 = vunpack.c.l.b16 %v3148
        %v3203 = vunpack.c.h.b16 %v3148
        %v3204 = vunpack.c.l.b16 %v3149
        %v3205 = vunpack.c.h.b16 %v3149
        %v3206 = vunpack.c.l.b16 %v3150
        %v3207 = vunpack.c.h.b16 %v3150
        %v3208 = vunpack.c.l.b16 %v3151
        %v3209 = vunpack.c.h.b16 %v3151
        %v3210 = vunpack.c.l.b16 %v3152
        %v3211 = vunpack.c.h.b16 %v3152
        %v3212 = vunpack.c.l.b16 %v3153
        %v3213 = vunpack.c.h.b16 %v3153
        %v3214 = vpack.c.b16 %v3184, %v3182
        %v3215 = vpack.c.b16 %v3185, %v3183
        %v3216 = vpack.c.b16 %v3188, %v3186
        %v3217 = vpack.c.b16 %v3189, %v3187
        %v3218 = vpack.c.b16 %v3192, %v3190
        %v3219 = vpack.c.b16 %v3193, %v3191
        %v3220 = vpack.c.b16 %v3196, %v3194
        %v3221 = vpack.c.b16 %v3197, %v3195
        %v3222 = vpack.c.b16 %v3200, %v3198
        %v3223 = vpack.c.b16 %v3201, %v3199
        %v3224 = vpack.c.b16 %v3204, %v3202
        %v3225 = vpack.c.b16 %v3205, %v3203
        %v3226 = vpack.c.b16 %v3208, %v3206
        %v3227 = vpack.c.b16 %v3209, %v3207
        %v3228 = vpack.c.b16 %v3212, %v3210
        %v3229 = vpack.c.b16 %v3213, %v3211
        %3246 = vmatpush.bf16.msra.mxu0 %v3228
        %3247 = vmatpush.bf16.msra.mxu0 %v3226
        %3248 = vmatpush.bf16.msra.mxu0 %v3224
        %3249 = vmatpush.bf16.msra.mxu0 %v3222
        %3250 = vmatpush.bf16.msra.mxu0 %v3220
        %3251 = vmatpush.bf16.msra.mxu0 %v3218
        %3252 = vmatpush.bf16.msra.mxu0 %v3216
        %3253 = vmatpush.bf16.msra.mxu0 %v3214
        %3254 = vmatmul.bf16.gmra.mxu0 %v3164
        %v3255 = vpop.f32.mrf.mxu0
        %v3256 = vadd.f32 %v3156, %v3255
        %v3257 = vpop.f32.mrf.mxu0
        %v3258 = vadd.f32 %v3156, %v3257
        %3259 = vdwg.mxu0
        %3260 = vmatpush.bf16.msra.mxu0 %v3229
        %3261 = vmatpush.bf16.msra.mxu0 %v3227
        %3262 = vmatpush.bf16.msra.mxu0 %v3225
        %3263 = vmatpush.bf16.msra.mxu0 %v3223
        %3264 = vmatpush.bf16.msra.mxu0 %v3221
        %3265 = vmatpush.bf16.msra.mxu0 %v3219
        %3266 = vmatpush.bf16.msra.mxu0 %v3217
        %3267 = vmatpush.bf16.msra.mxu0 %v3215
        %3268 = vmatmul.bf16.gmra.mxu0 %v3164
        %v3269 = vpop.f32.mrf.mxu0
        %v3270 = vadd.f32 %v3157, %v3269
        %v3271 = vpop.f32.mrf.mxu0
        %v3272 = vadd.f32 %v3157, %v3271
        %3273 = vdwg.mxu0
        %3276 = vrot.lane.b32.xlu0 %v3134, 112
        %v3277 = vpop.permute.xlu0 %3276
        %3278 = vrot.lane.b32.xlu0 %v3136, 112
        %v3279 = vpop.permute.xlu0 %3278
        %3282 = vrot.lane.b32.xlu0 %v3134, 96
        %v3283 = vpop.permute.xlu0 %3282
        %3284 = vrot.lane.b32.xlu0 %v3136, 96
        %v3285 = vpop.permute.xlu0 %3284
        %3288 = vrot.lane.b32.xlu0 %v3134, 80
        %v3289 = vpop.permute.xlu0 %3288
        %3290 = vrot.lane.b32.xlu0 %v3136, 80
        %v3291 = vpop.permute.xlu0 %3290
        %3294 = vrot.lane.b32.xlu0 %v3134, 64
        %v3295 = vpop.permute.xlu0 %3294
        %3296 = vrot.lane.b32.xlu0 %v3136, 64
        %v3297 = vpop.permute.xlu0 %3296
        %3300 = vrot.lane.b32.xlu0 %v3134, 48
        %v3301 = vpop.permute.xlu0 %3300
        %3302 = vrot.lane.b32.xlu0 %v3136, 48
        %v3303 = vpop.permute.xlu0 %3302
        %3306 = vrot.lane.b32.xlu0 %v3134, 32
        %v3307 = vpop.permute.xlu0 %3306
        %3308 = vrot.lane.b32.xlu0 %v3136, 32
        %v3309 = vpop.permute.xlu0 %3308
        %3312 = vrot.lane.b32.xlu0 %v3134, 16
        %v3313 = vpop.permute.xlu0 %3312
        %3314 = vrot.lane.b32.xlu0 %v3136, 16
        %v3315 = vpop.permute.xlu0 %3314
        %v3318 = vpack.c.bf16 %v3134, %v3134
        %v3319 = vpack.c.bf16 %v3136, %v3136
        %v3320 = vpack.c.bf16 %v3277, %v3277
        %v3321 = vpack.c.bf16 %v3279, %v3279
        %v3322 = vpack.c.bf16 %v3283, %v3283
        %v3323 = vpack.c.bf16 %v3285, %v3285
        %v3324 = vpack.c.bf16 %v3289, %v3289
        %v3325 = vpack.c.bf16 %v3291, %v3291
        %v3326 = vpack.c.bf16 %v3295, %v3295
        %v3327 = vpack.c.bf16 %v3297, %v3297
        %v3328 = vpack.c.bf16 %v3301, %v3301
        %v3329 = vpack.c.bf16 %v3303, %v3303
        %v3330 = vpack.c.bf16 %v3307, %v3307
        %v3331 = vpack.c.bf16 %v3309, %v3309
        %v3332 = vpack.c.bf16 %v3313, %v3313
        %v3333 = vpack.c.bf16 %v3315, %v3315
        %3336 = vrot.lane.b32.xlu0 %v3256, 112
        %v3337 = vpop.permute.xlu0 %3336
        %3338 = vrot.lane.b32.xlu0 %v3258, 112
        %v3339 = vpop.permute.xlu0 %3338
        %3342 = vrot.lane.b32.xlu0 %v3256, 96
        %v3343 = vpop.permute.xlu0 %3342
        %3344 = vrot.lane.b32.xlu0 %v3258, 96
        %v3345 = vpop.permute.xlu0 %3344
        %3348 = vrot.lane.b32.xlu0 %v3256, 80
        %v3349 = vpop.permute.xlu0 %3348
        %3350 = vrot.lane.b32.xlu0 %v3258, 80
        %v3351 = vpop.permute.xlu0 %3350
        %3354 = vrot.lane.b32.xlu0 %v3256, 64
        %v3355 = vpop.permute.xlu0 %3354
        %3356 = vrot.lane.b32.xlu0 %v3258, 64
        %v3357 = vpop.permute.xlu0 %3356
        %3360 = vrot.lane.b32.xlu0 %v3256, 48
        %v3361 = vpop.permute.xlu0 %3360
        %3362 = vrot.lane.b32.xlu0 %v3258, 48
        %v3363 = vpop.permute.xlu0 %3362
        %3366 = vrot.lane.b32.xlu0 %v3256, 32
        %v3367 = vpop.permute.xlu0 %3366
        %3368 = vrot.lane.b32.xlu0 %v3258, 32
        %v3369 = vpop.permute.xlu0 %3368
        %3372 = vrot.lane.b32.xlu0 %v3256, 16
        %v3373 = vpop.permute.xlu0 %3372
        %3374 = vrot.lane.b32.xlu0 %v3258, 16
        %v3375 = vpop.permute.xlu0 %3374
        %v3378 = vpack.c.bf16 %v3256, %v3256
        %v3379 = vpack.c.bf16 %v3258, %v3258
        %v3380 = vpack.c.bf16 %v3337, %v3337
        %v3381 = vpack.c.bf16 %v3339, %v3339
        %v3382 = vpack.c.bf16 %v3343, %v3343
        %v3383 = vpack.c.bf16 %v3345, %v3345
        %v3384 = vpack.c.bf16 %v3349, %v3349
        %v3385 = vpack.c.bf16 %v3351, %v3351
        %v3386 = vpack.c.bf16 %v3355, %v3355
        %v3387 = vpack.c.bf16 %v3357, %v3357
        %v3388 = vpack.c.bf16 %v3361, %v3361
        %v3389 = vpack.c.bf16 %v3363, %v3363
        %v3390 = vpack.c.bf16 %v3367, %v3367
        %v3391 = vpack.c.bf16 %v3369, %v3369
        %v3392 = vpack.c.bf16 %v3373, %v3373
        %v3393 = vpack.c.bf16 %v3375, %v3375
        %3396 = vrot.lane.b32.xlu0 %v3270, 112
        %v3397 = vpop.permute.xlu0 %3396
        %3398 = vrot.lane.b32.xlu0 %v3272, 112
        %v3399 = vpop.permute.xlu0 %3398
        %3402 = vrot.lane.b32.xlu0 %v3270, 96
        %v3403 = vpop.permute.xlu0 %3402
        %3404 = vrot.lane.b32.xlu0 %v3272, 96
        %v3405 = vpop.permute.xlu0 %3404
        %3408 = vrot.lane.b32.xlu0 %v3270, 80
        %v3409 = vpop.permute.xlu0 %3408
        %3410 = vrot.lane.b32.xlu0 %v3272, 80
        %v3411 = vpop.permute.xlu0 %3410
        %3414 = vrot.lane.b32.xlu0 %v3270, 64
        %v3415 = vpop.permute.xlu0 %3414
        %3416 = vrot.lane.b32.xlu0 %v3272, 64
        %v3417 = vpop.permute.xlu0 %3416
        %3420 = vrot.lane.b32.xlu0 %v3270, 48
        %v3421 = vpop.permute.xlu0 %3420
        %3422 = vrot.lane.b32.xlu0 %v3272, 48
        %v3423 = vpop.permute.xlu0 %3422
        %3426 = vrot.lane.b32.xlu0 %v3270, 32
        %v3427 = vpop.permute.xlu0 %3426
        %3428 = vrot.lane.b32.xlu0 %v3272, 32
        %v3429 = vpop.permute.xlu0 %3428
        %3432 = vrot.lane.b32.xlu0 %v3270, 16
        %v3433 = vpop.permute.xlu0 %3432
        %3434 = vrot.lane.b32.xlu0 %v3272, 16
        %v3435 = vpop.permute.xlu0 %3434
        %v3438 = vpack.c.bf16 %v3270, %v3270
        %v3439 = vpack.c.bf16 %v3272, %v3272
        %v3440 = vpack.c.bf16 %v3397, %v3397
        %v3441 = vpack.c.bf16 %v3399, %v3399
        %v3442 = vpack.c.bf16 %v3403, %v3403
        %v3443 = vpack.c.bf16 %v3405, %v3405
        %v3444 = vpack.c.bf16 %v3409, %v3409
        %v3445 = vpack.c.bf16 %v3411, %v3411
        %v3446 = vpack.c.bf16 %v3415, %v3415
        %v3447 = vpack.c.bf16 %v3417, %v3417
        %v3448 = vpack.c.bf16 %v3421, %v3421
        %v3449 = vpack.c.bf16 %v3423, %v3423
        %v3450 = vpack.c.bf16 %v3427, %v3427
        %v3451 = vpack.c.bf16 %v3429, %v3429
        %v3452 = vpack.c.bf16 %v3433, %v3433
        %v3453 = vpack.c.bf16 %v3435, %v3435
        %v3455 = vsel %vm1957, %v3318, 0
        %v3458 = vsel %vm1957, %v3378, 0
        %3460 = vmatpush.bf16.xpose.msra.mxu0 0
        %3461 = vmatpush.bf16.xpose.msra.mxu0 0
        %3462 = vmatpush.bf16.xpose.msra.mxu0 0
        %3463 = vmatpush.bf16.xpose.msra.mxu0 0
        %3464 = vmatpush.bf16.xpose.msra.mxu0 0
        %3465 = vmatpush.bf16.xpose.msra.mxu0 0
        %3466 = vmatpush.bf16.xpose.msra.mxu0 0
        %3467 = vmatpush.bf16.xpose.msra.mxu0 %v3458
        %3468 = vmatmul.bf16.gmra.mxu0 %v3455
        %v3469 = vpop.f32.mrf.mxu0
        %v3470 = vadd.f32 0.0, %v3469
        %v3471 = vpop.f32.mrf.mxu0
        %3472 = vdwg.mxu0
        %v3474 = vsel %vm1957, %v3319, 0
        %v3477 = vsel %vm1957, %v3379, 0
        %3479 = vmatpush.bf16.xpose.msra.mxu0 0
        %3480 = vmatpush.bf16.xpose.msra.mxu0 0
        %3481 = vmatpush.bf16.xpose.msra.mxu0 0
        %3482 = vmatpush.bf16.xpose.msra.mxu0 0
        %3483 = vmatpush.bf16.xpose.msra.mxu0 0
        %3484 = vmatpush.bf16.xpose.msra.mxu0 0
        %3485 = vmatpush.bf16.xpose.msra.mxu0 0
        %3486 = vmatpush.bf16.xpose.msra.mxu0 %v3477
        %3487 = vmatmul.bf16.gmra.mxu0 %v3474
        %v3488 = vpop.f32.mrf.mxu0
        %v3489 = vadd.f32 0.0, %v3488
        %v3490 = vpop.f32.mrf.mxu0
        %3491 = vdwg.mxu0
        %v3493 = vsel %vm1957, %v3320, 0
        %v3496 = vsel %vm1957, %v3380, 0
        %3498 = vmatpush.bf16.xpose.msra.mxu0 0
        %3499 = vmatpush.bf16.xpose.msra.mxu0 0
        %3500 = vmatpush.bf16.xpose.msra.mxu0 0
        %3501 = vmatpush.bf16.xpose.msra.mxu0 0
        %3502 = vmatpush.bf16.xpose.msra.mxu0 0
        %3503 = vmatpush.bf16.xpose.msra.mxu0 0
        %3504 = vmatpush.bf16.xpose.msra.mxu0 0
        %3505 = vmatpush.bf16.xpose.msra.mxu0 %v3496
        %3506 = vmatmul.bf16.gmra.mxu0 %v3493
        %v3507 = vpop.f32.mrf.mxu0
        %v3508 = vadd.f32 0.0, %v3507
        %v3509 = vpop.f32.mrf.mxu0
        %3510 = vdwg.mxu0
        %v3512 = vsel %vm1957, %v3321, 0
        %v3515 = vsel %vm1957, %v3381, 0
        %3517 = vmatpush.bf16.xpose.msra.mxu0 0
        %3518 = vmatpush.bf16.xpose.msra.mxu0 0
        %3519 = vmatpush.bf16.xpose.msra.mxu0 0
        %3520 = vmatpush.bf16.xpose.msra.mxu0 0
        %3521 = vmatpush.bf16.xpose.msra.mxu0 0
        %3522 = vmatpush.bf16.xpose.msra.mxu0 0
        %3523 = vmatpush.bf16.xpose.msra.mxu0 0
        %3524 = vmatpush.bf16.xpose.msra.mxu0 %v3515
        %3525 = vmatmul.bf16.gmra.mxu0 %v3512
        %v3526 = vpop.f32.mrf.mxu0
        %v3527 = vadd.f32 0.0, %v3526
        %v3528 = vpop.f32.mrf.mxu0
        %3529 = vdwg.mxu0
        %v3531 = vsel %vm1957, %v3322, 0
        %v3534 = vsel %vm1957, %v3382, 0
        %3536 = vmatpush.bf16.xpose.msra.mxu0 0
        %3537 = vmatpush.bf16.xpose.msra.mxu0 0
        %3538 = vmatpush.bf16.xpose.msra.mxu0 0
        %3539 = vmatpush.bf16.xpose.msra.mxu0 0
        %3540 = vmatpush.bf16.xpose.msra.mxu0 0
        %3541 = vmatpush.bf16.xpose.msra.mxu0 0
        %3542 = vmatpush.bf16.xpose.msra.mxu0 0
        %3543 = vmatpush.bf16.xpose.msra.mxu0 %v3534
        %3544 = vmatmul.bf16.gmra.mxu0 %v3531
        %v3545 = vpop.f32.mrf.mxu0
        %v3546 = vadd.f32 0.0, %v3545
        %v3547 = vpop.f32.mrf.mxu0
        %3548 = vdwg.mxu0
        %v3550 = vsel %vm1957, %v3323, 0
        %v3553 = vsel %vm1957, %v3383, 0
        %3555 = vmatpush.bf16.xpose.msra.mxu0 0
        %3556 = vmatpush.bf16.xpose.msra.mxu0 0
        %3557 = vmatpush.bf16.xpose.msra.mxu0 0
        %3558 = vmatpush.bf16.xpose.msra.mxu0 0
        %3559 = vmatpush.bf16.xpose.msra.mxu0 0
        %3560 = vmatpush.bf16.xpose.msra.mxu0 0
        %3561 = vmatpush.bf16.xpose.msra.mxu0 0
        %3562 = vmatpush.bf16.xpose.msra.mxu0 %v3553
        %3563 = vmatmul.bf16.gmra.mxu0 %v3550
        %v3564 = vpop.f32.mrf.mxu0
        %v3565 = vadd.f32 0.0, %v3564
        %v3566 = vpop.f32.mrf.mxu0
        %3567 = vdwg.mxu0
        %v3569 = vsel %vm1957, %v3324, 0
        %v3572 = vsel %vm1957, %v3384, 0
        %3574 = vmatpush.bf16.xpose.msra.mxu0 0
        %3575 = vmatpush.bf16.xpose.msra.mxu0 0
        %3576 = vmatpush.bf16.xpose.msra.mxu0 0
        %3577 = vmatpush.bf16.xpose.msra.mxu0 0
        %3578 = vmatpush.bf16.xpose.msra.mxu0 0
        %3579 = vmatpush.bf16.xpose.msra.mxu0 0
        %3580 = vmatpush.bf16.xpose.msra.mxu0 0
        %3581 = vmatpush.bf16.xpose.msra.mxu0 %v3572
        %3582 = vmatmul.bf16.gmra.mxu0 %v3569
        %v3583 = vpop.f32.mrf.mxu0
        %v3584 = vadd.f32 0.0, %v3583
        %v3585 = vpop.f32.mrf.mxu0
        %3586 = vdwg.mxu0
        %v3588 = vsel %vm1957, %v3325, 0
        %v3591 = vsel %vm1957, %v3385, 0
        %3593 = vmatpush.bf16.xpose.msra.mxu0 0
        %3594 = vmatpush.bf16.xpose.msra.mxu0 0
        %3595 = vmatpush.bf16.xpose.msra.mxu0 0
        %3596 = vmatpush.bf16.xpose.msra.mxu0 0
        %3597 = vmatpush.bf16.xpose.msra.mxu0 0
        %3598 = vmatpush.bf16.xpose.msra.mxu0 0
        %3599 = vmatpush.bf16.xpose.msra.mxu0 0
        %3600 = vmatpush.bf16.xpose.msra.mxu0 %v3591
        %3601 = vmatmul.bf16.gmra.mxu0 %v3588
        %v3602 = vpop.f32.mrf.mxu0
        %v3603 = vadd.f32 0.0, %v3602
        %v3604 = vpop.f32.mrf.mxu0
        %3605 = vdwg.mxu0
        %v3607 = vsel %vm1957, %v3326, 0
        %v3610 = vsel %vm1957, %v3386, 0
        %3612 = vmatpush.bf16.xpose.msra.mxu0 0
        %3613 = vmatpush.bf16.xpose.msra.mxu0 0
        %3614 = vmatpush.bf16.xpose.msra.mxu0 0
        %3615 = vmatpush.bf16.xpose.msra.mxu0 0
        %3616 = vmatpush.bf16.xpose.msra.mxu0 0
        %3617 = vmatpush.bf16.xpose.msra.mxu0 0
        %3618 = vmatpush.bf16.xpose.msra.mxu0 0
        %3619 = vmatpush.bf16.xpose.msra.mxu0 %v3610
        %3620 = vmatmul.bf16.gmra.mxu0 %v3607
        %v3621 = vpop.f32.mrf.mxu0
        %v3622 = vadd.f32 0.0, %v3621
        %v3623 = vpop.f32.mrf.mxu0
        %3624 = vdwg.mxu0
        %v3626 = vsel %vm1957, %v3327, 0
        %v3629 = vsel %vm1957, %v3387, 0
        %3631 = vmatpush.bf16.xpose.msra.mxu0 0
        %3632 = vmatpush.bf16.xpose.msra.mxu0 0
        %3633 = vmatpush.bf16.xpose.msra.mxu0 0
        %3634 = vmatpush.bf16.xpose.msra.mxu0 0
        %3635 = vmatpush.bf16.xpose.msra.mxu0 0
        %3636 = vmatpush.bf16.xpose.msra.mxu0 0
        %3637 = vmatpush.bf16.xpose.msra.mxu0 0
        %3638 = vmatpush.bf16.xpose.msra.mxu0 %v3629
        %3639 = vmatmul.bf16.gmra.mxu0 %v3626
        %v3640 = vpop.f32.mrf.mxu0
        %v3641 = vadd.f32 0.0, %v3640
        %v3642 = vpop.f32.mrf.mxu0
        %3643 = vdwg.mxu0
        %v3645 = vsel %vm1957, %v3328, 0
        %v3648 = vsel %vm1957, %v3388, 0
        %3650 = vmatpush.bf16.xpose.msra.mxu0 0
        %3651 = vmatpush.bf16.xpose.msra.mxu0 0
        %3652 = vmatpush.bf16.xpose.msra.mxu0 0
        %3653 = vmatpush.bf16.xpose.msra.mxu0 0
        %3654 = vmatpush.bf16.xpose.msra.mxu0 0
        %3655 = vmatpush.bf16.xpose.msra.mxu0 0
        %3656 = vmatpush.bf16.xpose.msra.mxu0 0
        %3657 = vmatpush.bf16.xpose.msra.mxu0 %v3648
        %3658 = vmatmul.bf16.gmra.mxu0 %v3645
        %v3659 = vpop.f32.mrf.mxu0
        %v3660 = vadd.f32 0.0, %v3659
        %v3661 = vpop.f32.mrf.mxu0
        %3662 = vdwg.mxu0
        %v3664 = vsel %vm1957, %v3329, 0
        %v3667 = vsel %vm1957, %v3389, 0
        %3669 = vmatpush.bf16.xpose.msra.mxu0 0
        %3670 = vmatpush.bf16.xpose.msra.mxu0 0
        %3671 = vmatpush.bf16.xpose.msra.mxu0 0
        %3672 = vmatpush.bf16.xpose.msra.mxu0 0
        %3673 = vmatpush.bf16.xpose.msra.mxu0 0
        %3674 = vmatpush.bf16.xpose.msra.mxu0 0
        %3675 = vmatpush.bf16.xpose.msra.mxu0 0
        %3676 = vmatpush.bf16.xpose.msra.mxu0 %v3667
        %3677 = vmatmul.bf16.gmra.mxu0 %v3664
        %v3678 = vpop.f32.mrf.mxu0
        %v3679 = vadd.f32 0.0, %v3678
        %v3680 = vpop.f32.mrf.mxu0
        %3681 = vdwg.mxu0
        %v3683 = vsel %vm1957, %v3330, 0
        %v3686 = vsel %vm1957, %v3390, 0
        %3688 = vmatpush.bf16.xpose.msra.mxu0 0
        %3689 = vmatpush.bf16.xpose.msra.mxu0 0
        %3690 = vmatpush.bf16.xpose.msra.mxu0 0
        %3691 = vmatpush.bf16.xpose.msra.mxu0 0
        %3692 = vmatpush.bf16.xpose.msra.mxu0 0
        %3693 = vmatpush.bf16.xpose.msra.mxu0 0
        %3694 = vmatpush.bf16.xpose.msra.mxu0 0
        %3695 = vmatpush.bf16.xpose.msra.mxu0 %v3686
        %3696 = vmatmul.bf16.gmra.mxu0 %v3683
        %v3697 = vpop.f32.mrf.mxu0
        %v3698 = vadd.f32 0.0, %v3697
        %v3699 = vpop.f32.mrf.mxu0
        %3700 = vdwg.mxu0
        %v3702 = vsel %vm1957, %v3331, 0
        %v3705 = vsel %vm1957, %v3391, 0
        %3707 = vmatpush.bf16.xpose.msra.mxu0 0
        %3708 = vmatpush.bf16.xpose.msra.mxu0 0
        %3709 = vmatpush.bf16.xpose.msra.mxu0 0
        %3710 = vmatpush.bf16.xpose.msra.mxu0 0
        %3711 = vmatpush.bf16.xpose.msra.mxu0 0
        %3712 = vmatpush.bf16.xpose.msra.mxu0 0
        %3713 = vmatpush.bf16.xpose.msra.mxu0 0
        %3714 = vmatpush.bf16.xpose.msra.mxu0 %v3705
        %3715 = vmatmul.bf16.gmra.mxu0 %v3702
        %v3716 = vpop.f32.mrf.mxu0
        %v3717 = vadd.f32 0.0, %v3716
        %v3718 = vpop.f32.mrf.mxu0
        %3719 = vdwg.mxu0
        %v3721 = vsel %vm1957, %v3332, 0
        %v3724 = vsel %vm1957, %v3392, 0
        %3726 = vmatpush.bf16.xpose.msra.mxu0 0
        %3727 = vmatpush.bf16.xpose.msra.mxu0 0
        %3728 = vmatpush.bf16.xpose.msra.mxu0 0
        %3729 = vmatpush.bf16.xpose.msra.mxu0 0
        %3730 = vmatpush.bf16.xpose.msra.mxu0 0
        %3731 = vmatpush.bf16.xpose.msra.mxu0 0
        %3732 = vmatpush.bf16.xpose.msra.mxu0 0
        %3733 = vmatpush.bf16.xpose.msra.mxu0 %v3724
        %3734 = vmatmul.bf16.gmra.mxu0 %v3721
        %v3735 = vpop.f32.mrf.mxu0
        %v3736 = vadd.f32 0.0, %v3735
        %v3737 = vpop.f32.mrf.mxu0
        %3738 = vdwg.mxu0
        %v3740 = vsel %vm1957, %v3333, 0
        %v3743 = vsel %vm1957, %v3393, 0
        %3745 = vmatpush.bf16.xpose.msra.mxu0 0
        %3746 = vmatpush.bf16.xpose.msra.mxu0 0
        %3747 = vmatpush.bf16.xpose.msra.mxu0 0
        %3748 = vmatpush.bf16.xpose.msra.mxu0 0
        %3749 = vmatpush.bf16.xpose.msra.mxu0 0
        %3750 = vmatpush.bf16.xpose.msra.mxu0 0
        %3751 = vmatpush.bf16.xpose.msra.mxu0 0
        %3752 = vmatpush.bf16.xpose.msra.mxu0 %v3743
        %3753 = vmatmul.bf16.gmra.mxu0 %v3740
        %v3754 = vpop.f32.mrf.mxu0
        %v3755 = vadd.f32 0.0, %v3754
        %v3756 = vpop.f32.mrf.mxu0
        %3757 = vdwg.mxu0
        %v3760 = vperm.slane %v1065, 0
        %v3761 = vperm.slane %v1066, 0
        %v3764 = vadd.f32 %v3470, %v3760
        %v3765 = vadd.f32 %v3489, %v3761
        %v3766 = vadd.f32 %v3508, %v3760
        %v3767 = vadd.f32 %v3527, %v3761
        %v3768 = vadd.f32 %v3546, %v3760
        %v3769 = vadd.f32 %v3565, %v3761
        %v3770 = vadd.f32 %v3584, %v3760
        %v3771 = vadd.f32 %v3603, %v3761
        %v3772 = vadd.f32 %v3622, %v3760
        %v3773 = vadd.f32 %v3641, %v3761
        %v3774 = vadd.f32 %v3660, %v3760
        %v3775 = vadd.f32 %v3679, %v3761
        %v3776 = vadd.f32 %v3698, %v3760
        %v3777 = vadd.f32 %v3717, %v3761
        %v3778 = vadd.f32 %v3736, %v3760
        %v3779 = vadd.f32 %v3755, %v3761
        %v3780 = vsel %vm2284, %v3764, -inf
        %3781 = vmax.xlane.f32.xlu0 %v3780
        %v3782 = vpop.xlane.xlu0 %3781
        %v3783 = vsel %vm2284, %v3765, -inf
        %3784 = vmax.xlane.f32.xlu0 %v3783
        %v3785 = vpop.xlane.xlu0 %3784
        %v3786 = vsel %vm2284, %v3766, -inf
        %3787 = vmax.xlane.f32.xlu0 %v3786
        %v3788 = vpop.xlane.xlu0 %3787
        %v3789 = vsel %vm2284, %v3767, -inf
        %3790 = vmax.xlane.f32.xlu0 %v3789
        %v3791 = vpop.xlane.xlu0 %3790
        %v3792 = vsel %vm2284, %v3768, -inf
        %3793 = vmax.xlane.f32.xlu0 %v3792
        %v3794 = vpop.xlane.xlu0 %3793
        %v3795 = vsel %vm2284, %v3769, -inf
        %3796 = vmax.xlane.f32.xlu0 %v3795
        %v3797 = vpop.xlane.xlu0 %3796
        %v3798 = vsel %vm2284, %v3770, -inf
        %3799 = vmax.xlane.f32.xlu0 %v3798
        %v3800 = vpop.xlane.xlu0 %3799
        %v3801 = vsel %vm2284, %v3771, -inf
        %3802 = vmax.xlane.f32.xlu0 %v3801
        %v3803 = vpop.xlane.xlu0 %3802
        %v3804 = vsel %vm2284, %v3772, -inf
        %3805 = vmax.xlane.f32.xlu0 %v3804
        %v3806 = vpop.xlane.xlu0 %3805
        %v3807 = vsel %vm2284, %v3773, -inf
        %3808 = vmax.xlane.f32.xlu0 %v3807
        %v3809 = vpop.xlane.xlu0 %3808
        %v3810 = vsel %vm2284, %v3774, -inf
        %3811 = vmax.xlane.f32.xlu0 %v3810
        %v3812 = vpop.xlane.xlu0 %3811
        %v3813 = vsel %vm2284, %v3775, -inf
        %3814 = vmax.xlane.f32.xlu0 %v3813
        %v3815 = vpop.xlane.xlu0 %3814
        %v3816 = vsel %vm2284, %v3776, -inf
        %3817 = vmax.xlane.f32.xlu0 %v3816
        %v3818 = vpop.xlane.xlu0 %3817
        %v3819 = vsel %vm2284, %v3777, -inf
        %3820 = vmax.xlane.f32.xlu0 %v3819
        %v3821 = vpop.xlane.xlu0 %3820
        %v3822 = vsel %vm2284, %v3778, -inf
        %3823 = vmax.xlane.f32.xlu0 %v3822
        %v3824 = vpop.xlane.xlu0 %3823
        %v3825 = vsel %vm2284, %v3779, -inf
        %3826 = vmax.xlane.f32.xlu0 %v3825
        %v3827 = vpop.xlane.xlu0 %3826
        %v3828 = vsub.f32 %v3764, %v3782
        %v3829 = vsub.f32 %v3765, %v3785
        %v3830 = vsub.f32 %v3766, %v3788
        %v3831 = vsub.f32 %v3767, %v3791
        %v3832 = vsub.f32 %v3768, %v3794
        %v3833 = vsub.f32 %v3769, %v3797
        %v3834 = vsub.f32 %v3770, %v3800
        %v3835 = vsub.f32 %v3771, %v3803
        %v3836 = vsub.f32 %v3772, %v3806
        %v3837 = vsub.f32 %v3773, %v3809
        %v3838 = vsub.f32 %v3774, %v3812
        %v3839 = vsub.f32 %v3775, %v3815
        %v3840 = vsub.f32 %v3776, %v3818
        %v3841 = vsub.f32 %v3777, %v3821
        %v3842 = vsub.f32 %v3778, %v3824
        %v3843 = vsub.f32 %v3779, %v3827
        %v3844 = vmul.f32 %v3828, 1.442695
        %v3845 = vpow.pop %v3844
        %v3846 = vmul.f32 %v3829, 1.442695
        %v3847 = vpow.pop %v3846
        %v3848 = vmul.f32 %v3830, 1.442695
        %v3849 = vpow.pop %v3848
        %v3850 = vmul.f32 %v3831, 1.442695
        %v3851 = vpow.pop %v3850
        %v3852 = vmul.f32 %v3832, 1.442695
        %v3853 = vpow.pop %v3852
        %v3854 = vmul.f32 %v3833, 1.442695
        %v3855 = vpow.pop %v3854
        %v3856 = vmul.f32 %v3834, 1.442695
        %v3857 = vpow.pop %v3856
        %v3858 = vmul.f32 %v3835, 1.442695
        %v3859 = vpow.pop %v3858
        %v3860 = vmul.f32 %v3836, 1.442695
        %v3861 = vpow.pop %v3860
        %v3862 = vmul.f32 %v3837, 1.442695
        %v3863 = vpow.pop %v3862
        %v3864 = vmul.f32 %v3838, 1.442695
        %v3865 = vpow.pop %v3864
        %v3866 = vmul.f32 %v3839, 1.442695
        %v3867 = vpow.pop %v3866
        %v3868 = vmul.f32 %v3840, 1.442695
        %v3869 = vpow.pop %v3868
        %v3870 = vmul.f32 %v3841, 1.442695
        %v3871 = vpow.pop %v3870
        %v3872 = vmul.f32 %v3842, 1.442695
        %v3873 = vpow.pop %v3872
        %v3874 = vmul.f32 %v3843, 1.442695
        %v3875 = vpow.pop %v3874
        %v3876 = vsel %vm2284, %v3845, 0.0
        %3877 = vadd.xlane.f32.xlu0 %v3876
        %v3878 = vpop.xlane.xlu0 %3877
        %v3879 = vsel %vm2284, %v3847, 0.0
        %3880 = vadd.xlane.f32.xlu0 %v3879
        %v3881 = vpop.xlane.xlu0 %3880
        %v3882 = vsel %vm2284, %v3849, 0.0
        %3883 = vadd.xlane.f32.xlu0 %v3882
        %v3884 = vpop.xlane.xlu0 %3883
        %v3885 = vsel %vm2284, %v3851, 0.0
        %3886 = vadd.xlane.f32.xlu0 %v3885
        %v3887 = vpop.xlane.xlu0 %3886
        %v3888 = vsel %vm2284, %v3853, 0.0
        %3889 = vadd.xlane.f32.xlu0 %v3888
        %v3890 = vpop.xlane.xlu0 %3889
        %v3891 = vsel %vm2284, %v3855, 0.0
        %3892 = vadd.xlane.f32.xlu0 %v3891
        %v3893 = vpop.xlane.xlu0 %3892
        %v3894 = vsel %vm2284, %v3857, 0.0
        %3895 = vadd.xlane.f32.xlu0 %v3894
        %v3896 = vpop.xlane.xlu0 %3895
        %v3897 = vsel %vm2284, %v3859, 0.0
        %3898 = vadd.xlane.f32.xlu0 %v3897
        %v3899 = vpop.xlane.xlu0 %3898
        %v3900 = vsel %vm2284, %v3861, 0.0
        %3901 = vadd.xlane.f32.xlu0 %v3900
        %v3902 = vpop.xlane.xlu0 %3901
        %v3903 = vsel %vm2284, %v3863, 0.0
        %3904 = vadd.xlane.f32.xlu0 %v3903
        %v3905 = vpop.xlane.xlu0 %3904
        %v3906 = vsel %vm2284, %v3865, 0.0
        %3907 = vadd.xlane.f32.xlu0 %v3906
        %v3908 = vpop.xlane.xlu0 %3907
        %v3909 = vsel %vm2284, %v3867, 0.0
        %3910 = vadd.xlane.f32.xlu0 %v3909
        %v3911 = vpop.xlane.xlu0 %3910
        %v3912 = vsel %vm2284, %v3869, 0.0
        %3913 = vadd.xlane.f32.xlu0 %v3912
        %v3914 = vpop.xlane.xlu0 %3913
        %v3915 = vsel %vm2284, %v3871, 0.0
        %3916 = vadd.xlane.f32.xlu0 %v3915
        %v3917 = vpop.xlane.xlu0 %3916
        %v3918 = vsel %vm2284, %v3873, 0.0
        %3919 = vadd.xlane.f32.xlu0 %v3918
        %v3920 = vpop.xlane.xlu0 %3919
        %v3921 = vsel %vm2284, %v3875, 0.0
        %3922 = vadd.xlane.f32.xlu0 %v3921
        %v3923 = vpop.xlane.xlu0 %3922
        %v3924 = vrcp.pop %v3878
        %v3925 = vrcp.pop %v3881
        %v3926 = vrcp.pop %v3884
        %v3927 = vrcp.pop %v3887
        %v3928 = vrcp.pop %v3890
        %v3929 = vrcp.pop %v3893
        %v3930 = vrcp.pop %v3896
        %v3931 = vrcp.pop %v3899
        %v3932 = vrcp.pop %v3902
        %v3933 = vrcp.pop %v3905
        %v3934 = vrcp.pop %v3908
        %v3935 = vrcp.pop %v3911
        %v3936 = vrcp.pop %v3914
        %v3937 = vrcp.pop %v3917
        %v3938 = vrcp.pop %v3920
        %v3939 = vrcp.pop %v3923
        %v3940 = vmul.f32 %v3845, %v3924
        %v3941 = vmul.f32 %v3847, %v3925
        %v3942 = vmul.f32 %v3849, %v3926
        %v3943 = vmul.f32 %v3851, %v3927
        %v3944 = vmul.f32 %v3853, %v3928
        %v3945 = vmul.f32 %v3855, %v3929
        %v3946 = vmul.f32 %v3857, %v3930
        %v3947 = vmul.f32 %v3859, %v3931
        %v3948 = vmul.f32 %v3861, %v3932
        %v3949 = vmul.f32 %v3863, %v3933
        %v3950 = vmul.f32 %v3865, %v3934
        %v3951 = vmul.f32 %v3867, %v3935
        %v3952 = vmul.f32 %v3869, %v3936
        %v3953 = vmul.f32 %v3871, %v3937
        %v3954 = vmul.f32 %v3873, %v3938
        %v3955 = vmul.f32 %v3875, %v3939
        %v3956 = vpack.c.bf16 %v3940, %v3940
        %v3957 = vpack.c.bf16 %v3941, %v3941
        %v3958 = vpack.c.bf16 %v3942, %v3942
        %v3959 = vpack.c.bf16 %v3943, %v3943
        %v3960 = vpack.c.bf16 %v3944, %v3944
        %v3961 = vpack.c.bf16 %v3945, %v3945
        %v3962 = vpack.c.bf16 %v3946, %v3946
        %v3963 = vpack.c.bf16 %v3947, %v3947
        %v3964 = vpack.c.bf16 %v3948, %v3948
        %v3965 = vpack.c.bf16 %v3949, %v3949
        %v3966 = vpack.c.bf16 %v3950, %v3950
        %v3967 = vpack.c.bf16 %v3951, %v3951
        %v3968 = vpack.c.bf16 %v3952, %v3952
        %v3969 = vpack.c.bf16 %v3953, %v3953
        %v3970 = vpack.c.bf16 %v3954, %v3954
        %v3971 = vpack.c.bf16 %v3955, %v3955
        %v3973 = vsel %vm2284, %v3956, 0
        %v3976 = vsel %vm2480, %v3438, 0
        %3978 = vmatpush.bf16.msra.mxu0 0
        %3979 = vmatpush.bf16.msra.mxu0 0
        %3980 = vmatpush.bf16.msra.mxu0 0
        %3981 = vmatpush.bf16.msra.mxu0 0
        %3982 = vmatpush.bf16.msra.mxu0 0
        %3983 = vmatpush.bf16.msra.mxu0 0
        %3984 = vmatpush.bf16.msra.mxu0 0
        %3985 = vmatpush.bf16.msra.mxu0 %v3976
        %3986 = vmatmul.bf16.gmra.mxu0 %v3973
        %v3987 = vpop.f32.mrf.mxu0
        %v3988 = vadd.f32 0.0, %v3987
        %v3989 = vpop.f32.mrf.mxu0
        %3990 = vdwg.mxu0
        %v3992 = vsel %vm2284, %v3957, 0
        %v3995 = vsel %vm2480, %v3439, 0
        %3997 = vmatpush.bf16.msra.mxu0 0
        %3998 = vmatpush.bf16.msra.mxu0 0
        %3999 = vmatpush.bf16.msra.mxu0 0
        %4000 = vmatpush.bf16.msra.mxu0 0
        %4001 = vmatpush.bf16.msra.mxu0 0
        %4002 = vmatpush.bf16.msra.mxu0 0
        %4003 = vmatpush.bf16.msra.mxu0 0
        %4004 = vmatpush.bf16.msra.mxu0 %v3995
        %4005 = vmatmul.bf16.gmra.mxu0 %v3992
        %v4006 = vpop.f32.mrf.mxu0
        %v4007 = vadd.f32 0.0, %v4006
        %v4008 = vpop.f32.mrf.mxu0
        %4009 = vdwg.mxu0
        %v4011 = vsel %vm2284, %v3958, 0
        %v4014 = vsel %vm2480, %v3440, 0
        %4016 = vmatpush.bf16.msra.mxu0 0
        %4017 = vmatpush.bf16.msra.mxu0 0
        %4018 = vmatpush.bf16.msra.mxu0 0
        %4019 = vmatpush.bf16.msra.mxu0 0
        %4020 = vmatpush.bf16.msra.mxu0 0
        %4021 = vmatpush.bf16.msra.mxu0 0
        %4022 = vmatpush.bf16.msra.mxu0 0
        %4023 = vmatpush.bf16.msra.mxu0 %v4014
        %4024 = vmatmul.bf16.gmra.mxu0 %v4011
        %v4025 = vpop.f32.mrf.mxu0
        %v4026 = vadd.f32 0.0, %v4025
        %v4027 = vpop.f32.mrf.mxu0
        %4028 = vdwg.mxu0
        %v4030 = vsel %vm2284, %v3959, 0
        %v4033 = vsel %vm2480, %v3441, 0
        %4035 = vmatpush.bf16.msra.mxu0 0
        %4036 = vmatpush.bf16.msra.mxu0 0
        %4037 = vmatpush.bf16.msra.mxu0 0
        %4038 = vmatpush.bf16.msra.mxu0 0
        %4039 = vmatpush.bf16.msra.mxu0 0
        %4040 = vmatpush.bf16.msra.mxu0 0
        %4041 = vmatpush.bf16.msra.mxu0 0
        %4042 = vmatpush.bf16.msra.mxu0 %v4033
        %4043 = vmatmul.bf16.gmra.mxu0 %v4030
        %v4044 = vpop.f32.mrf.mxu0
        %v4045 = vadd.f32 0.0, %v4044
        %v4046 = vpop.f32.mrf.mxu0
        %4047 = vdwg.mxu0
        %v4049 = vsel %vm2284, %v3960, 0
        %v4052 = vsel %vm2480, %v3442, 0
        %4054 = vmatpush.bf16.msra.mxu0 0
        %4055 = vmatpush.bf16.msra.mxu0 0
        %4056 = vmatpush.bf16.msra.mxu0 0
        %4057 = vmatpush.bf16.msra.mxu0 0
        %4058 = vmatpush.bf16.msra.mxu0 0
        %4059 = vmatpush.bf16.msra.mxu0 0
        %4060 = vmatpush.bf16.msra.mxu0 0
        %4061 = vmatpush.bf16.msra.mxu0 %v4052
        %4062 = vmatmul.bf16.gmra.mxu0 %v4049
        %v4063 = vpop.f32.mrf.mxu0
        %v4064 = vadd.f32 0.0, %v4063
        %v4065 = vpop.f32.mrf.mxu0
        %4066 = vdwg.mxu0
        %v4068 = vsel %vm2284, %v3961, 0
        %v4071 = vsel %vm2480, %v3443, 0
        %4073 = vmatpush.bf16.msra.mxu0 0
        %4074 = vmatpush.bf16.msra.mxu0 0
        %4075 = vmatpush.bf16.msra.mxu0 0
        %4076 = vmatpush.bf16.msra.mxu0 0
        %4077 = vmatpush.bf16.msra.mxu0 0
        %4078 = vmatpush.bf16.msra.mxu0 0
        %4079 = vmatpush.bf16.msra.mxu0 0
        %4080 = vmatpush.bf16.msra.mxu0 %v4071
        %4081 = vmatmul.bf16.gmra.mxu0 %v4068
        %v4082 = vpop.f32.mrf.mxu0
        %v4083 = vadd.f32 0.0, %v4082
        %v4084 = vpop.f32.mrf.mxu0
        %4085 = vdwg.mxu0
        %v4087 = vsel %vm2284, %v3962, 0
        %v4090 = vsel %vm2480, %v3444, 0
        %4092 = vmatpush.bf16.msra.mxu0 0
        %4093 = vmatpush.bf16.msra.mxu0 0
        %4094 = vmatpush.bf16.msra.mxu0 0
        %4095 = vmatpush.bf16.msra.mxu0 0
        %4096 = vmatpush.bf16.msra.mxu0 0
        %4097 = vmatpush.bf16.msra.mxu0 0
        %4098 = vmatpush.bf16.msra.mxu0 0
        %4099 = vmatpush.bf16.msra.mxu0 %v4090
        %4100 = vmatmul.bf16.gmra.mxu0 %v4087
        %v4101 = vpop.f32.mrf.mxu0
        %v4102 = vadd.f32 0.0, %v4101
        %v4103 = vpop.f32.mrf.mxu0
        %4104 = vdwg.mxu0
        %v4106 = vsel %vm2284, %v3963, 0
        %v4109 = vsel %vm2480, %v3445, 0
        %4111 = vmatpush.bf16.msra.mxu0 0
        %4112 = vmatpush.bf16.msra.mxu0 0
        %4113 = vmatpush.bf16.msra.mxu0 0
        %4114 = vmatpush.bf16.msra.mxu0 0
        %4115 = vmatpush.bf16.msra.mxu0 0
        %4116 = vmatpush.bf16.msra.mxu0 0
        %4117 = vmatpush.bf16.msra.mxu0 0
        %4118 = vmatpush.bf16.msra.mxu0 %v4109
        %4119 = vmatmul.bf16.gmra.mxu0 %v4106
        %v4120 = vpop.f32.mrf.mxu0
        %v4121 = vadd.f32 0.0, %v4120
        %v4122 = vpop.f32.mrf.mxu0
        %4123 = vdwg.mxu0
        %v4125 = vsel %vm2284, %v3964, 0
        %v4128 = vsel %vm2480, %v3446, 0
        %4130 = vmatpush.bf16.msra.mxu0 0
        %4131 = vmatpush.bf16.msra.mxu0 0
        %4132 = vmatpush.bf16.msra.mxu0 0
        %4133 = vmatpush.bf16.msra.mxu0 0
        %4134 = vmatpush.bf16.msra.mxu0 0
        %4135 = vmatpush.bf16.msra.mxu0 0
        %4136 = vmatpush.bf16.msra.mxu0 0
        %4137 = vmatpush.bf16.msra.mxu0 %v4128
        %4138 = vmatmul.bf16.gmra.mxu0 %v4125
        %v4139 = vpop.f32.mrf.mxu0
        %v4140 = vadd.f32 0.0, %v4139
        %v4141 = vpop.f32.mrf.mxu0
        %4142 = vdwg.mxu0
        %v4144 = vsel %vm2284, %v3965, 0
        %v4147 = vsel %vm2480, %v3447, 0
        %4149 = vmatpush.bf16.msra.mxu0 0
        %4150 = vmatpush.bf16.msra.mxu0 0
        %4151 = vmatpush.bf16.msra.mxu0 0
        %4152 = vmatpush.bf16.msra.mxu0 0
        %4153 = vmatpush.bf16.msra.mxu0 0
        %4154 = vmatpush.bf16.msra.mxu0 0
        %4155 = vmatpush.bf16.msra.mxu0 0
        %4156 = vmatpush.bf16.msra.mxu0 %v4147
        %4157 = vmatmul.bf16.gmra.mxu0 %v4144
        %v4158 = vpop.f32.mrf.mxu0
        %v4159 = vadd.f32 0.0, %v4158
        %v4160 = vpop.f32.mrf.mxu0
        %4161 = vdwg.mxu0
        %v4163 = vsel %vm2284, %v3966, 0
        %v4166 = vsel %vm2480, %v3448, 0
        %4168 = vmatpush.bf16.msra.mxu0 0
        %4169 = vmatpush.bf16.msra.mxu0 0
        %4170 = vmatpush.bf16.msra.mxu0 0
        %4171 = vmatpush.bf16.msra.mxu0 0
        %4172 = vmatpush.bf16.msra.mxu0 0
        %4173 = vmatpush.bf16.msra.mxu0 0
        %4174 = vmatpush.bf16.msra.mxu0 0
        %4175 = vmatpush.bf16.msra.mxu0 %v4166
        %4176 = vmatmul.bf16.gmra.mxu0 %v4163
        %v4177 = vpop.f32.mrf.mxu0
        %v4178 = vadd.f32 0.0, %v4177
        %v4179 = vpop.f32.mrf.mxu0
        %4180 = vdwg.mxu0
        %v4182 = vsel %vm2284, %v3967, 0
        %v4185 = vsel %vm2480, %v3449, 0
        %4187 = vmatpush.bf16.msra.mxu0 0
        %4188 = vmatpush.bf16.msra.mxu0 0
        %4189 = vmatpush.bf16.msra.mxu0 0
        %4190 = vmatpush.bf16.msra.mxu0 0
        %4191 = vmatpush.bf16.msra.mxu0 0
        %4192 = vmatpush.bf16.msra.mxu0 0
        %4193 = vmatpush.bf16.msra.mxu0 0
        %4194 = vmatpush.bf16.msra.mxu0 %v4185
        %4195 = vmatmul.bf16.gmra.mxu0 %v4182
        %v4196 = vpop.f32.mrf.mxu0
        %v4197 = vadd.f32 0.0, %v4196
        %v4198 = vpop.f32.mrf.mxu0
        %4199 = vdwg.mxu0
        %v4201 = vsel %vm2284, %v3968, 0
        %v4204 = vsel %vm2480, %v3450, 0
        %4206 = vmatpush.bf16.msra.mxu0 0
        %4207 = vmatpush.bf16.msra.mxu0 0
        %4208 = vmatpush.bf16.msra.mxu0 0
        %4209 = vmatpush.bf16.msra.mxu0 0
        %4210 = vmatpush.bf16.msra.mxu0 0
        %4211 = vmatpush.bf16.msra.mxu0 0
        %4212 = vmatpush.bf16.msra.mxu0 0
        %4213 = vmatpush.bf16.msra.mxu0 %v4204
        %4214 = vmatmul.bf16.gmra.mxu0 %v4201
        %v4215 = vpop.f32.mrf.mxu0
        %v4216 = vadd.f32 0.0, %v4215
        %v4217 = vpop.f32.mrf.mxu0
        %4218 = vdwg.mxu0
        %v4220 = vsel %vm2284, %v3969, 0
        %v4223 = vsel %vm2480, %v3451, 0
        %4225 = vmatpush.bf16.msra.mxu0 0
        %4226 = vmatpush.bf16.msra.mxu0 0
        %4227 = vmatpush.bf16.msra.mxu0 0
        %4228 = vmatpush.bf16.msra.mxu0 0
        %4229 = vmatpush.bf16.msra.mxu0 0
        %4230 = vmatpush.bf16.msra.mxu0 0
        %4231 = vmatpush.bf16.msra.mxu0 0
        %4232 = vmatpush.bf16.msra.mxu0 %v4223
        %4233 = vmatmul.bf16.gmra.mxu0 %v4220
        %v4234 = vpop.f32.mrf.mxu0
        %v4235 = vadd.f32 0.0, %v4234
        %v4236 = vpop.f32.mrf.mxu0
        %4237 = vdwg.mxu0
        %v4239 = vsel %vm2284, %v3970, 0
        %v4242 = vsel %vm2480, %v3452, 0
        %4244 = vmatpush.bf16.msra.mxu0 0
        %4245 = vmatpush.bf16.msra.mxu0 0
        %4246 = vmatpush.bf16.msra.mxu0 0
        %4247 = vmatpush.bf16.msra.mxu0 0
        %4248 = vmatpush.bf16.msra.mxu0 0
        %4249 = vmatpush.bf16.msra.mxu0 0
        %4250 = vmatpush.bf16.msra.mxu0 0
        %4251 = vmatpush.bf16.msra.mxu0 %v4242
        %4252 = vmatmul.bf16.gmra.mxu0 %v4239
        %v4253 = vpop.f32.mrf.mxu0
        %v4254 = vadd.f32 0.0, %v4253
        %v4255 = vpop.f32.mrf.mxu0
        %4256 = vdwg.mxu0
        %v4258 = vsel %vm2284, %v3971, 0
        %v4261 = vsel %vm2480, %v3453, 0
        %4263 = vmatpush.bf16.msra.mxu0 0
        %4264 = vmatpush.bf16.msra.mxu0 0
        %4265 = vmatpush.bf16.msra.mxu0 0
        %4266 = vmatpush.bf16.msra.mxu0 0
        %4267 = vmatpush.bf16.msra.mxu0 0
        %4268 = vmatpush.bf16.msra.mxu0 0
        %4269 = vmatpush.bf16.msra.mxu0 0
        %4270 = vmatpush.bf16.msra.mxu0 %v4261
        %4271 = vmatmul.bf16.gmra.mxu0 %v4258
        %v4272 = vpop.f32.mrf.mxu0
        %v4273 = vadd.f32 0.0, %v4272
        %v4274 = vpop.f32.mrf.mxu0
        %4275 = vdwg.mxu0
        %v4276 = vld [vmem:[#allocation17] sm:$0xf]
        %v4277 = vld [vmem:[#allocation17 + $0x4] sm:$0xf]
        %v4278 = vpack.c.bf16 %v4007, %v3988
        %v4281 = vunpack.c.l.b16 %v4276
        %v4282 = vunpack.c.l.b16 %v4277
        %v4283 = vpack.c.b16 %v4282, %v4281
        %v4286 = vsel %vm1957, %v4278, 0
        %4288 = vmatpush.bf16.msra.mxu0 0
        %4289 = vmatpush.bf16.msra.mxu0 0
        %4290 = vmatpush.bf16.msra.mxu0 0
        %4291 = vmatpush.bf16.msra.mxu0 0
        %4292 = vmatpush.bf16.msra.mxu0 0
        %4293 = vmatpush.bf16.msra.mxu0 0
        %4294 = vmatpush.bf16.msra.mxu0 0
        %4295 = vmatpush.bf16.msra.mxu0 %v4283
        %4296 = vmatmul.bf16.gmra.mxu0 %v4286
        %v4297 = vpop.f32.mrf.mxu0
        %v4298 = vadd.f32 0.0, %v4297
        %v4299 = vpop.f32.mrf.mxu0
        %v4300 = vadd.f32 0.0, %v4299
        %4301 = vdwg.mxu0
        %v4302 = vperm.slane %v1054, 2
        %v4303 = vadd.f32 %v4302, %v4298
        %v4304 = vadd.f32 %v4302, %v4300
        %v4305 = vld [vmem:[#allocation17 + $0x8] sm:$0xf]
        %v4306 = vld [vmem:[#allocation17 + $0xc] sm:$0xf]
        %v4307 = vpack.c.bf16 %v4045, %v4026
        %v4310 = vunpack.c.l.b16 %v4305
        %v4311 = vunpack.c.l.b16 %v4306
        %v4312 = vpack.c.b16 %v4311, %v4310
        %v4315 = vsel %vm1957, %v4307, 0
        %4317 = vmatpush.bf16.msra.mxu0 0
        %4318 = vmatpush.bf16.msra.mxu0 0
        %4319 = vmatpush.bf16.msra.mxu0 0
        %4320 = vmatpush.bf16.msra.mxu0 0
        %4321 = vmatpush.bf16.msra.mxu0 0
        %4322 = vmatpush.bf16.msra.mxu0 0
        %4323 = vmatpush.bf16.msra.mxu0 0
        %4324 = vmatpush.bf16.msra.mxu0 %v4312
        %4325 = vmatmul.bf16.gmra.mxu0 %v4315
        %v4326 = vpop.f32.mrf.mxu0
        %v4327 = vadd.f32 0.0, %v4326
        %v4328 = vpop.f32.mrf.mxu0
        %v4329 = vadd.f32 0.0, %v4328
        %4330 = vdwg.mxu0
        %v4331 = vadd.f32 %v4303, %v4327
        %v4332 = vadd.f32 %v4304, %v4329
        %v4333 = vld [vmem:[#allocation17 + $0x10] sm:$0xf]
        %v4334 = vld [vmem:[#allocation17 + $0x14] sm:$0xf]
        %v4335 = vpack.c.bf16 %v4083, %v4064
        %v4338 = vunpack.c.l.b16 %v4333
        %v4339 = vunpack.c.l.b16 %v4334
        %v4340 = vpack.c.b16 %v4339, %v4338
        %v4343 = vsel %vm1957, %v4335, 0
        %4345 = vmatpush.bf16.msra.mxu0 0
        %4346 = vmatpush.bf16.msra.mxu0 0
        %4347 = vmatpush.bf16.msra.mxu0 0
        %4348 = vmatpush.bf16.msra.mxu0 0
        %4349 = vmatpush.bf16.msra.mxu0 0
        %4350 = vmatpush.bf16.msra.mxu0 0
        %4351 = vmatpush.bf16.msra.mxu0 0
        %4352 = vmatpush.bf16.msra.mxu0 %v4340
        %4353 = vmatmul.bf16.gmra.mxu0 %v4343
        %v4354 = vpop.f32.mrf.mxu0
        %v4355 = vadd.f32 0.0, %v4354
        %v4356 = vpop.f32.mrf.mxu0
        %v4357 = vadd.f32 0.0, %v4356
        %4358 = vdwg.mxu0
        %v4359 = vadd.f32 %v4331, %v4355
        %v4360 = vadd.f32 %v4332, %v4357
        %v4361 = vld [vmem:[#allocation17 + $0x18] sm:$0xf]
        %v4362 = vld [vmem:[#allocation17 + $0x1c] sm:$0xf]
        %v4363 = vpack.c.bf16 %v4121, %v4102
        %v4366 = vunpack.c.l.b16 %v4361
        %v4367 = vunpack.c.l.b16 %v4362
        %v4368 = vpack.c.b16 %v4367, %v4366
        %v4371 = vsel %vm1957, %v4363, 0
        %4373 = vmatpush.bf16.msra.mxu0 0
        %4374 = vmatpush.bf16.msra.mxu0 0
        %4375 = vmatpush.bf16.msra.mxu0 0
        %4376 = vmatpush.bf16.msra.mxu0 0
        %4377 = vmatpush.bf16.msra.mxu0 0
        %4378 = vmatpush.bf16.msra.mxu0 0
        %4379 = vmatpush.bf16.msra.mxu0 0
        %4380 = vmatpush.bf16.msra.mxu0 %v4368
        %4381 = vmatmul.bf16.gmra.mxu0 %v4371
        %v4382 = vpop.f32.mrf.mxu0
        %v4383 = vadd.f32 0.0, %v4382
        %v4384 = vpop.f32.mrf.mxu0
        %v4385 = vadd.f32 0.0, %v4384
        %4386 = vdwg.mxu0
        %v4387 = vadd.f32 %v4359, %v4383
        %v4388 = vadd.f32 %v4360, %v4385
        %v4389 = vld [vmem:[#allocation17 + $0x20] sm:$0xf]
        %v4390 = vld [vmem:[#allocation17 + $0x24] sm:$0xf]
        %v4391 = vpack.c.bf16 %v4159, %v4140
        %v4394 = vunpack.c.l.b16 %v4389
        %v4395 = vunpack.c.l.b16 %v4390
        %v4396 = vpack.c.b16 %v4395, %v4394
        %v4399 = vsel %vm1957, %v4391, 0
        %4401 = vmatpush.bf16.msra.mxu0 0
        %4402 = vmatpush.bf16.msra.mxu0 0
        %4403 = vmatpush.bf16.msra.mxu0 0
        %4404 = vmatpush.bf16.msra.mxu0 0
        %4405 = vmatpush.bf16.msra.mxu0 0
        %4406 = vmatpush.bf16.msra.mxu0 0
        %4407 = vmatpush.bf16.msra.mxu0 0
        %4408 = vmatpush.bf16.msra.mxu0 %v4396
        %4409 = vmatmul.bf16.gmra.mxu0 %v4399
        %v4410 = vpop.f32.mrf.mxu0
        %v4411 = vadd.f32 0.0, %v4410
        %v4412 = vpop.f32.mrf.mxu0
        %v4413 = vadd.f32 0.0, %v4412
        %4414 = vdwg.mxu0
        %v4415 = vadd.f32 %v4387, %v4411
        %v4416 = vadd.f32 %v4388, %v4413
        %v4417 = vld [vmem:[#allocation17 + $0x28] sm:$0xf]
        %v4418 = vld [vmem:[#allocation17 + $0x2c] sm:$0xf]
        %v4419 = vpack.c.bf16 %v4197, %v4178
        %v4422 = vunpack.c.l.b16 %v4417
        %v4423 = vunpack.c.l.b16 %v4418
        %v4424 = vpack.c.b16 %v4423, %v4422
        %v4427 = vsel %vm1957, %v4419, 0
        %4429 = vmatpush.bf16.msra.mxu0 0
        %4430 = vmatpush.bf16.msra.mxu0 0
        %4431 = vmatpush.bf16.msra.mxu0 0
        %4432 = vmatpush.bf16.msra.mxu0 0
        %4433 = vmatpush.bf16.msra.mxu0 0
        %4434 = vmatpush.bf16.msra.mxu0 0
        %4435 = vmatpush.bf16.msra.mxu0 0
        %4436 = vmatpush.bf16.msra.mxu0 %v4424
        %4437 = vmatmul.bf16.gmra.mxu0 %v4427
        %v4438 = vpop.f32.mrf.mxu0
        %v4439 = vadd.f32 0.0, %v4438
        %v4440 = vpop.f32.mrf.mxu0
        %v4441 = vadd.f32 0.0, %v4440
        %4442 = vdwg.mxu0
        %v4443 = vadd.f32 %v4415, %v4439
        %v4444 = vadd.f32 %v4416, %v4441
        %v4445 = vld [vmem:[#allocation17 + $0x30] sm:$0xf]
        %v4446 = vld [vmem:[#allocation17 + $0x34] sm:$0xf]
        %v4447 = vpack.c.bf16 %v4235, %v4216
        %v4450 = vunpack.c.l.b16 %v4445
        %v4451 = vunpack.c.l.b16 %v4446
        %v4452 = vpack.c.b16 %v4451, %v4450
        %v4455 = vsel %vm1957, %v4447, 0
        %4457 = vmatpush.bf16.msra.mxu0 0
        %4458 = vmatpush.bf16.msra.mxu0 0
        %4459 = vmatpush.bf16.msra.mxu0 0
        %4460 = vmatpush.bf16.msra.mxu0 0
        %4461 = vmatpush.bf16.msra.mxu0 0
        %4462 = vmatpush.bf16.msra.mxu0 0
        %4463 = vmatpush.bf16.msra.mxu0 0
        %4464 = vmatpush.bf16.msra.mxu0 %v4452
        %4465 = vmatmul.bf16.gmra.mxu0 %v4455
        %v4466 = vpop.f32.mrf.mxu0
        %v4467 = vadd.f32 0.0, %v4466
        %v4468 = vpop.f32.mrf.mxu0
        %v4469 = vadd.f32 0.0, %v4468
        %4470 = vdwg.mxu0
        %v4471 = vadd.f32 %v4443, %v4467
        %v4472 = vadd.f32 %v4444, %v4469
        %v4473 = vld [vmem:[#allocation17 + $0x38] sm:$0xf]
        %v4474 = vld [vmem:[#allocation17 + $0x3c] sm:$0xf]
        %v4475 = vpack.c.bf16 %v4273, %v4254
        %v4478 = vunpack.c.l.b16 %v4473
        %v4479 = vunpack.c.l.b16 %v4474
        %v4480 = vpack.c.b16 %v4479, %v4478
        %v4483 = vsel %vm1957, %v4475, 0
        %4485 = vmatpush.bf16.msra.mxu0 0
        %4486 = vmatpush.bf16.msra.mxu0 0
        %4487 = vmatpush.bf16.msra.mxu0 0
        %4488 = vmatpush.bf16.msra.mxu0 0
        %4489 = vmatpush.bf16.msra.mxu0 0
        %4490 = vmatpush.bf16.msra.mxu0 0
        %4491 = vmatpush.bf16.msra.mxu0 0
        %4492 = vmatpush.bf16.msra.mxu0 %v4480
        %4493 = vmatmul.bf16.gmra.mxu0 %v4483
        %v4494 = vpop.f32.mrf.mxu0
        %v4495 = vadd.f32 0.0, %v4494
        %v4496 = vpop.f32.mrf.mxu0
        %v4497 = vadd.f32 0.0, %v4496
        %4498 = vdwg.mxu0
        %v4499 = vadd.f32 %v4471, %v4495
        %v4500 = vadd.f32 %v4472, %v4497
        %v4501 = vadd.f32 %v3053, %v4499
        %v4502 = vadd.f32 %v3054, %v4500
        %4503 = vadd.xlane.f32.xlu0 %v4501
        %v4504 = vpop.xlane.xlu0 %4503
        %4505 = vadd.xlane.f32.xlu0 %v4502
        %v4506 = vpop.xlane.xlu0 %4505
        %v4507 = vmul.f32 %v4504, %v1523
        %v4508 = vmul.f32 %v4506, %v1523
        %v4509 = vsub.f32 %v4501, %v4507
        %v4510 = vsub.f32 %v4502, %v4508
        %v4511 = vmul.f32 %v4509, %v4509
        %v4512 = vmul.f32 %v4510, %v4510
        %4513 = vadd.xlane.f32.xlu0 %v4511
        %v4514 = vpop.xlane.xlu0 %4513
        %4515 = vadd.xlane.f32.xlu0 %v4512
        %v4516 = vpop.xlane.xlu0 %4515
        %v4517 = vmul.f32 %v4514, %v1523
        %v4518 = vmul.f32 %v4516, %v1523
        %v4519 = vadd.f32 %v4517, 1e-05
        %v4520 = vadd.f32 %v4518, 1e-05
        %v4521 = vrsqrt.pop %v4519
        %v4522 = vmul.f32 %v4521, %v4519
        %v4523 = vmul.f32 %v4522, %v4521
        %v4524 = vmul.f32 0.5, %v4523
        %v4525 = vsub.f32 1.5, %v4524
        %v4526 = vmul.f32 %v4521, %v4525
        %vm4527 = vweird.f32 %v4519
        %vm4528 = vweird.f32 %v4521
        %vm4529 = vmor %vm4527, %vm4528
        %v4530 = vsel %vm4529, %v4521, %v4526
        %v4531 = vrsqrt.pop %v4520
        %v4532 = vmul.f32 %v4531, %v4520
        %v4533 = vmul.f32 %v4532, %v4531
        %v4534 = vmul.f32 0.5, %v4533
        %v4535 = vsub.f32 1.5, %v4534
        %v4536 = vmul.f32 %v4531, %v4535
        %vm4537 = vweird.f32 %v4520
        %vm4538 = vweird.f32 %v4531
        %vm4539 = vmor %vm4537, %vm4538
        %v4540 = vsel %vm4539, %v4531, %v4536
        %v4541 = vmul.f32 %v4509, %v4530
        %v4542 = vmul.f32 %v4510, %v4540
        %v4543 = vperm.slane %v1053, 4
        %v4544 = vmul.f32 %v4541, %v4543
        %v4545 = vmul.f32 %v4542, %v4543
        %v4546 = vperm.slane %v1053, 5
        %v4547 = vadd.f32 %v4544, %v4546
        %v4548 = vadd.f32 %v4545, %v4546
        %v4549 = vld [vmem:[%s14] sm:$0xff]
        %v4550 = vld [vmem:[%s14 + $0x8] sm:$0xff]
        %v4551 = vld [vmem:[%s14 + $0x10] sm:$0xff]
        %v4552 = vld [vmem:[%s14 + $0x18] sm:$0xff]
        %v4553 = vld [vmem:[%s14 + $0x20] sm:$0xff]
        %v4554 = vld [vmem:[%s14 + $0x28] sm:$0xff]
        %v4555 = vld [vmem:[%s14 + $0x30] sm:$0xff]
        %v4556 = vld [vmem:[%s14 + $0x38] sm:$0xff]
        %v4557 = vld [vmem:[%s14 + $0x40] sm:$0xff]
        %v4558 = vld [vmem:[%s14 + $0x48] sm:$0xff]
        %v4559 = vld [vmem:[%s14 + $0x50] sm:$0xff]
        %v4560 = vld [vmem:[%s14 + $0x58] sm:$0xff]
        %v4561 = vld [vmem:[%s14 + $0x60] sm:$0xff]
        %v4562 = vld [vmem:[%s14 + $0x68] sm:$0xff]
        %v4563 = vld [vmem:[%s14 + $0x70] sm:$0xff]
        %v4564 = vld [vmem:[%s14 + $0x78] sm:$0xff]
        %v4565 = vpack.c.bf16 %v4548, %v4547
        %v4566 = vld [vmem:[%s21] sm:$0x3]
        %v4568 = vperm.slane %v4566, 0
        %v4569 = vperm.slane %v4566, 1
        %v4588 = vunpack.c.l.b16 %v4549
        %v4589 = vunpack.c.h.b16 %v4549
        %v4590 = vunpack.c.l.b16 %v4550
        %v4591 = vunpack.c.h.b16 %v4550
        %v4592 = vunpack.c.l.b16 %v4551
        %v4593 = vunpack.c.h.b16 %v4551
        %v4594 = vunpack.c.l.b16 %v4552
        %v4595 = vunpack.c.h.b16 %v4552
        %v4596 = vunpack.c.l.b16 %v4553
        %v4597 = vunpack.c.h.b16 %v4553
        %v4598 = vunpack.c.l.b16 %v4554
        %v4599 = vunpack.c.h.b16 %v4554
        %v4600 = vunpack.c.l.b16 %v4555
        %v4601 = vunpack.c.h.b16 %v4555
        %v4602 = vunpack.c.l.b16 %v4556
        %v4603 = vunpack.c.h.b16 %v4556
        %v4604 = vunpack.c.l.b16 %v4557
        %v4605 = vunpack.c.h.b16 %v4557
        %v4606 = vunpack.c.l.b16 %v4558
        %v4607 = vunpack.c.h.b16 %v4558
        %v4608 = vunpack.c.l.b16 %v4559
        %v4609 = vunpack.c.h.b16 %v4559
        %v4610 = vunpack.c.l.b16 %v4560
        %v4611 = vunpack.c.h.b16 %v4560
        %v4612 = vunpack.c.l.b16 %v4561
        %v4613 = vunpack.c.h.b16 %v4561
        %v4614 = vunpack.c.l.b16 %v4562
        %v4615 = vunpack.c.h.b16 %v4562
        %v4616 = vunpack.c.l.b16 %v4563
        %v4617 = vunpack.c.h.b16 %v4563
        %v4618 = vunpack.c.l.b16 %v4564
        %v4619 = vunpack.c.h.b16 %v4564
        %v4620 = vpack.c.b16 %v4590, %v4588
        %v4621 = vpack.c.b16 %v4591, %v4589
        %v4622 = vpack.c.b16 %v4594, %v4592
        %v4623 = vpack.c.b16 %v4595, %v4593
        %v4624 = vpack.c.b16 %v4598, %v4596
        %v4625 = vpack.c.b16 %v4599, %v4597
        %v4626 = vpack.c.b16 %v4602, %v4600
        %v4627 = vpack.c.b16 %v4603, %v4601
        %v4628 = vpack.c.b16 %v4606, %v4604
        %v4629 = vpack.c.b16 %v4607, %v4605
        %v4630 = vpack.c.b16 %v4610, %v4608
        %v4631 = vpack.c.b16 %v4611, %v4609
        %v4632 = vpack.c.b16 %v4614, %v4612
        %v4633 = vpack.c.b16 %v4615, %v4613
        %v4634 = vpack.c.b16 %v4618, %v4616
        %v4635 = vpack.c.b16 %v4619, %v4617
        %4652 = vmatpush.bf16.msra.mxu0 %v4634
        %4653 = vmatpush.bf16.msra.mxu0 %v4632
        %4654 = vmatpush.bf16.msra.mxu0 %v4630
        %4655 = vmatpush.bf16.msra.mxu0 %v4628
        %4656 = vmatpush.bf16.msra.mxu0 %v4626
        %4657 = vmatpush.bf16.msra.mxu0 %v4624
        %4658 = vmatpush.bf16.msra.mxu0 %v4622
        %4659 = vmatpush.bf16.msra.mxu0 %v4620
        %4660 = vmatmul.bf16.gmra.mxu0 %v4565
        %v4661 = vpop.f32.mrf.mxu0
        %v4662 = vadd.f32 %v4568, %v4661
        %v4663 = vpop.f32.mrf.mxu0
        %v4664 = vadd.f32 %v4568, %v4663
        %4665 = vdwg.mxu0
        %4666 = vmatpush.bf16.msra.mxu0 %v4635
        %4667 = vmatpush.bf16.msra.mxu0 %v4633
        %4668 = vmatpush.bf16.msra.mxu0 %v4631
        %4669 = vmatpush.bf16.msra.mxu0 %v4629
        %4670 = vmatpush.bf16.msra.mxu0 %v4627
        %4671 = vmatpush.bf16.msra.mxu0 %v4625
        %4672 = vmatpush.bf16.msra.mxu0 %v4623
        %4673 = vmatpush.bf16.msra.mxu0 %v4621
        %4674 = vmatmul.bf16.gmra.mxu0 %v4565
        %v4675 = vpop.f32.mrf.mxu0
        %v4676 = vadd.f32 %v4569, %v4675
        %v4677 = vpop.f32.mrf.mxu0
        %v4678 = vadd.f32 %v4569, %v4677
        %4679 = vdwg.mxu0
        %v4680 = vmax.f32 %v4662, 0.0
        %v4681 = vmax.f32 %v4676, 0.0
        %v4682 = vmax.f32 %v4664, 0.0
        %v4683 = vmax.f32 %v4678, 0.0
        %v4684 = vld [vmem:[#allocation19] sm:$0xf]
        %v4685 = vld [vmem:[#allocation19 + $0x4] sm:$0xf]
        %v4686 = vld [vmem:[#allocation19 + $0x8] sm:$0xf]
        %v4687 = vld [vmem:[#allocation19 + $0xc] sm:$0xf]
        %v4688 = vld [vmem:[#allocation19 + $0x10] sm:$0xf]
        %v4689 = vld [vmem:[#allocation19 + $0x14] sm:$0xf]
        %v4690 = vld [vmem:[#allocation19 + $0x18] sm:$0xf]
        %v4691 = vld [vmem:[#allocation19 + $0x1c] sm:$0xf]
        %v4692 = vld [vmem:[#allocation19 + $0x20] sm:$0xf]
        %v4693 = vld [vmem:[#allocation19 + $0x24] sm:$0xf]
        %v4694 = vld [vmem:[#allocation19 + $0x28] sm:$0xf]
        %v4695 = vld [vmem:[#allocation19 + $0x2c] sm:$0xf]
        %v4696 = vld [vmem:[#allocation19 + $0x30] sm:$0xf]
        %v4697 = vld [vmem:[#allocation19 + $0x34] sm:$0xf]
        %v4698 = vld [vmem:[#allocation19 + $0x38] sm:$0xf]
        %v4699 = vld [vmem:[#allocation19 + $0x3c] sm:$0xf]
        %v4700 = vld [vmem:[#allocation19 + $0x40] sm:$0xf]
        %v4701 = vld [vmem:[#allocation19 + $0x44] sm:$0xf]
        %v4702 = vld [vmem:[#allocation19 + $0x48] sm:$0xf]
        %v4703 = vld [vmem:[#allocation19 + $0x4c] sm:$0xf]
        %v4704 = vld [vmem:[#allocation19 + $0x50] sm:$0xf]
        %v4705 = vld [vmem:[#allocation19 + $0x54] sm:$0xf]
        %v4706 = vld [vmem:[#allocation19 + $0x58] sm:$0xf]
        %v4707 = vld [vmem:[#allocation19 + $0x5c] sm:$0xf]
        %v4708 = vld [vmem:[#allocation19 + $0x60] sm:$0xf]
        %v4709 = vld [vmem:[#allocation19 + $0x64] sm:$0xf]
        %v4710 = vld [vmem:[#allocation19 + $0x68] sm:$0xf]
        %v4711 = vld [vmem:[#allocation19 + $0x6c] sm:$0xf]
        %v4712 = vld [vmem:[#allocation19 + $0x70] sm:$0xf]
        %v4713 = vld [vmem:[#allocation19 + $0x74] sm:$0xf]
        %v4714 = vld [vmem:[#allocation19 + $0x78] sm:$0xf]
        %v4715 = vld [vmem:[#allocation19 + $0x7c] sm:$0xf]
        %v4716 = vpack.c.bf16 %v4682, %v4680
        %v4717 = vpack.c.bf16 %v4683, %v4681
        %v4718 = vperm.slane %v1054, 3
        %v4751 = vunpack.c.l.b16 %v4684
        %v4752 = vunpack.c.l.b16 %v4685
        %v4753 = vunpack.c.l.b16 %v4686
        %v4754 = vunpack.c.l.b16 %v4687
        %v4755 = vunpack.c.l.b16 %v4688
        %v4756 = vunpack.c.l.b16 %v4689
        %v4757 = vunpack.c.l.b16 %v4690
        %v4758 = vunpack.c.l.b16 %v4691
        %v4759 = vunpack.c.l.b16 %v4692
        %v4760 = vunpack.c.l.b16 %v4693
        %v4761 = vunpack.c.l.b16 %v4694
        %v4762 = vunpack.c.l.b16 %v4695
        %v4763 = vunpack.c.l.b16 %v4696
        %v4764 = vunpack.c.l.b16 %v4697
        %v4765 = vunpack.c.l.b16 %v4698
        %v4766 = vunpack.c.l.b16 %v4699
        %v4767 = vunpack.c.l.b16 %v4700
        %v4768 = vunpack.c.l.b16 %v4701
        %v4769 = vunpack.c.l.b16 %v4702
        %v4770 = vunpack.c.l.b16 %v4703
        %v4771 = vunpack.c.l.b16 %v4704
        %v4772 = vunpack.c.l.b16 %v4705
        %v4773 = vunpack.c.l.b16 %v4706
        %v4774 = vunpack.c.l.b16 %v4707
        %v4775 = vunpack.c.l.b16 %v4708
        %v4776 = vunpack.c.l.b16 %v4709
        %v4777 = vunpack.c.l.b16 %v4710
        %v4778 = vunpack.c.l.b16 %v4711
        %v4779 = vunpack.c.l.b16 %v4712
        %v4780 = vunpack.c.l.b16 %v4713
        %v4781 = vunpack.c.l.b16 %v4714
        %v4782 = vunpack.c.l.b16 %v4715
        %v4783 = vpack.c.b16 %v4752, %v4751
        %v4784 = vpack.c.b16 %v4754, %v4753
        %v4785 = vpack.c.b16 %v4756, %v4755
        %v4786 = vpack.c.b16 %v4758, %v4757
        %v4787 = vpack.c.b16 %v4760, %v4759
        %v4788 = vpack.c.b16 %v4762, %v4761
        %v4789 = vpack.c.b16 %v4764, %v4763
        %v4790 = vpack.c.b16 %v4766, %v4765
        %v4791 = vpack.c.b16 %v4768, %v4767
        %v4792 = vpack.c.b16 %v4770, %v4769
        %v4793 = vpack.c.b16 %v4772, %v4771
        %v4794 = vpack.c.b16 %v4774, %v4773
        %v4795 = vpack.c.b16 %v4776, %v4775
        %v4796 = vpack.c.b16 %v4778, %v4777
        %v4797 = vpack.c.b16 %v4780, %v4779
        %v4798 = vpack.c.b16 %v4782, %v4781
        %4815 = vmatpush.bf16.msra.mxu0 %v4790
        %4816 = vmatpush.bf16.msra.mxu0 %v4789
        %4817 = vmatpush.bf16.msra.mxu0 %v4788
        %4818 = vmatpush.bf16.msra.mxu0 %v4787
        %4819 = vmatpush.bf16.msra.mxu0 %v4786
        %4820 = vmatpush.bf16.msra.mxu0 %v4785
        %4821 = vmatpush.bf16.msra.mxu0 %v4784
        %4822 = vmatpush.bf16.msra.mxu0 %v4783
        %4823 = vmatmul.bf16.gmra.mxu0 %v4716
        %v4824 = vpop.f32.mrf.mxu0
        %v4825 = vadd.f32 %v4718, %v4824
        %v4826 = vpop.f32.mrf.mxu0
        %v4827 = vadd.f32 %v4718, %v4826
        %4828 = vdwg.mxu0
        %4829 = vmatpush.bf16.msra.mxu0 %v4798
        %4830 = vmatpush.bf16.msra.mxu0 %v4797
        %4831 = vmatpush.bf16.msra.mxu0 %v4796
        %4832 = vmatpush.bf16.msra.mxu0 %v4795
        %4833 = vmatpush.bf16.msra.mxu0 %v4794
        %4834 = vmatpush.bf16.msra.mxu0 %v4793
        %4835 = vmatpush.bf16.msra.mxu0 %v4792
        %4836 = vmatpush.bf16.msra.mxu0 %v4791
        %4837 = vmatmul.bf16.gmra.mxu0 %v4717
        %v4838 = vpop.f32.mrf.mxu0
        %v4839 = vadd.f32 %v4825, %v4838
        %v4840 = vpop.f32.mrf.mxu0
        %v4841 = vadd.f32 %v4827, %v4840
        %4842 = vdwg.mxu0
        %v4843 = vadd.f32 %v4547, %v4839
        %v4844 = vadd.f32 %v4548, %v4841
        %4845 = vadd.xlane.f32.xlu0 %v4843
        %v4846 = vpop.xlane.xlu0 %4845
        %4847 = vadd.xlane.f32.xlu0 %v4844
        %v4848 = vpop.xlane.xlu0 %4847
        %v4849 = vmul.f32 %v4846, %v1523
        %v4850 = vmul.f32 %v4848, %v1523
        %v4851 = vsub.f32 %v4843, %v4849
        %v4852 = vsub.f32 %v4844, %v4850
        %v4853 = vmul.f32 %v4851, %v4851
        %v4854 = vmul.f32 %v4852, %v4852
        %4855 = vadd.xlane.f32.xlu0 %v4853
        %v4856 = vpop.xlane.xlu0 %4855
        %4857 = vadd.xlane.f32.xlu0 %v4854
        %v4858 = vpop.xlane.xlu0 %4857
        %v4859 = vmul.f32 %v4856, %v1523
        %v4860 = vmul.f32 %v4858, %v1523
        %v4861 = vadd.f32 %v4859, 1e-05
        %v4862 = vadd.f32 %v4860, 1e-05
        %v4863 = vrsqrt.pop %v4861
        %v4864 = vmul.f32 %v4863, %v4861
        %v4865 = vmul.f32 %v4864, %v4863
        %v4866 = vmul.f32 0.5, %v4865
        %v4867 = vsub.f32 1.5, %v4866
        %v4868 = vmul.f32 %v4863, %v4867
        %vm4869 = vweird.f32 %v4861
        %vm4870 = vweird.f32 %v4863
        %vm4871 = vmor %vm4869, %vm4870
        %v4872 = vsel %vm4871, %v4863, %v4868
        %v4873 = vrsqrt.pop %v4862
        %v4874 = vmul.f32 %v4873, %v4862
        %v4875 = vmul.f32 %v4874, %v4873
        %v4876 = vmul.f32 0.5, %v4875
        %v4877 = vsub.f32 1.5, %v4876
        %v4878 = vmul.f32 %v4873, %v4877
        %vm4879 = vweird.f32 %v4862
        %vm4880 = vweird.f32 %v4873
        %vm4881 = vmor %vm4879, %vm4880
        %v4882 = vsel %vm4881, %v4873, %v4878
        %v4883 = vmul.f32 %v4851, %v4872
        %v4884 = vmul.f32 %v4852, %v4882
        %v4885 = vperm.slane %v1053, 6
        %v4886 = vmul.f32 %v4883, %v4885
        %v4887 = vmul.f32 %v4884, %v4885
        %v4888 = vperm.slane %v1053, 7
        %v4889 = vadd.f32 %v4886, %v4888
        %v4890 = vadd.f32 %v4887, %v4888
        %v4891 = vpack.c.bf16 %v4889, %v4889
        %v4892 = vpack.c.bf16 %v4890, %v4890
        %4893 = vst [vmem:[%s1040] sm:$0xf] %v4891
        %4894 = vst [vmem:[%s1040 + $0x4] sm:$0xf] %v4892
        %s4895 = sand.u32 %s567, 1
        %s4896 = scalar_lea.sflag [#allocation4], %s4895
        %s4897 = sand.u32 %s567, 1
        %s4898 = smul.addr %s4897, 8
        %s4899 = scalar_lea.vmem [#allocation26], %s4898
        // Predicated region
        $region173: #{tpu_custom_call.1} parent=111 // pred_check
          %p4900 = pneg %p577
        $region174: #{tpu_custom_call.1} parent=111 // pred_check_branch
          %4902 = sbr.rel (%p4900) target = $region176
        $region175: #{tpu_custom_call.1} parent=111 // pred_region
          %s4903 = smul.u32 2, %s51
          %4905 = vsyncadd %s4896, 0
          %s4906 = smul.addr %s4903, 4
          %s4907 = scalar_lea.hbm %s23, %s4906
          %s4908 = sshll.u32 %s4899, 4
          %s4909 = int_to_ptr.vmem [resolvable:$true] %s4908
          %s4910 = sshll.u32 %s4907, 4
          %s4911 = int_to_ptr.hbm [resolvable:$true] %s4910
          %4916 = dma.vmem_to_hbm [thread:$0]  %s4909, 128, %s4911, %s4896, 64, 64, 4
        $region176: #{tpu_custom_call.1} parent=111 // pred_fallthru
          _
      $region112: #{tpu_custom_call.1} parent=5 // pred_fallthru
        _
      %p4917 = scmp.le.s32.totalorder 2, %s46
      // Predicated region
      $region177: #{tpu_custom_call.1} parent=5 // pred_check
        %p4918 = pneg %p4917
      $region178: #{tpu_custom_call.1} parent=5 // pred_check_branch
        %4920 = sbr.rel (%p4918) target = $region180
      $region179: #{tpu_custom_call.1} parent=5 // pred_region
        %s4921 = ssub.s32 %s46, 2
        // Predicated region
        $region181: #{tpu_custom_call.1} parent=179 // pred_check
          %p4922 = pneg %p583
        $region182: #{tpu_custom_call.1} parent=179 // pred_check_branch
          %4924 = sbr.rel (%p4922) target = $region184
        $region183: #{tpu_custom_call.1} parent=179 // pred_region
          %s4925 = sand.u32 %s568, 1
          %s4926 = scalar_lea.sflag [#allocation4], %s4925
          %s4927 = sand.u32 %s568, 1
          %s4928 = smul.addr %s4927, 8
          %s4929 = scalar_lea.vmem [#allocation26], %s4928
          %4931 = dma.done %s4926, 128
        $region184: #{tpu_custom_call.1} parent=179 // pred_fallthru
          _
      $region180: #{tpu_custom_call.1} parent=5 // pred_fallthru
        _
    $region6: #{tpu_custom_call.1} parent=1 // loop_footer
      %s50 = sadd.s32 1, %s46
    $region7: #{tpu_custom_call.1} parent=1 // loop_footer_branch
      %45 = sbr.rel target = $region3
    $region8: #{tpu_custom_call.1} parent=1 // loop_exit
      _
    %4932 = vsyncpa [#allocation3], 1
    %s4933 = scalar_lea.sflag [#allocation3], 1
    %4934 = vsyncpa %s4933, 1
    %4935 = vsyncpa [#allocation6], 1
    %s4936 = scalar_lea.sflag [#allocation6], 1
    %4937 = vsyncpa %s4936, 1
    %4938 = vsyncpa [#allocation9], 1
    %s4939 = scalar_lea.sflag [#allocation9], 1
    %4940 = vsyncpa %s4939, 1
    %4941 = vsyncpa [#allocation12], 1
    %4942 = vsyncpa [#allocation15], 1
    %4943 = vsyncpa [#allocation18], 1
    %4944 = vsyncpa [#allocation21], 1
    %4945 = vsyncpa [#allocation24], 1
    %4946 = vsyncpa [#allocation4], 1
    %s4947 = scalar_lea.sflag [#allocation4], 1
    %4948 = vsyncpa %s4947, 1

</llo_original>
